<compile_context>
chip_gen: v6e
topology: v6e:2x2x1
jax: 0.10.0
libtpu: 0.0.40
codegen_flags: <defaults>
</compile_context>

<pallas_src>
import functools

import jax
import jax.numpy as jnp
from jax.experimental import pallas as pl
from jax.experimental.pallas import tpu as pltpu


# ----------------------------------------------------------------------------
# Kernel 1: fused GCN stack on a node-major activation slab.
#     h <- adj @ h                        (N, N)     @ (N, BT*F)
#     h <- h @ kron(I_BT, W_l) + b_l      (N, BT*F)  @ (BT*F, BT*F')
#     h <- relu(h)
# The kron packing keeps (b, t) inside the lane axis on both sides, so there is
# no in-kernel relayout and the output store is lane-dense.  The kron flop
# inflation (BT x) is a few MFLOP at these sizes -- far below one MXU pass.
# ----------------------------------------------------------------------------
def _gcn_fused_kernel(*refs, n_layers):
    adj_ref, x_ref = refs[0], refs[1]
    o_ref = refs[-1]
    adj = adj_ref[...]
    h = x_ref[...]
    for l in range(n_layers):
        w = refs[2 + 2 * l][...]          # (BT*F_l, BT*F_{l+1}) block-diag
        b = refs[3 + 2 * l][...]          # (1,  BT*F_{l+1})
        h = jnp.dot(adj, h, preferred_element_type=jnp.float32)
        h = jnp.dot(h, w, preferred_element_type=jnp.float32) + b
        h = jnp.maximum(h, 0.0)           # inner GCN ReLU / folded outer F.relu
    o_ref[...] = h


def gcn_stack(adj, x_slab, w_blocks, b_tiles):
    """adj (N,N), x_slab (N, BT*F0) -> (N, BT*F_last), float32."""
    N = x_slab.shape[0]
    n_layers = len(w_blocks)
    c_out = w_blocks[-1].shape[1]

    flops = 0
    bytes_accessed = (adj.size + x_slab.size + N * c_out) * 4
    c = x_slab.shape[1]
    for w in w_blocks:
        flops += 2 * N * N * c + 2 * N * c * w.shape[1]
        bytes_accessed += (w.size + w.shape[1]) * 4
        c = w.shape[1]

    operands = [adj, x_slab]
    for w, b in zip(w_blocks, b_tiles):
        operands += [w, b]

    return pl.pallas_call(
        functools.partial(_gcn_fused_kernel, n_layers=n_layers),
        out_shape=jax.ShapeDtypeStruct((N, c_out), jnp.float32),
        cost_estimate=pl.CostEstimate(flops=int(flops), transcendentals=0,
                                      bytes_accessed=int(bytes_accessed)),
        compiler_params=pltpu.CompilerParams(
            vmem_limit_bytes=32 * 1024 * 1024),
    )(*operands)


# ----------------------------------------------------------------------------
# Kernel 2: 2-layer LSTM (PyTorch nn.LSTM semantics, zero initial state).
# Input tile: (N_TILE, B, T, H); gate columns pre-permuted to [i, f, o, g];
# biases are (1, 4H) = b_ih + b_hh.  Writes the top-layer hidden at t = T-1.
# ----------------------------------------------------------------------------
def _lstm_kernel(x_ref, wih0_ref, whh0_ref, b0_ref,
                 wih1_ref, whh1_ref, b1_ref, o_ref):
    NT, B, T, H = x_ref.shape
    NB = NT * B

    def run_layer(gates_x, whh, need_seq):
        """gates_x: (T*NB, 4H), rows t-major. Returns h sequence or final h."""
        h = jnp.zeros((NB, H), jnp.float32)
        c = jnp.zeros((NB, H), jnp.float32)
        hs = []
        for t in range(T):                                 # static unroll
            gates = gates_x[t * NB:(t + 1) * NB, :] + jnp.dot(
                h, whh, preferred_element_type=jnp.float32)
            sig = jax.nn.sigmoid(gates[:, :3 * H])         # [i | f | o]
            i_g = sig[:, :H]
            f_g = sig[:, H:2 * H]
            o_g = sig[:, 2 * H:3 * H]
            g_g = jnp.tanh(gates[:, 3 * H:])
            c = f_g * c + i_g * g_g
            h = o_g * jnp.tanh(c)
            if need_seq:
                hs.append(h)
        return hs if need_seq else h

    # Layer 0: hoisted input-to-hidden matmul over all T steps at once
    # (t-major rows -> contiguous static row slices inside the recurrence).
    x_tmaj = jnp.concatenate(
        [x_ref[:, :, t, :].reshape(NB, H) for t in range(T)], axis=0)
    gx0 = jnp.dot(x_tmaj, wih0_ref[...],
                  preferred_element_type=jnp.float32) + b0_ref[...]
    seq0 = run_layer(gx0, whh0_ref[...], need_seq=True)

    # Layer 1: hoisted input-to-hidden matmul over the layer-0 output sequence.
    seq0_tmaj = jnp.concatenate(seq0, axis=0)              # (T*NB, H)
    gx1 = jnp.dot(seq0_tmaj, wih1_ref[...],
                  preferred_element_type=jnp.float32) + b1_ref[...]
    h_last = run_layer(gx1, whh1_ref[...], need_seq=False)  # (NB, H)

    o_ref[...] = h_last.reshape(NT, B, H)


def lstm_last(x_nbth, wih0, whh0, b0, wih1, whh1, b1, *, n_tile=8):
    """x_nbth: (N, B, T, H) -> (N, B, H): top-layer hidden state at t = T-1."""
    N, B, T, H = x_nbth.shape
    n_tile = min(n_tile, N)
    assert N % n_tile == 0, (N, n_tile)
    grid = (N // n_tile,)

    nb = n_tile * B
    flops_blk = 2 * (2 * nb * T * H * 4 * H        # hoisted input matmuls
                     + T * 2 * nb * H * 4 * H)     # recurrence matmuls
    flops = flops_blk * grid[0]
    transcendentals = grid[0] * 2 * T * nb * 5 * H
    bytes_accessed = 4 * (x_nbth.size + N * B * H
                          + grid[0] * 4 * (H * 4 * H + 4 * H))

    w_spec = pl.BlockSpec((H, 4 * H), lambda i: (0, 0))
    b_spec = pl.BlockSpec((1, 4 * H), lambda i: (0, 0))

    return pl.pallas_call(
        _lstm_kernel,
        out_shape=jax.ShapeDtypeStruct((N, B, H), jnp.float32),
        grid=grid,
        in_specs=[
            pl.BlockSpec((n_tile, B, T, H), lambda i: (i, 0, 0, 0)),
            w_spec, w_spec, b_spec, w_spec, w_spec, b_spec,
        ],
        out_specs=pl.BlockSpec((n_tile, B, H), lambda i: (i, 0, 0)),
        compiler_params=pltpu.CompilerParams(
            dimension_semantics=("parallel",),
            vmem_limit_bytes=32 * 1024 * 1024),
        cost_estimate=pl.CostEstimate(flops=int(flops),
                                      transcendentals=int(transcendentals),
                                      bytes_accessed=int(bytes_accessed)),
    )(x_nbth, wih0, whh0, b0, wih1, whh1, b1)


# ----------------------------------------------------------------------------
# One-time constant packing (done outside the per-step forward).
# ----------------------------------------------------------------------------
def pack_params(params, B, T):
    BT = B * T
    eye_bt = jnp.eye(BT, dtype=jnp.float32)
    packed = {k: v for k, v in params.items()
              if k not in ("gcn_ws", "gcn_bs")}
    packed["gcn_w_blocks"] = [jnp.kron(eye_bt, w) for w in params["gcn_ws"]]
    packed["gcn_b_tiles"] = [jnp.tile(b, (1, BT)) for b in params["gcn_bs"]]
    return packed


# ----------------------------------------------------------------------------
# Full GCN_LSTM forward
# ----------------------------------------------------------------------------
def gcn_lstm_forward(x, adj, packed):
    B, T, N, F0 = x.shape
    H = packed["whh0"].shape[0]
    BT = B * T

    # (B, T, N, F0) -> node-major slab (N, BT*F0) with columns ordered (b,t,f).
    x_slab = jnp.transpose(x, (2, 0, 1, 3)).reshape(N, BT * F0)

    h_slab = gcn_stack(adj, x_slab,
                       packed["gcn_w_blocks"], packed["gcn_b_tiles"])

    # Free (HBM-level bitcast) reshape: columns (b,t,h) -> (N, B, T, H); the
    # LSTM kernel indexes this layout directly -> no transpose between kernels.
    h4 = h_slab.reshape(N, B, T, H)

    out_nbh = lstm_last(h4,
                        packed["wih0"], packed["whh0"], packed["b0"],
                        packed["wih1"], packed["whh1"], packed["b1"])
    return jnp.transpose(out_nbh, (1, 0, 2))               # (B, N, H)


def _to_ifog(w_t):
    """Permute packed gate columns from PyTorch's [i,f,g,o] to [i,f,o,g]."""
    h4 = w_t.shape[-1]
    h = h4 // 4
    return jnp.concatenate(
        [w_t[..., :2 * h], w_t[..., 3 * h:], w_t[..., 2 * h:3 * h]], axis=-1)


def init_params(key, dims, atten_depth=2):
    """Deterministic parameter init matching the PyTorch module's shapes."""
    H = dims[-1]
    params = {"gcn_ws": [], "gcn_bs": []}
    for i in range(len(dims) - 1):
        key, k1, k2 = jax.random.split(key, 3)
        bound = 1.0 / jnp.sqrt(dims[i])
        params["gcn_ws"].append(
            jax.random.uniform(k1, (dims[i], dims[i + 1]), jnp.float32,
                               -bound, bound))
        params["gcn_bs"].append(
            jax.random.uniform(k2, (1, dims[i + 1]), jnp.float32,
                               -bound, bound))

    assert atten_depth == 2, "kernel hard-codes the 2-layer LSTM of GCN_LSTM"
    bound = 1.0 / jnp.sqrt(H)
    for layer in range(atten_depth):
        key, k1, k2, k3, k4 = jax.random.split(key, 5)
        in_dim = H  # input size == hidden size for both layers here
        w_ih = jax.random.uniform(k1, (4 * H, in_dim), jnp.float32, -bound, bound)
        w_hh = jax.random.uniform(k2, (4 * H, H), jnp.float32, -bound, bound)
        b_ih = jax.random.uniform(k3, (4 * H,), jnp.float32, -bound, bound)
        b_hh = jax.random.uniform(k4, (4 * H,), jnp.float32, -bound, bound)
        # Kernel consumes pre-transposed weights (in, 4H), summed biases, and
        # gate columns permuted to [i, f, o, g] (one contiguous sigmoid slice).
        params[f"wih{layer}"] = _to_ifog(w_ih.T)
        params[f"whh{layer}"] = _to_ifog(w_hh.T)
        params[f"b{layer}"] = _to_ifog((b_ih + b_hh).reshape(1, 4 * H))
    return params


if __name__ == "__main__":
    B, T, N = 2, 8, 16
    dims = [4, 16, 32]           # GCN: 4 -> 16 -> 32 ; LSTM hidden = 32
    key = jax.random.PRNGKey(0)

    key, kx, ka = jax.random.split(key, 3)
    x = jax.random.normal(kx, (B, T, N, dims[0]), jnp.float32)

    # simple row-normalized adjacency (self-loops + random edges)
    a = jax.random.uniform(ka, (N, N), jnp.float32)
    a = (a > 0.7).astype(jnp.float32)
    a = a + a.T + jnp.eye(N, dtype=jnp.float32)
    adj = a / jnp.sum(a, axis=1, keepdims=True)

    params = init_params(key, dims, atten_depth=2)
    packed = pack_params(params, B, T)     # one-time constant packing

    fwd = jax.jit(gcn_lstm_forward)
    out = fwd(x, adj, packed)
    out = jax.block_until_ready(out)
    assert out.shape == (B, N, dims[-1]), out.shape
    assert bool(jnp.all(jnp.isfinite(out)))
    print("KERNEL_OK")
</pallas_src>

<mosaic_0001>
module attributes {stable_mosaic.version = 11 : i64} {
  func.func @_gcn_fused_kernel(%arg0: memref<16x16xf32, #tpu.memory_space<vmem>>, %arg1: memref<16x64xf32, #tpu.memory_space<vmem>>, %arg2: memref<64x256xf32, #tpu.memory_space<vmem>>, %arg3: memref<1x256xf32, #tpu.memory_space<vmem>>, %arg4: memref<256x512xf32, #tpu.memory_space<vmem>>, %arg5: memref<1x512xf32, #tpu.memory_space<vmem>>, %arg6: memref<16x512xf32, #tpu.memory_space<vmem>>) attributes {dimension_semantics = [], scalar_prefetch = 0 : i64, scratch_operands = 0 : i64, tpu.core_type = #tpu.core_type<tc>} {
    %c0 = arith.constant 0 : index
    %c0_0 = arith.constant 0 : index
    %0 = vector.load %arg0[%c0, %c0_0] : memref<16x16xf32, #tpu.memory_space<vmem>>, vector<16x16xf32>
    %c0_1 = arith.constant 0 : index
    %c0_2 = arith.constant 0 : index
    %1 = vector.load %arg1[%c0_1, %c0_2] : memref<16x64xf32, #tpu.memory_space<vmem>>, vector<16x64xf32>
    %c0_3 = arith.constant 0 : index
    %c0_4 = arith.constant 0 : index
    %2 = vector.load %arg2[%c0_3, %c0_4] : memref<64x256xf32, #tpu.memory_space<vmem>>, vector<64x256xf32>
    %c0_5 = arith.constant 0 : index
    %c0_6 = arith.constant 0 : index
    %3 = vector.load %arg3[%c0_5, %c0_6] : memref<1x256xf32, #tpu.memory_space<vmem>>, vector<1x256xf32>
    %cst = arith.constant dense<0.000000e+00> : vector<16x64xf32>
    %4 = tpu.matmul %0, %1, %cst {dimension_numbers = #tpu.dot_dimension_numbers<[1], [0], [0], [1], [0, 0, 1, 1], [], []>} : vector<16x16xf32>, vector<16x64xf32>, vector<16x64xf32> -> vector<16x64xf32>
    %cst_7 = arith.constant dense<0.000000e+00> : vector<16x256xf32>
    %5 = tpu.matmul %4, %2, %cst_7 {dimension_numbers = #tpu.dot_dimension_numbers<[1], [0], [0], [1], [0, 0, 1, 1], [], []>} : vector<16x64xf32>, vector<64x256xf32>, vector<16x256xf32> -> vector<16x256xf32>
    %6 = vector.broadcast %3 : vector<1x256xf32> to vector<16x256xf32>
    %7 = arith.addf %5, %6 : vector<16x256xf32>
    %cst_8 = arith.constant 0.000000e+00 : f32
    %8 = vector.broadcast %cst_8 : f32 to vector<16x256xf32>
    %9 = arith.maximumf %7, %8 : vector<16x256xf32>
    %c0_9 = arith.constant 0 : index
    %c0_10 = arith.constant 0 : index
    %10 = vector.load %arg4[%c0_9, %c0_10] : memref<256x512xf32, #tpu.memory_space<vmem>>, vector<256x512xf32>
    %c0_11 = arith.constant 0 : index
    %c0_12 = arith.constant 0 : index
    %11 = vector.load %arg5[%c0_11, %c0_12] : memref<1x512xf32, #tpu.memory_space<vmem>>, vector<1x512xf32>
    %cst_13 = arith.constant dense<0.000000e+00> : vector<16x256xf32>
    %12 = tpu.matmul %0, %9, %cst_13 {dimension_numbers = #tpu.dot_dimension_numbers<[1], [0], [0], [1], [0, 0, 1, 1], [], []>} : vector<16x16xf32>, vector<16x256xf32>, vector<16x256xf32> -> vector<16x256xf32>
    %cst_14 = arith.constant dense<0.000000e+00> : vector<16x512xf32>
    %13 = tpu.matmul %12, %10, %cst_14 {dimension_numbers = #tpu.dot_dimension_numbers<[1], [0], [0], [1], [0, 0, 1, 1], [], []>} : vector<16x256xf32>, vector<256x512xf32>, vector<16x512xf32> -> vector<16x512xf32>
    %14 = vector.broadcast %11 : vector<1x512xf32> to vector<16x512xf32>
    %15 = arith.addf %13, %14 : vector<16x512xf32>
    %cst_15 = arith.constant 0.000000e+00 : f32
    %16 = vector.broadcast %cst_15 : f32 to vector<16x512xf32>
    %17 = arith.maximumf %15, %16 : vector<16x512xf32>
    %c0_16 = arith.constant 0 : index
    %c0_17 = arith.constant 0 : index
    %18 = vector.load %arg6[%c0_16, %c0_17] : memref<16x512xf32, #tpu.memory_space<vmem>>, vector<16x512xf32>
    tpu.vector_store %arg6[%c0_16, %c0_17], %17 {strides = array<i32>} : memref<16x512xf32, #tpu.memory_space<vmem>>, vector<16x512xf32>,
    return
  }
}

module attributes {stable_mosaic.version = 11 : i64} {
  func.func @_lstm_kernel(%arg0: i32, %arg1: memref<8x2x8x32xf32, #tpu.memory_space<vmem>>, %arg2: memref<32x128xf32, #tpu.memory_space<vmem>>, %arg3: memref<32x128xf32, #tpu.memory_space<vmem>>, %arg4: memref<1x128xf32, #tpu.memory_space<vmem>>, %arg5: memref<32x128xf32, #tpu.memory_space<vmem>>, %arg6: memref<32x128xf32, #tpu.memory_space<vmem>>, %arg7: memref<1x128xf32, #tpu.memory_space<vmem>>, %arg8: memref<8x2x32xf32, #tpu.memory_space<vmem>>) attributes {dimension_semantics = [#tpu.dimension_semantics<parallel>], iteration_bounds = array<i64: 2>, scalar_prefetch = 0 : i64, scratch_operands = 0 : i64, tpu.core_type = #tpu.core_type<tc>, window_params = [{transform_indices = @transform_0, window_bounds = array<i64: 8, 2, 8, 32>}, {pipeline_mode = #tpu.pipeline_mode<synchronous>, transform_indices = @transform_1, window_bounds = array<i64: 32, 128>}, {pipeline_mode = #tpu.pipeline_mode<synchronous>, transform_indices = @transform_2, window_bounds = array<i64: 32, 128>}, {pipeline_mode = #tpu.pipeline_mode<synchronous>, transform_indices = @transform_3, window_bounds = array<i64: 1, 128>}, {pipeline_mode = #tpu.pipeline_mode<synchronous>, transform_indices = @transform_4, window_bounds = array<i64: 32, 128>}, {pipeline_mode = #tpu.pipeline_mode<synchronous>, transform_indices = @transform_5, window_bounds = array<i64: 32, 128>}, {pipeline_mode = #tpu.pipeline_mode<synchronous>, transform_indices = @transform_6, window_bounds = array<i64: 1, 128>}, {transform_indices = @transform_7, window_bounds = array<i64: 8, 2, 32>}]} {
    %c0 = arith.constant 0 : index
    %c0_0 = arith.constant 0 : index
    %c0_1 = arith.constant 0 : index
    %c0_2 = arith.constant 0 : index
    %0 = vector.load %arg1[%c0, %c0_0, %c0_1, %c0_2] : memref<8x2x8x32xf32, #tpu.memory_space<vmem>>, vector<8x2x1x32xf32>
    %1 = vector.shape_cast %0 : vector<8x2x1x32xf32> to vector<8x2x32xf32>
    %2 = vector.shape_cast %1 : vector<8x2x32xf32> to vector<16x32xf32>
    %c0_3 = arith.constant 0 : index
    %c0_4 = arith.constant 0 : index
    %c1 = arith.constant 1 : index
    %c0_5 = arith.constant 0 : index
    %3 = vector.load %arg1[%c0_3, %c0_4, %c1, %c0_5] : memref<8x2x8x32xf32, #tpu.memory_space<vmem>>, vector<8x2x1x32xf32>
    %4 = vector.shape_cast %3 : vector<8x2x1x32xf32> to vector<8x2x32xf32>
    %5 = vector.shape_cast %4 : vector<8x2x32xf32> to vector<16x32xf32>
    %c0_6 = arith.constant 0 : index
    %c0_7 = arith.constant 0 : index
    %c2 = arith.constant 2 : index
    %c0_8 = arith.constant 0 : index
    %6 = vector.load %arg1[%c0_6, %c0_7, %c2, %c0_8] : memref<8x2x8x32xf32, #tpu.memory_space<vmem>>, vector<8x2x1x32xf32>
    %7 = vector.shape_cast %6 : vector<8x2x1x32xf32> to vector<8x2x32xf32>
    %8 = vector.shape_cast %7 : vector<8x2x32xf32> to vector<16x32xf32>
    %c0_9 = arith.constant 0 : index
    %c0_10 = arith.constant 0 : index
    %c3 = arith.constant 3 : index
    %c0_11 = arith.constant 0 : index
    %9 = vector.load %arg1[%c0_9, %c0_10, %c3, %c0_11] : memref<8x2x8x32xf32, #tpu.memory_space<vmem>>, vector<8x2x1x32xf32>
    %10 = vector.shape_cast %9 : vector<8x2x1x32xf32> to vector<8x2x32xf32>
    %11 = vector.shape_cast %10 : vector<8x2x32xf32> to vector<16x32xf32>
    %c0_12 = arith.constant 0 : index
    %c0_13 = arith.constant 0 : index
    %c4 = arith.constant 4 : index
    %c0_14 = arith.constant 0 : index
    %12 = vector.load %arg1[%c0_12, %c0_13, %c4, %c0_14] : memref<8x2x8x32xf32, #tpu.memory_space<vmem>>, vector<8x2x1x32xf32>
    %13 = vector.shape_cast %12 : vector<8x2x1x32xf32> to vector<8x2x32xf32>
    %14 = vector.shape_cast %13 : vector<8x2x32xf32> to vector<16x32xf32>
    %c0_15 = arith.constant 0 : index
    %c0_16 = arith.constant 0 : index
    %c5 = arith.constant 5 : index
    %c0_17 = arith.constant 0 : index
    %15 = vector.load %arg1[%c0_15, %c0_16, %c5, %c0_17] : memref<8x2x8x32xf32, #tpu.memory_space<vmem>>, vector<8x2x1x32xf32>
    %16 = vector.shape_cast %15 : vector<8x2x1x32xf32> to vector<8x2x32xf32>
    %17 = vector.shape_cast %16 : vector<8x2x32xf32> to vector<16x32xf32>
    %c0_18 = arith.constant 0 : index
    %c0_19 = arith.constant 0 : index
    %c6 = arith.constant 6 : index
    %c0_20 = arith.constant 0 : index
    %18 = vector.load %arg1[%c0_18, %c0_19, %c6, %c0_20] : memref<8x2x8x32xf32, #tpu.memory_space<vmem>>, vector<8x2x1x32xf32>
    %19 = vector.shape_cast %18 : vector<8x2x1x32xf32> to vector<8x2x32xf32>
    %20 = vector.shape_cast %19 : vector<8x2x32xf32> to vector<16x32xf32>
    %c0_21 = arith.constant 0 : index
    %c0_22 = arith.constant 0 : index
    %c7 = arith.constant 7 : index
    %c0_23 = arith.constant 0 : index
    %21 = vector.load %arg1[%c0_21, %c0_22, %c7, %c0_23] : memref<8x2x8x32xf32, #tpu.memory_space<vmem>>, vector<8x2x1x32xf32>
    %22 = vector.shape_cast %21 : vector<8x2x1x32xf32> to vector<8x2x32xf32>
    %23 = vector.shape_cast %22 : vector<8x2x32xf32> to vector<16x32xf32>
    %24 = tpu.concatenate %2, %5, %8, %11, %14, %17, %20, %23 in 0 : vector<16x32xf32>, vector<16x32xf32>, vector<16x32xf32>, vector<16x32xf32>, vector<16x32xf32>, vector<16x32xf32>, vector<16x32xf32>, vector<16x32xf32> -> vector<128x32xf32>
    %c0_24 = arith.constant 0 : index
    %c0_25 = arith.constant 0 : index
    %25 = vector.load %arg2[%c0_24, %c0_25] : memref<32x128xf32, #tpu.memory_space<vmem>>, vector<32x128xf32>
    %cst = arith.constant dense<0.000000e+00> : vector<128x128xf32>
    %26 = tpu.matmul %24, %25, %cst {dimension_numbers = #tpu.dot_dimension_numbers<[1], [0], [0], [1], [0, 0, 1, 1], [], []>} : vector<128x32xf32>, vector<32x128xf32>, vector<128x128xf32> -> vector<128x128xf32>
    %c0_26 = arith.constant 0 : index
    %c0_27 = arith.constant 0 : index
    %27 = vector.load %arg4[%c0_26, %c0_27] : memref<1x128xf32, #tpu.memory_space<vmem>>, vector<1x128xf32>
    %28 = vector.broadcast %27 : vector<1x128xf32> to vector<128x128xf32>
    %29 = arith.addf %26, %28 : vector<128x128xf32>
    %c0_28 = arith.constant 0 : index
    %c0_29 = arith.constant 0 : index
    %30 = vector.load %arg3[%c0_28, %c0_29] : memref<32x128xf32, #tpu.memory_space<vmem>>, vector<32x128xf32>
    %cst_30 = arith.constant 0.000000e+00 : f32
    %31 = vector.broadcast %cst_30 : f32 to vector<16x32xf32>
    %cst_31 = arith.constant 0.000000e+00 : f32
    %32 = vector.broadcast %cst_31 : f32 to vector<16x32xf32>
    %33 = vector.extract_strided_slice %29 {offsets = [0, 0], sizes = [16, 128], strides = [1, 1]} : vector<128x128xf32> to vector<16x128xf32>
    %cst_32 = arith.constant dense<0.000000e+00> : vector<16x128xf32>
    %34 = tpu.matmul %31, %30, %cst_32 {dimension_numbers = #tpu.dot_dimension_numbers<[1], [0], [0], [1], [0, 0, 1, 1], [], []>} : vector<16x32xf32>, vector<32x128xf32>, vector<16x128xf32> -> vector<16x128xf32>
    %35 = arith.addf %33, %34 : vector<16x128xf32>
    %36 = vector.extract_strided_slice %35 {offsets = [0, 0], sizes = [16, 96], strides = [1, 1]} : vector<16x128xf32> to vector<16x96xf32>
    %37 = arith.negf %36 : vector<16x96xf32>
    %38 = math.exp %37 : vector<16x96xf32>
    %cst_33 = arith.constant 1.000000e+00 : f32
    %39 = vector.broadcast %cst_33 : f32 to vector<16x96xf32>
    %40 = arith.addf %39, %38 : vector<16x96xf32>
    %41 = arith.divf %39, %40 : vector<16x96xf32>
    %42 = vector.extract_strided_slice %41 {offsets = [0, 0], sizes = [16, 32], strides = [1, 1]} : vector<16x96xf32> to vector<16x32xf32>
    %43 = vector.extract_strided_slice %41 {offsets = [0, 32], sizes = [16, 32], strides = [1, 1]} : vector<16x96xf32> to vector<16x32xf32>
    %44 = vector.extract_strided_slice %41 {offsets = [0, 64], sizes = [16, 32], strides = [1, 1]} : vector<16x96xf32> to vector<16x32xf32>
    %45 = vector.extract_strided_slice %35 {offsets = [0, 96], sizes = [16, 32], strides = [1, 1]} : vector<16x128xf32> to vector<16x32xf32>
    %46 = math.tanh %45 : vector<16x32xf32>
    %47 = arith.mulf %43, %32 : vector<16x32xf32>
    %48 = arith.mulf %42, %46 : vector<16x32xf32>
    %49 = arith.addf %47, %48 : vector<16x32xf32>
    %50 = math.tanh %49 : vector<16x32xf32>
    %51 = arith.mulf %44, %50 : vector<16x32xf32>
    %52 = vector.extract_strided_slice %29 {offsets = [16, 0], sizes = [16, 128], strides = [1, 1]} : vector<128x128xf32> to vector<16x128xf32>
    %cst_34 = arith.constant dense<0.000000e+00> : vector<16x128xf32>
    %53 = tpu.matmul %51, %30, %cst_34 {dimension_numbers = #tpu.dot_dimension_numbers<[1], [0], [0], [1], [0, 0, 1, 1], [], []>} : vector<16x32xf32>, vector<32x128xf32>, vector<16x128xf32> -> vector<16x128xf32>
    %54 = arith.addf %52, %53 : vector<16x128xf32>
    %55 = vector.extract_strided_slice %54 {offsets = [0, 0], sizes = [16, 96], strides = [1, 1]} : vector<16x128xf32> to vector<16x96xf32>
    %56 = arith.negf %55 : vector<16x96xf32>
    %57 = math.exp %56 : vector<16x96xf32>
    %cst_35 = arith.constant 1.000000e+00 : f32
    %58 = vector.broadcast %cst_35 : f32 to vector<16x96xf32>
    %59 = arith.addf %58, %57 : vector<16x96xf32>
    %60 = arith.divf %58, %59 : vector<16x96xf32>
    %61 = vector.extract_strided_slice %60 {offsets = [0, 0], sizes = [16, 32], strides = [1, 1]} : vector<16x96xf32> to vector<16x32xf32>
    %62 = vector.extract_strided_slice %60 {offsets = [0, 32], sizes = [16, 32], strides = [1, 1]} : vector<16x96xf32> to vector<16x32xf32>
    %63 = vector.extract_strided_slice %60 {offsets = [0, 64], sizes = [16, 32], strides = [1, 1]} : vector<16x96xf32> to vector<16x32xf32>
    %64 = vector.extract_strided_slice %54 {offsets = [0, 96], sizes = [16, 32], strides = [1, 1]} : vector<16x128xf32> to vector<16x32xf32>
    %65 = math.tanh %64 : vector<16x32xf32>
    %66 = arith.mulf %62, %49 : vector<16x32xf32>
    %67 = arith.mulf %61, %65 : vector<16x32xf32>
    %68 = arith.addf %66, %67 : vector<16x32xf32>
    %69 = math.tanh %68 : vector<16x32xf32>
    %70 = arith.mulf %63, %69 : vector<16x32xf32>
    %71 = vector.extract_strided_slice %29 {offsets = [32, 0], sizes = [16, 128], strides = [1, 1]} : vector<128x128xf32> to vector<16x128xf32>
    %cst_36 = arith.constant dense<0.000000e+00> : vector<16x128xf32>
    %72 = tpu.matmul %70, %30, %cst_36 {dimension_numbers = #tpu.dot_dimension_numbers<[1], [0], [0], [1], [0, 0, 1, 1], [], []>} : vector<16x32xf32>, vector<32x128xf32>, vector<16x128xf32> -> vector<16x128xf32>
    %73 = arith.addf %71, %72 : vector<16x128xf32>
    %74 = vector.extract_strided_slice %73 {offsets = [0, 0], sizes = [16, 96], strides = [1, 1]} : vector<16x128xf32> to vector<16x96xf32>
    %75 = arith.negf %74 : vector<16x96xf32>
    %76 = math.exp %75 : vector<16x96xf32>
    %cst_37 = arith.constant 1.000000e+00 : f32
    %77 = vector.broadcast %cst_37 : f32 to vector<16x96xf32>
    %78 = arith.addf %77, %76 : vector<16x96xf32>
    %79 = arith.divf %77, %78 : vector<16x96xf32>
    %80 = vector.extract_strided_slice %79 {offsets = [0, 0], sizes = [16, 32], strides = [1, 1]} : vector<16x96xf32> to vector<16x32xf32>
    %81 = vector.extract_strided_slice %79 {offsets = [0, 32], sizes = [16, 32], strides = [1, 1]} : vector<16x96xf32> to vector<16x32xf32>
    %82 = vector.extract_strided_slice %79 {offsets = [0, 64], sizes = [16, 32], strides = [1, 1]} : vector<16x96xf32> to vector<16x32xf32>
    %83 = vector.extract_strided_slice %73 {offsets = [0, 96], sizes = [16, 32], strides = [1, 1]} : vector<16x128xf32> to vector<16x32xf32>
    %84 = math.tanh %83 : vector<16x32xf32>
    %85 = arith.mulf %81, %68 : vector<16x32xf32>
    %86 = arith.mulf %80, %84 : vector<16x32xf32>
    %87 = arith.addf %85, %86 : vector<16x32xf32>
    %88 = math.tanh %87 : vector<16x32xf32>
    %89 = arith.mulf %82, %88 : vector<16x32xf32>
    %90 = vector.extract_strided_slice %29 {offsets = [48, 0], sizes = [16, 128], strides = [1, 1]} : vector<128x128xf32> to vector<16x128xf32>
    %cst_38 = arith.constant dense<0.000000e+00> : vector<16x128xf32>
    %91 = tpu.matmul %89, %30, %cst_38 {dimension_numbers = #tpu.dot_dimension_numbers<[1], [0], [0], [1], [0, 0, 1, 1], [], []>} : vector<16x32xf32>, vector<32x128xf32>, vector<16x128xf32> -> vector<16x128xf32>
    %92 = arith.addf %90, %91 : vector<16x128xf32>
    %93 = vector.extract_strided_slice %92 {offsets = [0, 0], sizes = [16, 96], strides = [1, 1]} : vector<16x128xf32> to vector<16x96xf32>
    %94 = arith.negf %93 : vector<16x96xf32>
    %95 = math.exp %94 : vector<16x96xf32>
    %cst_39 = arith.constant 1.000000e+00 : f32
    %96 = vector.broadcast %cst_39 : f32 to vector<16x96xf32>
    %97 = arith.addf %96, %95 : vector<16x96xf32>
    %98 = arith.divf %96, %97 : vector<16x96xf32>
    %99 = vector.extract_strided_slice %98 {offsets = [0, 0], sizes = [16, 32], strides = [1, 1]} : vector<16x96xf32> to vector<16x32xf32>
    %100 = vector.extract_strided_slice %98 {offsets = [0, 32], sizes = [16, 32], strides = [1, 1]} : vector<16x96xf32> to vector<16x32xf32>
    %101 = vector.extract_strided_slice %98 {offsets = [0, 64], sizes = [16, 32], strides = [1, 1]} : vector<16x96xf32> to vector<16x32xf32>
    %102 = vector.extract_strided_slice %92 {offsets = [0, 96], sizes = [16, 32], strides = [1, 1]} : vector<16x128xf32> to vector<16x32xf32>
    %103 = math.tanh %102 : vector<16x32xf32>
    %104 = arith.mulf %100, %87 : vector<16x32xf32>
    %105 = arith.mulf %99, %103 : vector<16x32xf32>
    %106 = arith.addf %104, %105 : vector<16x32xf32>
    %107 = math.tanh %106 : vector<16x32xf32>
    %108 = arith.mulf %101, %107 : vector<16x32xf32>
    %109 = vector.extract_strided_slice %29 {offsets = [64, 0], sizes = [16, 128], strides = [1, 1]} : vector<128x128xf32> to vector<16x128xf32>
    %cst_40 = arith.constant dense<0.000000e+00> : vector<16x128xf32>
    %110 = tpu.matmul %108, %30, %cst_40 {dimension_numbers = #tpu.dot_dimension_numbers<[1], [0], [0], [1], [0, 0, 1, 1], [], []>} : vector<16x32xf32>, vector<32x128xf32>, vector<16x128xf32> -> vector<16x128xf32>
    %111 = arith.addf %109, %110 : vector<16x128xf32>
    %112 = vector.extract_strided_slice %111 {offsets = [0, 0], sizes = [16, 96], strides = [1, 1]} : vector<16x128xf32> to vector<16x96xf32>
    %113 = arith.negf %112 : vector<16x96xf32>
    %114 = math.exp %113 : vector<16x96xf32>
    %cst_41 = arith.constant 1.000000e+00 : f32
    %115 = vector.broadcast %cst_41 : f32 to vector<16x96xf32>
    %116 = arith.addf %115, %114 : vector<16x96xf32>
    %117 = arith.divf %115, %116 : vector<16x96xf32>
    %118 = vector.extract_strided_slice %117 {offsets = [0, 0], sizes = [16, 32], strides = [1, 1]} : vector<16x96xf32> to vector<16x32xf32>
    %119 = vector.extract_strided_slice %117 {offsets = [0, 32], sizes = [16, 32], strides = [1, 1]} : vector<16x96xf32> to vector<16x32xf32>
    %120 = vector.extract_strided_slice %117 {offsets = [0, 64], sizes = [16, 32], strides = [1, 1]} : vector<16x96xf32> to vector<16x32xf32>
    %121 = vector.extract_strided_slice %111 {offsets = [0, 96], sizes = [16, 32], strides = [1, 1]} : vector<16x128xf32> to vector<16x32xf32>
    %122 = math.tanh %121 : vector<16x32xf32>
    %123 = arith.mulf %119, %106 : vector<16x32xf32>
    %124 = arith.mulf %118, %122 : vector<16x32xf32>
    %125 = arith.addf %123, %124 : vector<16x32xf32>
    %126 = math.tanh %125 : vector<16x32xf32>
    %127 = arith.mulf %120, %126 : vector<16x32xf32>
    %128 = vector.extract_strided_slice %29 {offsets = [80, 0], sizes = [16, 128], strides = [1, 1]} : vector<128x128xf32> to vector<16x128xf32>
    %cst_42 = arith.constant dense<0.000000e+00> : vector<16x128xf32>
    %129 = tpu.matmul %127, %30, %cst_42 {dimension_numbers = #tpu.dot_dimension_numbers<[1], [0], [0], [1], [0, 0, 1, 1], [], []>} : vector<16x32xf32>, vector<32x128xf32>, vector<16x128xf32> -> vector<16x128xf32>
    %130 = arith.addf %128, %129 : vector<16x128xf32>
    %131 = vector.extract_strided_slice %130 {offsets = [0, 0], sizes = [16, 96], strides = [1, 1]} : vector<16x128xf32> to vector<16x96xf32>
    %132 = arith.negf %131 : vector<16x96xf32>
    %133 = math.exp %132 : vector<16x96xf32>
    %cst_43 = arith.constant 1.000000e+00 : f32
    %134 = vector.broadcast %cst_43 : f32 to vector<16x96xf32>
    %135 = arith.addf %134, %133 : vector<16x96xf32>
    %136 = arith.divf %134, %135 : vector<16x96xf32>
    %137 = vector.extract_strided_slice %136 {offsets = [0, 0], sizes = [16, 32], strides = [1, 1]} : vector<16x96xf32> to vector<16x32xf32>
    %138 = vector.extract_strided_slice %136 {offsets = [0, 32], sizes = [16, 32], strides = [1, 1]} : vector<16x96xf32> to vector<16x32xf32>
    %139 = vector.extract_strided_slice %136 {offsets = [0, 64], sizes = [16, 32], strides = [1, 1]} : vector<16x96xf32> to vector<16x32xf32>
    %140 = vector.extract_strided_slice %130 {offsets = [0, 96], sizes = [16, 32], strides = [1, 1]} : vector<16x128xf32> to vector<16x32xf32>
    %141 = math.tanh %140 : vector<16x32xf32>
    %142 = arith.mulf %138, %125 : vector<16x32xf32>
    %143 = arith.mulf %137, %141 : vector<16x32xf32>
    %144 = arith.addf %142, %143 : vector<16x32xf32>
    %145 = math.tanh %144 : vector<16x32xf32>
    %146 = arith.mulf %139, %145 : vector<16x32xf32>
    %147 = vector.extract_strided_slice %29 {offsets = [96, 0], sizes = [16, 128], strides = [1, 1]} : vector<128x128xf32> to vector<16x128xf32>
    %cst_44 = arith.constant dense<0.000000e+00> : vector<16x128xf32>
    %148 = tpu.matmul %146, %30, %cst_44 {dimension_numbers = #tpu.dot_dimension_numbers<[1], [0], [0], [1], [0, 0, 1, 1], [], []>} : vector<16x32xf32>, vector<32x128xf32>, vector<16x128xf32> -> vector<16x128xf32>
    %149 = arith.addf %147, %148 : vector<16x128xf32>
    %150 = vector.extract_strided_slice %149 {offsets = [0, 0], sizes = [16, 96], strides = [1, 1]} : vector<16x128xf32> to vector<16x96xf32>
    %151 = arith.negf %150 : vector<16x96xf32>
    %152 = math.exp %151 : vector<16x96xf32>
    %cst_45 = arith.constant 1.000000e+00 : f32
    %153 = vector.broadcast %cst_45 : f32 to vector<16x96xf32>
    %154 = arith.addf %153, %152 : vector<16x96xf32>
    %155 = arith.divf %153, %154 : vector<16x96xf32>
    %156 = vector.extract_strided_slice %155 {offsets = [0, 0], sizes = [16, 32], strides = [1, 1]} : vector<16x96xf32> to vector<16x32xf32>
    %157 = vector.extract_strided_slice %155 {offsets = [0, 32], sizes = [16, 32], strides = [1, 1]} : vector<16x96xf32> to vector<16x32xf32>
    %158 = vector.extract_strided_slice %155 {offsets = [0, 64], sizes = [16, 32], strides = [1, 1]} : vector<16x96xf32> to vector<16x32xf32>
    %159 = vector.extract_strided_slice %149 {offsets = [0, 96], sizes = [16, 32], strides = [1, 1]} : vector<16x128xf32> to vector<16x32xf32>
    %160 = math.tanh %159 : vector<16x32xf32>
    %161 = arith.mulf %157, %144 : vector<16x32xf32>
    %162 = arith.mulf %156, %160 : vector<16x32xf32>
    %163 = arith.addf %161, %162 : vector<16x32xf32>
    %164 = math.tanh %163 : vector<16x32xf32>
    %165 = arith.mulf %158, %164 : vector<16x32xf32>
    %166 = vector.extract_strided_slice %29 {offsets = [112, 0], sizes = [16, 128], strides = [1, 1]} : vector<128x128xf32> to vector<16x128xf32>
    %cst_46 = arith.constant dense<0.000000e+00> : vector<16x128xf32>
    %167 = tpu.matmul %165, %30, %cst_46 {dimension_numbers = #tpu.dot_dimension_numbers<[1], [0], [0], [1], [0, 0, 1, 1], [], []>} : vector<16x32xf32>, vector<32x128xf32>, vector<16x128xf32> -> vector<16x128xf32>
    %168 = arith.addf %166, %167 : vector<16x128xf32>
    %169 = vector.extract_strided_slice %168 {offsets = [0, 0], sizes = [16, 96], strides = [1, 1]} : vector<16x128xf32> to vector<16x96xf32>
    %170 = arith.negf %169 : vector<16x96xf32>
    %171 = math.exp %170 : vector<16x96xf32>
    %cst_47 = arith.constant 1.000000e+00 : f32
    %172 = vector.broadcast %cst_47 : f32 to vector<16x96xf32>
    %173 = arith.addf %172, %171 : vector<16x96xf32>
    %174 = arith.divf %172, %173 : vector<16x96xf32>
    %175 = vector.extract_strided_slice %174 {offsets = [0, 0], sizes = [16, 32], strides = [1, 1]} : vector<16x96xf32> to vector<16x32xf32>
    %176 = vector.extract_strided_slice %174 {offsets = [0, 32], sizes = [16, 32], strides = [1, 1]} : vector<16x96xf32> to vector<16x32xf32>
    %177 = vector.extract_strided_slice %174 {offsets = [0, 64], sizes = [16, 32], strides = [1, 1]} : vector<16x96xf32> to vector<16x32xf32>
    %178 = vector.extract_strided_slice %168 {offsets = [0, 96], sizes = [16, 32], strides = [1, 1]} : vector<16x128xf32> to vector<16x32xf32>
    %179 = math.tanh %178 : vector<16x32xf32>
    %180 = arith.mulf %176, %163 : vector<16x32xf32>
    %181 = arith.mulf %175, %179 : vector<16x32xf32>
    %182 = arith.addf %180, %181 : vector<16x32xf32>
    %183 = math.tanh %182 : vector<16x32xf32>
    %184 = arith.mulf %177, %183 : vector<16x32xf32>
    %185 = tpu.concatenate %51, %70, %89, %108, %127, %146, %165, %184 in 0 : vector<16x32xf32>, vector<16x32xf32>, vector<16x32xf32>, vector<16x32xf32>, vector<16x32xf32>, vector<16x32xf32>, vector<16x32xf32>, vector<16x32xf32> -> vector<128x32xf32>
    %c0_48 = arith.constant 0 : index
    %c0_49 = arith.constant 0 : index
    %186 = vector.load %arg5[%c0_48, %c0_49] : memref<32x128xf32, #tpu.memory_space<vmem>>, vector<32x128xf32>
    %cst_50 = arith.constant dense<0.000000e+00> : vector<128x128xf32>
    %187 = tpu.matmul %185, %186, %cst_50 {dimension_numbers = #tpu.dot_dimension_numbers<[1], [0], [0], [1], [0, 0, 1, 1], [], []>} : vector<128x32xf32>, vector<32x128xf32>, vector<128x128xf32> -> vector<128x128xf32>
    %c0_51 = arith.constant 0 : index
    %c0_52 = arith.constant 0 : index
    %188 = vector.load %arg7[%c0_51, %c0_52] : memref<1x128xf32, #tpu.memory_space<vmem>>, vector<1x128xf32>
    %189 = vector.broadcast %188 : vector<1x128xf32> to vector<128x128xf32>
    %190 = arith.addf %187, %189 : vector<128x128xf32>
    %c0_53 = arith.constant 0 : index
    %c0_54 = arith.constant 0 : index
    %191 = vector.load %arg6[%c0_53, %c0_54] : memref<32x128xf32, #tpu.memory_space<vmem>>, vector<32x128xf32>
    %cst_55 = arith.constant 0.000000e+00 : f32
    %192 = vector.broadcast %cst_55 : f32 to vector<16x32xf32>
    %cst_56 = arith.constant 0.000000e+00 : f32
    %193 = vector.broadcast %cst_56 : f32 to vector<16x32xf32>
    %194 = vector.extract_strided_slice %190 {offsets = [0, 0], sizes = [16, 128], strides = [1, 1]} : vector<128x128xf32> to vector<16x128xf32>
    %cst_57 = arith.constant dense<0.000000e+00> : vector<16x128xf32>
    %195 = tpu.matmul %192, %191, %cst_57 {dimension_numbers = #tpu.dot_dimension_numbers<[1], [0], [0], [1], [0, 0, 1, 1], [], []>} : vector<16x32xf32>, vector<32x128xf32>, vector<16x128xf32> -> vector<16x128xf32>
    %196 = arith.addf %194, %195 : vector<16x128xf32>
    %197 = vector.extract_strided_slice %196 {offsets = [0, 0], sizes = [16, 96], strides = [1, 1]} : vector<16x128xf32> to vector<16x96xf32>
    %198 = arith.negf %197 : vector<16x96xf32>
    %199 = math.exp %198 : vector<16x96xf32>
    %cst_58 = arith.constant 1.000000e+00 : f32
    %200 = vector.broadcast %cst_58 : f32 to vector<16x96xf32>
    %201 = arith.addf %200, %199 : vector<16x96xf32>
    %202 = arith.divf %200, %201 : vector<16x96xf32>
    %203 = vector.extract_strided_slice %202 {offsets = [0, 0], sizes = [16, 32], strides = [1, 1]} : vector<16x96xf32> to vector<16x32xf32>
    %204 = vector.extract_strided_slice %202 {offsets = [0, 32], sizes = [16, 32], strides = [1, 1]} : vector<16x96xf32> to vector<16x32xf32>
    %205 = vector.extract_strided_slice %202 {offsets = [0, 64], sizes = [16, 32], strides = [1, 1]} : vector<16x96xf32> to vector<16x32xf32>
    %206 = vector.extract_strided_slice %196 {offsets = [0, 96], sizes = [16, 32], strides = [1, 1]} : vector<16x128xf32> to vector<16x32xf32>
    %207 = math.tanh %206 : vector<16x32xf32>
    %208 = arith.mulf %204, %193 : vector<16x32xf32>
    %209 = arith.mulf %203, %207 : vector<16x32xf32>
    %210 = arith.addf %208, %209 : vector<16x32xf32>
    %211 = math.tanh %210 : vector<16x32xf32>
    %212 = arith.mulf %205, %211 : vector<16x32xf32>
    %213 = vector.extract_strided_slice %190 {offsets = [16, 0], sizes = [16, 128], strides = [1, 1]} : vector<128x128xf32> to vector<16x128xf32>
    %cst_59 = arith.constant dense<0.000000e+00> : vector<16x128xf32>
    %214 = tpu.matmul %212, %191, %cst_59 {dimension_numbers = #tpu.dot_dimension_numbers<[1], [0], [0], [1], [0, 0, 1, 1], [], []>} : vector<16x32xf32>, vector<32x128xf32>, vector<16x128xf32> -> vector<16x128xf32>
    %215 = arith.addf %213, %214 : vector<16x128xf32>
    %216 = vector.extract_strided_slice %215 {offsets = [0, 0], sizes = [16, 96], strides = [1, 1]} : vector<16x128xf32> to vector<16x96xf32>
    %217 = arith.negf %216 : vector<16x96xf32>
    %218 = math.exp %217 : vector<16x96xf32>
    %cst_60 = arith.constant 1.000000e+00 : f32
    %219 = vector.broadcast %cst_60 : f32 to vector<16x96xf32>
    %220 = arith.addf %219, %218 : vector<16x96xf32>
    %221 = arith.divf %219, %220 : vector<16x96xf32>
    %222 = vector.extract_strided_slice %221 {offsets = [0, 0], sizes = [16, 32], strides = [1, 1]} : vector<16x96xf32> to vector<16x32xf32>
    %223 = vector.extract_strided_slice %221 {offsets = [0, 32], sizes = [16, 32], strides = [1, 1]} : vector<16x96xf32> to vector<16x32xf32>
    %224 = vector.extract_strided_slice %221 {offsets = [0, 64], sizes = [16, 32], strides = [1, 1]} : vector<16x96xf32> to vector<16x32xf32>
    %225 = vector.extract_strided_slice %215 {offsets = [0, 96], sizes = [16, 32], strides = [1, 1]} : vector<16x128xf32> to vector<16x32xf32>
    %226 = math.tanh %225 : vector<16x32xf32>
    %227 = arith.mulf %223, %210 : vector<16x32xf32>
    %228 = arith.mulf %222, %226 : vector<16x32xf32>
    %229 = arith.addf %227, %228 : vector<16x32xf32>
    %230 = math.tanh %229 : vector<16x32xf32>
    %231 = arith.mulf %224, %230 : vector<16x32xf32>
    %232 = vector.extract_strided_slice %190 {offsets = [32, 0], sizes = [16, 128], strides = [1, 1]} : vector<128x128xf32> to vector<16x128xf32>
    %cst_61 = arith.constant dense<0.000000e+00> : vector<16x128xf32>
    %233 = tpu.matmul %231, %191, %cst_61 {dimension_numbers = #tpu.dot_dimension_numbers<[1], [0], [0], [1], [0, 0, 1, 1], [], []>} : vector<16x32xf32>, vector<32x128xf32>, vector<16x128xf32> -> vector<16x128xf32>
    %234 = arith.addf %232, %233 : vector<16x128xf32>
    %235 = vector.extract_strided_slice %234 {offsets = [0, 0], sizes = [16, 96], strides = [1, 1]} : vector<16x128xf32> to vector<16x96xf32>
    %236 = arith.negf %235 : vector<16x96xf32>
    %237 = math.exp %236 : vector<16x96xf32>
    %cst_62 = arith.constant 1.000000e+00 : f32
    %238 = vector.broadcast %cst_62 : f32 to vector<16x96xf32>
    %239 = arith.addf %238, %237 : vector<16x96xf32>
    %240 = arith.divf %238, %239 : vector<16x96xf32>
    %241 = vector.extract_strided_slice %240 {offsets = [0, 0], sizes = [16, 32], strides = [1, 1]} : vector<16x96xf32> to vector<16x32xf32>
    %242 = vector.extract_strided_slice %240 {offsets = [0, 32], sizes = [16, 32], strides = [1, 1]} : vector<16x96xf32> to vector<16x32xf32>
    %243 = vector.extract_strided_slice %240 {offsets = [0, 64], sizes = [16, 32], strides = [1, 1]} : vector<16x96xf32> to vector<16x32xf32>
    %244 = vector.extract_strided_slice %234 {offsets = [0, 96], sizes = [16, 32], strides = [1, 1]} : vector<16x128xf32> to vector<16x32xf32>
    %245 = math.tanh %244 : vector<16x32xf32>
    %246 = arith.mulf %242, %229 : vector<16x32xf32>
    %247 = arith.mulf %241, %245 : vector<16x32xf32>
    %248 = arith.addf %246, %247 : vector<16x32xf32>
    %249 = math.tanh %248 : vector<16x32xf32>
    %250 = arith.mulf %243, %249 : vector<16x32xf32>
    %251 = vector.extract_strided_slice %190 {offsets = [48, 0], sizes = [16, 128], strides = [1, 1]} : vector<128x128xf32> to vector<16x128xf32>
    %cst_63 = arith.constant dense<0.000000e+00> : vector<16x128xf32>
    %252 = tpu.matmul %250, %191, %cst_63 {dimension_numbers = #tpu.dot_dimension_numbers<[1], [0], [0], [1], [0, 0, 1, 1], [], []>} : vector<16x32xf32>, vector<32x128xf32>, vector<16x128xf32> -> vector<16x128xf32>
    %253 = arith.addf %251, %252 : vector<16x128xf32>
    %254 = vector.extract_strided_slice %253 {offsets = [0, 0], sizes = [16, 96], strides = [1, 1]} : vector<16x128xf32> to vector<16x96xf32>
    %255 = arith.negf %254 : vector<16x96xf32>
    %256 = math.exp %255 : vector<16x96xf32>
    %cst_64 = arith.constant 1.000000e+00 : f32
    %257 = vector.broadcast %cst_64 : f32 to vector<16x96xf32>
    %258 = arith.addf %257, %256 : vector<16x96xf32>
    %259 = arith.divf %257, %258 : vector<16x96xf32>
    %260 = vector.extract_strided_slice %259 {offsets = [0, 0], sizes = [16, 32], strides = [1, 1]} : vector<16x96xf32> to vector<16x32xf32>
    %261 = vector.extract_strided_slice %259 {offsets = [0, 32], sizes = [16, 32], strides = [1, 1]} : vector<16x96xf32> to vector<16x32xf32>
    %262 = vector.extract_strided_slice %259 {offsets = [0, 64], sizes = [16, 32], strides = [1, 1]} : vector<16x96xf32> to vector<16x32xf32>
    %263 = vector.extract_strided_slice %253 {offsets = [0, 96], sizes = [16, 32], strides = [1, 1]} : vector<16x128xf32> to vector<16x32xf32>
    %264 = math.tanh %263 : vector<16x32xf32>
    %265 = arith.mulf %261, %248 : vector<16x32xf32>
    %266 = arith.mulf %260, %264 : vector<16x32xf32>
    %267 = arith.addf %265, %266 : vector<16x32xf32>
    %268 = math.tanh %267 : vector<16x32xf32>
    %269 = arith.mulf %262, %268 : vector<16x32xf32>
    %270 = vector.extract_strided_slice %190 {offsets = [64, 0], sizes = [16, 128], strides = [1, 1]} : vector<128x128xf32> to vector<16x128xf32>
    %cst_65 = arith.constant dense<0.000000e+00> : vector<16x128xf32>
    %271 = tpu.matmul %269, %191, %cst_65 {dimension_numbers = #tpu.dot_dimension_numbers<[1], [0], [0], [1], [0, 0, 1, 1], [], []>} : vector<16x32xf32>, vector<32x128xf32>, vector<16x128xf32> -> vector<16x128xf32>
    %272 = arith.addf %270, %271 : vector<16x128xf32>
    %273 = vector.extract_strided_slice %272 {offsets = [0, 0], sizes = [16, 96], strides = [1, 1]} : vector<16x128xf32> to vector<16x96xf32>
    %274 = arith.negf %273 : vector<16x96xf32>
    %275 = math.exp %274 : vector<16x96xf32>
    %cst_66 = arith.constant 1.000000e+00 : f32
    %276 = vector.broadcast %cst_66 : f32 to vector<16x96xf32>
    %277 = arith.addf %276, %275 : vector<16x96xf32>
    %278 = arith.divf %276, %277 : vector<16x96xf32>
    %279 = vector.extract_strided_slice %278 {offsets = [0, 0], sizes = [16, 32], strides = [1, 1]} : vector<16x96xf32> to vector<16x32xf32>
    %280 = vector.extract_strided_slice %278 {offsets = [0, 32], sizes = [16, 32], strides = [1, 1]} : vector<16x96xf32> to vector<16x32xf32>
    %281 = vector.extract_strided_slice %278 {offsets = [0, 64], sizes = [16, 32], strides = [1, 1]} : vector<16x96xf32> to vector<16x32xf32>
    %282 = vector.extract_strided_slice %272 {offsets = [0, 96], sizes = [16, 32], strides = [1, 1]} : vector<16x128xf32> to vector<16x32xf32>
    %283 = math.tanh %282 : vector<16x32xf32>
    %284 = arith.mulf %280, %267 : vector<16x32xf32>
    %285 = arith.mulf %279, %283 : vector<16x32xf32>
    %286 = arith.addf %284, %285 : vector<16x32xf32>
    %287 = math.tanh %286 : vector<16x32xf32>
    %288 = arith.mulf %281, %287 : vector<16x32xf32>
    %289 = vector.extract_strided_slice %190 {offsets = [80, 0], sizes = [16, 128], strides = [1, 1]} : vector<128x128xf32> to vector<16x128xf32>
    %cst_67 = arith.constant dense<0.000000e+00> : vector<16x128xf32>
    %290 = tpu.matmul %288, %191, %cst_67 {dimension_numbers = #tpu.dot_dimension_numbers<[1], [0], [0], [1], [0, 0, 1, 1], [], []>} : vector<16x32xf32>, vector<32x128xf32>, vector<16x128xf32> -> vector<16x128xf32>
    %291 = arith.addf %289, %290 : vector<16x128xf32>
    %292 = vector.extract_strided_slice %291 {offsets = [0, 0], sizes = [16, 96], strides = [1, 1]} : vector<16x128xf32> to vector<16x96xf32>
    %293 = arith.negf %292 : vector<16x96xf32>
    %294 = math.exp %293 : vector<16x96xf32>
    %cst_68 = arith.constant 1.000000e+00 : f32
    %295 = vector.broadcast %cst_68 : f32 to vector<16x96xf32>
    %296 = arith.addf %295, %294 : vector<16x96xf32>
    %297 = arith.divf %295, %296 : vector<16x96xf32>
    %298 = vector.extract_strided_slice %297 {offsets = [0, 0], sizes = [16, 32], strides = [1, 1]} : vector<16x96xf32> to vector<16x32xf32>
    %299 = vector.extract_strided_slice %297 {offsets = [0, 32], sizes = [16, 32], strides = [1, 1]} : vector<16x96xf32> to vector<16x32xf32>
    %300 = vector.extract_strided_slice %297 {offsets = [0, 64], sizes = [16, 32], strides = [1, 1]} : vector<16x96xf32> to vector<16x32xf32>
    %301 = vector.extract_strided_slice %291 {offsets = [0, 96], sizes = [16, 32], strides = [1, 1]} : vector<16x128xf32> to vector<16x32xf32>
    %302 = math.tanh %301 : vector<16x32xf32>
    %303 = arith.mulf %299, %286 : vector<16x32xf32>
    %304 = arith.mulf %298, %302 : vector<16x32xf32>
    %305 = arith.addf %303, %304 : vector<16x32xf32>
    %306 = math.tanh %305 : vector<16x32xf32>
    %307 = arith.mulf %300, %306 : vector<16x32xf32>
    %308 = vector.extract_strided_slice %190 {offsets = [96, 0], sizes = [16, 128], strides = [1, 1]} : vector<128x128xf32> to vector<16x128xf32>
    %cst_69 = arith.constant dense<0.000000e+00> : vector<16x128xf32>
    %309 = tpu.matmul %307, %191, %cst_69 {dimension_numbers = #tpu.dot_dimension_numbers<[1], [0], [0], [1], [0, 0, 1, 1], [], []>} : vector<16x32xf32>, vector<32x128xf32>, vector<16x128xf32> -> vector<16x128xf32>
    %310 = arith.addf %308, %309 : vector<16x128xf32>
    %311 = vector.extract_strided_slice %310 {offsets = [0, 0], sizes = [16, 96], strides = [1, 1]} : vector<16x128xf32> to vector<16x96xf32>
    %312 = arith.negf %311 : vector<16x96xf32>
    %313 = math.exp %312 : vector<16x96xf32>
    %cst_70 = arith.constant 1.000000e+00 : f32
    %314 = vector.broadcast %cst_70 : f32 to vector<16x96xf32>
    %315 = arith.addf %314, %313 : vector<16x96xf32>
    %316 = arith.divf %314, %315 : vector<16x96xf32>
    %317 = vector.extract_strided_slice %316 {offsets = [0, 0], sizes = [16, 32], strides = [1, 1]} : vector<16x96xf32> to vector<16x32xf32>
    %318 = vector.extract_strided_slice %316 {offsets = [0, 32], sizes = [16, 32], strides = [1, 1]} : vector<16x96xf32> to vector<16x32xf32>
    %319 = vector.extract_strided_slice %316 {offsets = [0, 64], sizes = [16, 32], strides = [1, 1]} : vector<16x96xf32> to vector<16x32xf32>
    %320 = vector.extract_strided_slice %310 {offsets = [0, 96], sizes = [16, 32], strides = [1, 1]} : vector<16x128xf32> to vector<16x32xf32>
    %321 = math.tanh %320 : vector<16x32xf32>
    %322 = arith.mulf %318, %305 : vector<16x32xf32>
    %323 = arith.mulf %317, %321 : vector<16x32xf32>
    %324 = arith.addf %322, %323 : vector<16x32xf32>
    %325 = math.tanh %324 : vector<16x32xf32>
    %326 = arith.mulf %319, %325 : vector<16x32xf32>
    %327 = vector.extract_strided_slice %190 {offsets = [112, 0], sizes = [16, 128], strides = [1, 1]} : vector<128x128xf32> to vector<16x128xf32>
    %cst_71 = arith.constant dense<0.000000e+00> : vector<16x128xf32>
    %328 = tpu.matmul %326, %191, %cst_71 {dimension_numbers = #tpu.dot_dimension_numbers<[1], [0], [0], [1], [0, 0, 1, 1], [], []>} : vector<16x32xf32>, vector<32x128xf32>, vector<16x128xf32> -> vector<16x128xf32>
    %329 = arith.addf %327, %328 : vector<16x128xf32>
    %330 = vector.extract_strided_slice %329 {offsets = [0, 0], sizes = [16, 96], strides = [1, 1]} : vector<16x128xf32> to vector<16x96xf32>
    %331 = arith.negf %330 : vector<16x96xf32>
    %332 = math.exp %331 : vector<16x96xf32>
    %cst_72 = arith.constant 1.000000e+00 : f32
    %333 = vector.broadcast %cst_72 : f32 to vector<16x96xf32>
    %334 = arith.addf %333, %332 : vector<16x96xf32>
    %335 = arith.divf %333, %334 : vector<16x96xf32>
    %336 = vector.extract_strided_slice %335 {offsets = [0, 0], sizes = [16, 32], strides = [1, 1]} : vector<16x96xf32> to vector<16x32xf32>
    %337 = vector.extract_strided_slice %335 {offsets = [0, 32], sizes = [16, 32], strides = [1, 1]} : vector<16x96xf32> to vector<16x32xf32>
    %338 = vector.extract_strided_slice %335 {offsets = [0, 64], sizes = [16, 32], strides = [1, 1]} : vector<16x96xf32> to vector<16x32xf32>
    %339 = vector.extract_strided_slice %329 {offsets = [0, 96], sizes = [16, 32], strides = [1, 1]} : vector<16x128xf32> to vector<16x32xf32>
    %340 = math.tanh %339 : vector<16x32xf32>
    %341 = arith.mulf %337, %324 : vector<16x32xf32>
    %342 = arith.mulf %336, %340 : vector<16x32xf32>
    %343 = arith.addf %341, %342 : vector<16x32xf32>
    %344 = math.tanh %343 : vector<16x32xf32>
    %345 = arith.mulf %338, %344 : vector<16x32xf32>
    %346 = vector.shape_cast %345 : vector<16x32xf32> to vector<8x2x32xf32>
    %c0_73 = arith.constant 0 : index
    %c0_74 = arith.constant 0 : index
    %c0_75 = arith.constant 0 : index
    %347 = vector.load %arg8[%c0_73, %c0_74, %c0_75] : memref<8x2x32xf32, #tpu.memory_space<vmem>>, vector<8x2x32xf32>
    tpu.vector_store %arg8[%c0_73, %c0_74, %c0_75], %346 {strides = array<i32>} : memref<8x2x32xf32, #tpu.memory_space<vmem>>, vector<8x2x32xf32>,
    return
  }
  func.func @transform_0(%arg0: i32) -> (i32, i32, i32, i32) {
    %c0_i32 = arith.constant 0 : i32
    %c0_i32_0 = arith.constant 0 : i32
    %c0_i32_1 = arith.constant 0 : i32
    %c0_i32_2 = arith.constant 0 : i32
    return %arg0, %c0_i32, %c0_i32_0, %c0_i32_1 : i32, i32, i32, i32
  }
  func.func @transform_1(%arg0: i32) -> (i32, i32) {
    %c0_i32 = arith.constant 0 : i32
    %c0_i32_0 = arith.constant 0 : i32
    %c0_i32_1 = arith.constant 0 : i32
    return %c0_i32, %c0_i32_0 : i32, i32
  }
  func.func @transform_2(%arg0: i32) -> (i32, i32) {
    %c0_i32 = arith.constant 0 : i32
    %c0_i32_0 = arith.constant 0 : i32
    %c0_i32_1 = arith.constant 0 : i32
    return %c0_i32, %c0_i32_0 : i32, i32
  }
  func.func @transform_3(%arg0: i32) -> (i32, i32) {
    %c0_i32 = arith.constant 0 : i32
    %c0_i32_0 = arith.constant 0 : i32
    %c0_i32_1 = arith.constant 0 : i32
    return %c0_i32, %c0_i32_0 : i32, i32
  }
  func.func @transform_4(%arg0: i32) -> (i32, i32) {
    %c0_i32 = arith.constant 0 : i32
    %c0_i32_0 = arith.constant 0 : i32
    %c0_i32_1 = arith.constant 0 : i32
    return %c0_i32, %c0_i32_0 : i32, i32
  }
  func.func @transform_5(%arg0: i32) -> (i32, i32) {
    %c0_i32 = arith.constant 0 : i32
    %c0_i32_0 = arith.constant 0 : i32
    %c0_i32_1 = arith.constant 0 : i32
    return %c0_i32, %c0_i32_0 : i32, i32
  }
  func.func @transform_6(%arg0: i32) -> (i32, i32) {
    %c0_i32 = arith.constant 0 : i32
    %c0_i32_0 = arith.constant 0 : i32
    %c0_i32_1 = arith.constant 0 : i32
    return %c0_i32, %c0_i32_0 : i32, i32
  }
  func.func @transform_7(%arg0: i32) -> (i32, i32, i32) {
    %c0_i32 = arith.constant 0 : i32
    %c0_i32_0 = arith.constant 0 : i32
    %c0_i32_1 = arith.constant 0 : i32
    return %arg0, %c0_i32, %c0_i32_0 : i32, i32, i32
  }
}

</mosaic_0001>

<llo_original>
// kernel: gcn_lstm_forward.2
$region0: #{gcn_lstm_forward.2}
  #allocation0 [shape = 'u32[]', space=smem, size = 0x4, offset = 0x4, fixed_abs, tag = 'smem constant byte address 0x4 - core index']
  #allocation1 [shape = 'u32[144,128]{1,0:T(1,128)}', space=vmem, size = 0x12000, scoped, tag = 'internal scratch']
  %s0 = inlined_call_operand.vmem [shape: f32[16,16], index: 0, kind: input, shape index: {}]
  %s1 = inlined_call_operand.vmem [shape: f32[16,64], index: 1, kind: input, shape index: {}]
  %s2 = inlined_call_operand.hbm [shape: f32[64,256], index: 2, kind: input, shape index: {}]
  %s3 = inlined_call_operand.vmem [shape: f32[1,256], index: 3, kind: input, shape index: {}]
  %s4 = inlined_call_operand.hbm [shape: f32[256,512], index: 4, kind: input, shape index: {}]
  %s5 = inlined_call_operand.vmem [shape: f32[1,512], index: 5, kind: input, shape index: {}]
  %s6 = inlined_call_operand.vmem [shape: f32[16,512], index: 6, kind: output, shape index: {}]
  %s7 = sld [smem:[#allocation0]]
  $region42: #{gcn_lstm_forward.2} parent=0
    _
  %s9 = ssub.s32 1, %s7
  %s10 = scalar_select 0, %s9, %s7
  $region1: #{gcn_lstm_forward.2} parent=0
    #allocation2 [shape = 'u8[65536]{0}', space=vmem, size = 0x10000, scoped, tag = 'input window, operand 2, single buffered']
    #allocation3 [shape = 's32[1]{0}', space=sflag, size = 0x4, scoped, tag = 'scoped memory for gcn_lstm_forward.2']
    #allocation4 [shape = 'u8[524288]{0}', space=vmem, size = 0x80000, scoped, tag = 'input window, operand 4, single buffered']
    #allocation5 [shape = 's32[1]{0}', space=sflag, size = 0x4, scoped, tag = 'scoped memory for gcn_lstm_forward.2']
    %11 = vsyncpa [#allocation3], 0
    %12 = vsyncpa [#allocation5], 0
    // Predicated region
    $region2: #{gcn_lstm_forward.2} parent=1 // pred_check
      _
    $region3: #{gcn_lstm_forward.2} parent=1 // pred_check_branch
      %14 = sbr.rel (0) target = $region5
    $region4: #{gcn_lstm_forward.2} parent=1 // pred_region
      _
    $region5: #{gcn_lstm_forward.2} parent=1 // pred_fallthru
      _
    // Predicated region
    $region6: #{gcn_lstm_forward.2} parent=1 // pred_check
      _
    $region7: #{gcn_lstm_forward.2} parent=1 // pred_check_branch
      %16 = sbr.rel (0) target = $region9
    $region8: #{gcn_lstm_forward.2} parent=1 // pred_region
      _
    $region9: #{gcn_lstm_forward.2} parent=1 // pred_fallthru
      _
    // Predicated region
    $region10: #{gcn_lstm_forward.2} parent=1 // pred_check
      _
    $region11: #{gcn_lstm_forward.2} parent=1 // pred_check_branch
      %18 = sbr.rel (0) target = $region13
    $region12: #{gcn_lstm_forward.2} parent=1 // pred_region
      %s20 = ssub.s32 2048, 2048
      %21 = vsyncadd [#allocation3], %s20
      %s22 = sshll.u32 [#allocation2], 4
      %s23 = int_to_ptr.vmem [resolvable:$true] %s22
      %28 = dma.hbm_to_vmem [thread:$0]  %s2, 2048, %s23, [#allocation3], 256, 256, 16
    $region13: #{gcn_lstm_forward.2} parent=1 // pred_fallthru
      _
    // Predicated region
    $region14: #{gcn_lstm_forward.2} parent=1 // pred_check
      _
    $region15: #{gcn_lstm_forward.2} parent=1 // pred_check_branch
      %30 = sbr.rel (0) target = $region17
    $region16: #{gcn_lstm_forward.2} parent=1 // pred_region
      _
    $region17: #{gcn_lstm_forward.2} parent=1 // pred_fallthru
      _
    // Predicated region
    $region18: #{gcn_lstm_forward.2} parent=1 // pred_check
      _
    $region19: #{gcn_lstm_forward.2} parent=1 // pred_check_branch
      %32 = sbr.rel (0) target = $region21
    $region20: #{gcn_lstm_forward.2} parent=1 // pred_region
      %s34 = ssub.s32 16384, 16384
      %35 = vsyncadd [#allocation5], %s34
      %s36 = sshll.u32 [#allocation4], 4
      %s37 = int_to_ptr.vmem [resolvable:$true] %s36
      %42 = dma.hbm_to_vmem [thread:$0]  %s4, 16384, %s37, [#allocation5], 512, 512, 32
    $region21: #{gcn_lstm_forward.2} parent=1 // pred_fallthru
      _
    // Predicated region
    $region22: #{gcn_lstm_forward.2} parent=1 // pred_check
      _
    $region23: #{gcn_lstm_forward.2} parent=1 // pred_check_branch
      %44 = sbr.rel (0) target = $region25
    $region24: #{gcn_lstm_forward.2} parent=1 // pred_region
      _
    $region25: #{gcn_lstm_forward.2} parent=1 // pred_fallthru
      _
    // Predicated region
    $region26: #{gcn_lstm_forward.2} parent=1 // pred_check
      _
    $region27: #{gcn_lstm_forward.2} parent=1 // pred_check_branch
      %46 = sbr.rel (0) target = $region29
    $region28: #{gcn_lstm_forward.2} parent=1 // pred_region
      %47 = dma.done [#allocation3], 2048
    $region29: #{gcn_lstm_forward.2} parent=1 // pred_fallthru
      _
    // Predicated region
    $region30: #{gcn_lstm_forward.2} parent=1 // pred_check
      _
    $region31: #{gcn_lstm_forward.2} parent=1 // pred_check_branch
      %49 = sbr.rel (0) target = $region33
    $region32: #{gcn_lstm_forward.2} parent=1 // pred_region
      %50 = dma.done [#allocation5], 16384
    $region33: #{gcn_lstm_forward.2} parent=1 // pred_fallthru
      _
    %v51 = vld [vmem:[%s0] sm:$0xff]
    %v52 = vld [vmem:[%s0 + $0x8] sm:$0xff]
    %v53 = vld [vmem:[%s1] sm:$0xff]
    %v54 = vld [vmem:[%s1 + $0x8] sm:$0xff]
    %v55 = vld [vmem:[#allocation2] sm:$0xff]
    %v56 = vld [vmem:[#allocation2 + $0x8] sm:$0xff]
    %v57 = vld [vmem:[#allocation2 + $0x10] sm:$0xff]
    %v58 = vld [vmem:[#allocation2 + $0x18] sm:$0xff]
    %v59 = vld [vmem:[#allocation2 + $0x20] sm:$0xff]
    %v60 = vld [vmem:[#allocation2 + $0x28] sm:$0xff]
    %v61 = vld [vmem:[#allocation2 + $0x30] sm:$0xff]
    %v62 = vld [vmem:[#allocation2 + $0x38] sm:$0xff]
    %v63 = vld [vmem:[#allocation2 + $0x40] sm:$0xff]
    %v64 = vld [vmem:[#allocation2 + $0x48] sm:$0xff]
    %v65 = vld [vmem:[#allocation2 + $0x50] sm:$0xff]
    %v66 = vld [vmem:[#allocation2 + $0x58] sm:$0xff]
    %v67 = vld [vmem:[#allocation2 + $0x60] sm:$0xff]
    %v68 = vld [vmem:[#allocation2 + $0x68] sm:$0xff]
    %v69 = vld [vmem:[#allocation2 + $0x70] sm:$0xff]
    %v70 = vld [vmem:[#allocation2 + $0x78] sm:$0xff]
    %v71 = vld [vmem:[%s3] sm:$0x3]
    %vm72 = vcmask 130048
    %v74 = vsel %vm72, %v51, 0
    %v77 = vsel %vm72, %v52, 0
    %79 = vmatprep.subr.mxu0 0.0
    %80 = vmatpush1.msra.mxu0 0.0
    %81 = vmatprep.subr.mxu0 0.0
    %82 = vmatpush1.msra.mxu0 0.0
    %83 = vmatprep.subr.mxu0 0.0
    %84 = vmatpush1.msra.mxu0 0.0
    %85 = vmatprep.subr.mxu0 0.0
    %86 = vmatpush1.msra.mxu0 0.0
    %87 = vmatprep.subr.mxu0 0.0
    %88 = vmatpush1.msra.mxu0 0.0
    %89 = vmatprep.subr.mxu0 0.0
    %90 = vmatpush1.msra.mxu0 0.0
    %91 = vmatprep.subr.mxu0 0.0
    %92 = vmatpush1.msra.mxu0 0.0
    %93 = vmatprep.subr.mxu0 0.0
    %94 = vmatpush1.msra.mxu0 0.0
    %95 = vmatprep.subr.mxu0 0.0
    %96 = vmatpush1.msra.mxu0 0.0
    %97 = vmatprep.subr.mxu0 0.0
    %98 = vmatpush1.msra.mxu0 0.0
    %99 = vmatprep.subr.mxu0 0.0
    %100 = vmatpush1.msra.mxu0 0.0
    %101 = vmatprep.subr.mxu0 0.0
    %102 = vmatpush1.msra.mxu0 0.0
    %103 = vmatprep.subr.mxu0 0.0
    %104 = vmatpush1.msra.mxu0 0.0
    %105 = vmatprep.subr.mxu0 0.0
    %106 = vmatpush1.msra.mxu0 0.0
    %107 = vmatprep.subr.mxu0 0.0
    %108 = vmatpush1.msra.mxu0 %v54
    %109 = vmatprep.subr.mxu0 0.0
    %110 = vmatpush1.msra.mxu0 %v53
    %111 = vmatprep.subr.mxu0 0.0
    %112 = vmatpush2.msra.mxu0 0.0
    %113 = vmatprep.subr.mxu0 0.0
    %114 = vmatpush2.msra.mxu0 0.0
    %115 = vmatprep.subr.mxu0 0.0
    %116 = vmatpush2.msra.mxu0 0.0
    %117 = vmatprep.subr.mxu0 0.0
    %118 = vmatpush2.msra.mxu0 0.0
    %119 = vmatprep.subr.mxu0 0.0
    %120 = vmatpush2.msra.mxu0 0.0
    %121 = vmatprep.subr.mxu0 0.0
    %122 = vmatpush2.msra.mxu0 0.0
    %123 = vmatprep.subr.mxu0 0.0
    %124 = vmatpush2.msra.mxu0 0.0
    %125 = vmatprep.subr.mxu0 0.0
    %126 = vmatpush2.msra.mxu0 0.0
    %127 = vmatprep.subr.mxu0 0.0
    %128 = vmatpush2.msra.mxu0 0.0
    %129 = vmatprep.subr.mxu0 0.0
    %130 = vmatpush2.msra.mxu0 0.0
    %131 = vmatprep.subr.mxu0 0.0
    %132 = vmatpush2.msra.mxu0 0.0
    %133 = vmatprep.subr.mxu0 0.0
    %134 = vmatpush2.msra.mxu0 0.0
    %135 = vmatprep.subr.mxu0 0.0
    %136 = vmatpush2.msra.mxu0 0.0
    %137 = vmatprep.subr.mxu0 0.0
    %138 = vmatpush2.msra.mxu0 0.0
    %139 = vmatprep.subr.mxu0 0.0
    %140 = vmatpush2.msra.mxu0 0.0
    %141 = vmatprep.subr.mxu0 0.0
    %142 = vmatpush2.msra.mxu0 0.0
    %143 = vmatprep.mubr.f32.mxu0 0.0
    %144 = vmatmul.mubr.f32.gmra.mxu0 %v74
    %v145 = vpop.f32.mrf.mxu0
    %v146 = vadd.f32 0.0, %v145
    %v147 = vpop.f32.mrf.mxu0
    %148 = vmatprep.mubr.f32.mxu0 0.0
    %149 = vmatmul.mubr.f32.gmra.mxu0 %v77
    %v150 = vpop.f32.mrf.mxu0
    %v151 = vadd.f32 0.0, %v150
    %v152 = vpop.f32.mrf.mxu0
    %153 = vdwg.mxu0
    %v155 = vlaneseq
    %v156 = vshrl.u32 %v155, 7
    %v157 = vsub.s32 0, %v156
    %v158 = vrot.slane %v71, %v157
    %v159 = vlaneseq
    %v160 = vshrl.u32 %v159, 7
    %v161 = vsub.s32 1, %v160
    %v162 = vrot.slane %v71, %v161
    %vm165 = vcmask 523264
    %v167 = vsel %vm165, %v146, 0
    %v170 = vsel %vm165, %v151, 0
    %172 = vmatprep.subr.mxu0 0.0
    %173 = vmatpush1.msra.mxu0 0.0
    %174 = vmatprep.subr.mxu0 0.0
    %175 = vmatpush1.msra.mxu0 0.0
    %176 = vmatprep.subr.mxu0 0.0
    %177 = vmatpush1.msra.mxu0 0.0
    %178 = vmatprep.subr.mxu0 0.0
    %179 = vmatpush1.msra.mxu0 0.0
    %180 = vmatprep.subr.mxu0 0.0
    %181 = vmatpush1.msra.mxu0 0.0
    %182 = vmatprep.subr.mxu0 0.0
    %183 = vmatpush1.msra.mxu0 0.0
    %184 = vmatprep.subr.mxu0 0.0
    %185 = vmatpush1.msra.mxu0 0.0
    %186 = vmatprep.subr.mxu0 0.0
    %187 = vmatpush1.msra.mxu0 0.0
    %188 = vmatprep.subr.mxu0 %v70
    %189 = vmatpush1.msra.mxu0 %v69
    %190 = vmatprep.subr.mxu0 %v68
    %191 = vmatpush1.msra.mxu0 %v67
    %192 = vmatprep.subr.mxu0 %v66
    %193 = vmatpush1.msra.mxu0 %v65
    %194 = vmatprep.subr.mxu0 %v64
    %195 = vmatpush1.msra.mxu0 %v63
    %196 = vmatprep.subr.mxu0 %v62
    %197 = vmatpush1.msra.mxu0 %v61
    %198 = vmatprep.subr.mxu0 %v60
    %199 = vmatpush1.msra.mxu0 %v59
    %200 = vmatprep.subr.mxu0 %v58
    %201 = vmatpush1.msra.mxu0 %v57
    %202 = vmatprep.subr.mxu0 %v56
    %203 = vmatpush1.msra.mxu0 %v55
    %204 = vmatprep.subr.mxu0 0.0
    %205 = vmatpush2.msra.mxu0 0.0
    %206 = vmatprep.subr.mxu0 0.0
    %207 = vmatpush2.msra.mxu0 0.0
    %208 = vmatprep.subr.mxu0 0.0
    %209 = vmatpush2.msra.mxu0 0.0
    %210 = vmatprep.subr.mxu0 0.0
    %211 = vmatpush2.msra.mxu0 0.0
    %212 = vmatprep.subr.mxu0 0.0
    %213 = vmatpush2.msra.mxu0 0.0
    %214 = vmatprep.subr.mxu0 0.0
    %215 = vmatpush2.msra.mxu0 0.0
    %216 = vmatprep.subr.mxu0 0.0
    %217 = vmatpush2.msra.mxu0 0.0
    %218 = vmatprep.subr.mxu0 0.0
    %219 = vmatpush2.msra.mxu0 0.0
    %220 = vmatprep.subr.mxu0 0.0
    %221 = vmatpush2.msra.mxu0 0.0
    %222 = vmatprep.subr.mxu0 0.0
    %223 = vmatpush2.msra.mxu0 0.0
    %224 = vmatprep.subr.mxu0 0.0
    %225 = vmatpush2.msra.mxu0 0.0
    %226 = vmatprep.subr.mxu0 0.0
    %227 = vmatpush2.msra.mxu0 0.0
    %228 = vmatprep.subr.mxu0 0.0
    %229 = vmatpush2.msra.mxu0 0.0
    %230 = vmatprep.subr.mxu0 0.0
    %231 = vmatpush2.msra.mxu0 0.0
    %232 = vmatprep.subr.mxu0 0.0
    %233 = vmatpush2.msra.mxu0 0.0
    %234 = vmatprep.subr.mxu0 0.0
    %235 = vmatpush2.msra.mxu0 0.0
    %236 = vmatprep.mubr.f32.mxu0 0.0
    %237 = vmatmul.mubr.f32.gmra.mxu0 %v167
    %v238 = vpop.f32.mrf.mxu0
    %v239 = vadd.f32 %v158, %v238
    %v240 = vpop.f32.mrf.mxu0
    %v241 = vadd.f32 %v162, %v240
    %242 = vmatprep.mubr.f32.mxu0 0.0
    %243 = vmatmul.mubr.f32.gmra.mxu0 %v170
    %v244 = vpop.f32.mrf.mxu0
    %v245 = vadd.f32 %v158, %v244
    %v246 = vpop.f32.mrf.mxu0
    %v247 = vadd.f32 %v162, %v246
    %248 = vdwg.mxu0
    %v249 = vmax.f32 %v239, 0.0
    %v250 = vmax.f32 %v241, 0.0
    %v251 = vmax.f32 %v245, 0.0
    %v252 = vmax.f32 %v247, 0.0
    %v253 = vld [vmem:[#allocation4] sm:$0xff]
    %v254 = vld [vmem:[#allocation4 + $0x8] sm:$0xff]
    %v255 = vld [vmem:[#allocation4 + $0x10] sm:$0xff]
    %v256 = vld [vmem:[#allocation4 + $0x18] sm:$0xff]
    %v257 = vld [vmem:[#allocation4 + $0x20] sm:$0xff]
    %v258 = vld [vmem:[#allocation4 + $0x28] sm:$0xff]
    %v259 = vld [vmem:[#allocation4 + $0x30] sm:$0xff]
    %v260 = vld [vmem:[#allocation4 + $0x38] sm:$0xff]
    %v261 = vld [vmem:[#allocation4 + $0x40] sm:$0xff]
    %v262 = vld [vmem:[#allocation4 + $0x48] sm:$0xff]
    %v263 = vld [vmem:[#allocation4 + $0x50] sm:$0xff]
    %v264 = vld [vmem:[#allocation4 + $0x58] sm:$0xff]
    %v265 = vld [vmem:[#allocation4 + $0x60] sm:$0xff]
    %v266 = vld [vmem:[#allocation4 + $0x68] sm:$0xff]
    %v267 = vld [vmem:[#allocation4 + $0x70] sm:$0xff]
    %v268 = vld [vmem:[#allocation4 + $0x78] sm:$0xff]
    %v269 = vld [vmem:[#allocation4 + $0x80] sm:$0xff]
    %v270 = vld [vmem:[#allocation4 + $0x88] sm:$0xff]
    %v271 = vld [vmem:[#allocation4 + $0x90] sm:$0xff]
    %v272 = vld [vmem:[#allocation4 + $0x98] sm:$0xff]
    %v273 = vld [vmem:[#allocation4 + $0xa0] sm:$0xff]
    %v274 = vld [vmem:[#allocation4 + $0xa8] sm:$0xff]
    %v275 = vld [vmem:[#allocation4 + $0xb0] sm:$0xff]
    %v276 = vld [vmem:[#allocation4 + $0xb8] sm:$0xff]
    %v277 = vld [vmem:[#allocation4 + $0xc0] sm:$0xff]
    %v278 = vld [vmem:[#allocation4 + $0xc8] sm:$0xff]
    %v279 = vld [vmem:[#allocation4 + $0xd0] sm:$0xff]
    %v280 = vld [vmem:[#allocation4 + $0xd8] sm:$0xff]
    %v281 = vld [vmem:[#allocation4 + $0xe0] sm:$0xff]
    %v282 = vld [vmem:[#allocation4 + $0xe8] sm:$0xff]
    %v283 = vld [vmem:[#allocation4 + $0xf0] sm:$0xff]
    %v284 = vld [vmem:[#allocation4 + $0xf8] sm:$0xff]
    %v285 = vld [vmem:[#allocation4 + $0x100] sm:$0xff]
    %v286 = vld [vmem:[#allocation4 + $0x108] sm:$0xff]
    %v287 = vld [vmem:[#allocation4 + $0x110] sm:$0xff]
    %v288 = vld [vmem:[#allocation4 + $0x118] sm:$0xff]
    %v289 = vld [vmem:[#allocation4 + $0x120] sm:$0xff]
    %v290 = vld [vmem:[#allocation4 + $0x128] sm:$0xff]
    %v291 = vld [vmem:[#allocation4 + $0x130] sm:$0xff]
    %v292 = vld [vmem:[#allocation4 + $0x138] sm:$0xff]
    %v293 = vld [vmem:[#allocation4 + $0x140] sm:$0xff]
    %v294 = vld [vmem:[#allocation4 + $0x148] sm:$0xff]
    %v295 = vld [vmem:[#allocation4 + $0x150] sm:$0xff]
    %v296 = vld [vmem:[#allocation4 + $0x158] sm:$0xff]
    %v297 = vld [vmem:[#allocation4 + $0x160] sm:$0xff]
    %v298 = vld [vmem:[#allocation4 + $0x168] sm:$0xff]
    %v299 = vld [vmem:[#allocation4 + $0x170] sm:$0xff]
    %v300 = vld [vmem:[#allocation4 + $0x178] sm:$0xff]
    %v301 = vld [vmem:[#allocation4 + $0x180] sm:$0xff]
    %v302 = vld [vmem:[#allocation4 + $0x188] sm:$0xff]
    %v303 = vld [vmem:[#allocation4 + $0x190] sm:$0xff]
    %v304 = vld [vmem:[#allocation4 + $0x198] sm:$0xff]
    %v305 = vld [vmem:[#allocation4 + $0x1a0] sm:$0xff]
    %v306 = vld [vmem:[#allocation4 + $0x1a8] sm:$0xff]
    %v307 = vld [vmem:[#allocation4 + $0x1b0] sm:$0xff]
    %v308 = vld [vmem:[#allocation4 + $0x1b8] sm:$0xff]
    %v309 = vld [vmem:[#allocation4 + $0x1c0] sm:$0xff]
    %v310 = vld [vmem:[#allocation4 + $0x1c8] sm:$0xff]
    %v311 = vld [vmem:[#allocation4 + $0x1d0] sm:$0xff]
    %v312 = vld [vmem:[#allocation4 + $0x1d8] sm:$0xff]
    %v313 = vld [vmem:[#allocation4 + $0x1e0] sm:$0xff]
    %v314 = vld [vmem:[#allocation4 + $0x1e8] sm:$0xff]
    %v315 = vld [vmem:[#allocation4 + $0x1f0] sm:$0xff]
    %v316 = vld [vmem:[#allocation4 + $0x1f8] sm:$0xff]
    %v317 = vld [vmem:[#allocation4 + $0x200] sm:$0xff]
    %v318 = vld [vmem:[#allocation4 + $0x208] sm:$0xff]
    %v319 = vld [vmem:[#allocation4 + $0x210] sm:$0xff]
    %v320 = vld [vmem:[#allocation4 + $0x218] sm:$0xff]
    %v321 = vld [vmem:[#allocation4 + $0x220] sm:$0xff]
    %v322 = vld [vmem:[#allocation4 + $0x228] sm:$0xff]
    %v323 = vld [vmem:[#allocation4 + $0x230] sm:$0xff]
    %v324 = vld [vmem:[#allocation4 + $0x238] sm:$0xff]
    %v325 = vld [vmem:[#allocation4 + $0x240] sm:$0xff]
    %v326 = vld [vmem:[#allocation4 + $0x248] sm:$0xff]
    %v327 = vld [vmem:[#allocation4 + $0x250] sm:$0xff]
    %v328 = vld [vmem:[#allocation4 + $0x258] sm:$0xff]
    %v329 = vld [vmem:[#allocation4 + $0x260] sm:$0xff]
    %v330 = vld [vmem:[#allocation4 + $0x268] sm:$0xff]
    %v331 = vld [vmem:[#allocation4 + $0x270] sm:$0xff]
    %v332 = vld [vmem:[#allocation4 + $0x278] sm:$0xff]
    %v333 = vld [vmem:[#allocation4 + $0x280] sm:$0xff]
    %v334 = vld [vmem:[#allocation4 + $0x288] sm:$0xff]
    %v335 = vld [vmem:[#allocation4 + $0x290] sm:$0xff]
    %v336 = vld [vmem:[#allocation4 + $0x298] sm:$0xff]
    %v337 = vld [vmem:[#allocation4 + $0x2a0] sm:$0xff]
    %v338 = vld [vmem:[#allocation4 + $0x2a8] sm:$0xff]
    %v339 = vld [vmem:[#allocation4 + $0x2b0] sm:$0xff]
    %v340 = vld [vmem:[#allocation4 + $0x2b8] sm:$0xff]
    %v341 = vld [vmem:[#allocation4 + $0x2c0] sm:$0xff]
    %v342 = vld [vmem:[#allocation4 + $0x2c8] sm:$0xff]
    %v343 = vld [vmem:[#allocation4 + $0x2d0] sm:$0xff]
    %v344 = vld [vmem:[#allocation4 + $0x2d8] sm:$0xff]
    %v345 = vld [vmem:[#allocation4 + $0x2e0] sm:$0xff]
    %v346 = vld [vmem:[#allocation4 + $0x2e8] sm:$0xff]
    %v347 = vld [vmem:[#allocation4 + $0x2f0] sm:$0xff]
    %v348 = vld [vmem:[#allocation4 + $0x2f8] sm:$0xff]
    %v349 = vld [vmem:[#allocation4 + $0x300] sm:$0xff]
    %v350 = vld [vmem:[#allocation4 + $0x308] sm:$0xff]
    %v351 = vld [vmem:[#allocation4 + $0x310] sm:$0xff]
    %v352 = vld [vmem:[#allocation4 + $0x318] sm:$0xff]
    %v353 = vld [vmem:[#allocation4 + $0x320] sm:$0xff]
    %v354 = vld [vmem:[#allocation4 + $0x328] sm:$0xff]
    %v355 = vld [vmem:[#allocation4 + $0x330] sm:$0xff]
    %v356 = vld [vmem:[#allocation4 + $0x338] sm:$0xff]
    %v357 = vld [vmem:[#allocation4 + $0x340] sm:$0xff]
    %v358 = vld [vmem:[#allocation4 + $0x348] sm:$0xff]
    %v359 = vld [vmem:[#allocation4 + $0x350] sm:$0xff]
    %v360 = vld [vmem:[#allocation4 + $0x358] sm:$0xff]
    %v361 = vld [vmem:[#allocation4 + $0x360] sm:$0xff]
    %v362 = vld [vmem:[#allocation4 + $0x368] sm:$0xff]
    %v363 = vld [vmem:[#allocation4 + $0x370] sm:$0xff]
    %v364 = vld [vmem:[#allocation4 + $0x378] sm:$0xff]
    %v365 = vld [vmem:[#allocation4 + $0x380] sm:$0xff]
    %v366 = vld [vmem:[#allocation4 + $0x388] sm:$0xff]
    %v367 = vld [vmem:[#allocation4 + $0x390] sm:$0xff]
    %v368 = vld [vmem:[#allocation4 + $0x398] sm:$0xff]
    %v369 = vld [vmem:[#allocation4 + $0x3a0] sm:$0xff]
    %v370 = vld [vmem:[#allocation4 + $0x3a8] sm:$0xff]
    %v371 = vld [vmem:[#allocation4 + $0x3b0] sm:$0xff]
    %v372 = vld [vmem:[#allocation4 + $0x3b8] sm:$0xff]
    %v373 = vld [vmem:[#allocation4 + $0x3c0] sm:$0xff]
    %v374 = vld [vmem:[#allocation4 + $0x3c8] sm:$0xff]
    %v375 = vld [vmem:[#allocation4 + $0x3d0] sm:$0xff]
    %v376 = vld [vmem:[#allocation4 + $0x3d8] sm:$0xff]
    %v377 = vld [vmem:[#allocation4 + $0x3e0] sm:$0xff]
    %v378 = vld [vmem:[#allocation4 + $0x3e8] sm:$0xff]
    %v379 = vld [vmem:[#allocation4 + $0x3f0] sm:$0xff]
    %v380 = vld [vmem:[#allocation4 + $0x3f8] sm:$0xff]
    %v381 = vld [vmem:[%s5] sm:$0xf]
    %382 = vmatprep.subr.mxu0 0.0
    %383 = vmatpush1.msra.mxu0 0.0
    %384 = vmatprep.subr.mxu0 0.0
    %385 = vmatpush1.msra.mxu0 0.0
    %386 = vmatprep.subr.mxu0 0.0
    %387 = vmatpush1.msra.mxu0 0.0
    %388 = vmatprep.subr.mxu0 0.0
    %389 = vmatpush1.msra.mxu0 0.0
    %390 = vmatprep.subr.mxu0 0.0
    %391 = vmatpush1.msra.mxu0 0.0
    %392 = vmatprep.subr.mxu0 0.0
    %393 = vmatpush1.msra.mxu0 0.0
    %394 = vmatprep.subr.mxu0 0.0
    %395 = vmatpush1.msra.mxu0 0.0
    %396 = vmatprep.subr.mxu0 0.0
    %397 = vmatpush1.msra.mxu0 0.0
    %398 = vmatprep.subr.mxu0 0.0
    %399 = vmatpush1.msra.mxu0 0.0
    %400 = vmatprep.subr.mxu0 0.0
    %401 = vmatpush1.msra.mxu0 0.0
    %402 = vmatprep.subr.mxu0 0.0
    %403 = vmatpush1.msra.mxu0 0.0
    %404 = vmatprep.subr.mxu0 0.0
    %405 = vmatpush1.msra.mxu0 0.0
    %406 = vmatprep.subr.mxu0 0.0
    %407 = vmatpush1.msra.mxu0 0.0
    %408 = vmatprep.subr.mxu0 0.0
    %409 = vmatpush1.msra.mxu0 0.0
    %410 = vmatprep.subr.mxu0 %v252
    %411 = vmatpush1.msra.mxu0 %v251
    %412 = vmatprep.subr.mxu0 %v250
    %413 = vmatpush1.msra.mxu0 %v249
    %414 = vmatprep.subr.mxu0 0.0
    %415 = vmatpush2.msra.mxu0 0.0
    %416 = vmatprep.subr.mxu0 0.0
    %417 = vmatpush2.msra.mxu0 0.0
    %418 = vmatprep.subr.mxu0 0.0
    %419 = vmatpush2.msra.mxu0 0.0
    %420 = vmatprep.subr.mxu0 0.0
    %421 = vmatpush2.msra.mxu0 0.0
    %422 = vmatprep.subr.mxu0 0.0
    %423 = vmatpush2.msra.mxu0 0.0
    %424 = vmatprep.subr.mxu0 0.0
    %425 = vmatpush2.msra.mxu0 0.0
    %426 = vmatprep.subr.mxu0 0.0
    %427 = vmatpush2.msra.mxu0 0.0
    %428 = vmatprep.subr.mxu0 0.0
    %429 = vmatpush2.msra.mxu0 0.0
    %430 = vmatprep.subr.mxu0 0.0
    %431 = vmatpush2.msra.mxu0 0.0
    %432 = vmatprep.subr.mxu0 0.0
    %433 = vmatpush2.msra.mxu0 0.0
    %434 = vmatprep.subr.mxu0 0.0
    %435 = vmatpush2.msra.mxu0 0.0
    %436 = vmatprep.subr.mxu0 0.0
    %437 = vmatpush2.msra.mxu0 0.0
    %438 = vmatprep.subr.mxu0 0.0
    %439 = vmatpush2.msra.mxu0 0.0
    %440 = vmatprep.subr.mxu0 0.0
    %441 = vmatpush2.msra.mxu0 0.0
    %442 = vmatprep.subr.mxu0 0.0
    %443 = vmatpush2.msra.mxu0 0.0
    %444 = vmatprep.subr.mxu0 0.0
    %445 = vmatpush2.msra.mxu0 0.0
    %446 = vmatprep.mubr.f32.mxu0 0.0
    %447 = vmatmul.mubr.f32.gmra.mxu0 %v74
    %v448 = vpop.f32.mrf.mxu0
    %v449 = vadd.f32 0.0, %v448
    %v450 = vpop.f32.mrf.mxu0
    %v451 = vadd.f32 0.0, %v450
    %452 = vmatprep.mubr.f32.mxu0 0.0
    %453 = vmatmul.mubr.f32.gmra.mxu0 %v77
    %v454 = vpop.f32.mrf.mxu0
    %v455 = vadd.f32 0.0, %v454
    %v456 = vpop.f32.mrf.mxu0
    %v457 = vadd.f32 0.0, %v456
    %458 = vdwg.mxu0
    %v460 = vlaneseq
    %v461 = vshrl.u32 %v460, 7
    %v462 = vsub.s32 0, %v461
    %v463 = vrot.slane %v381, %v462
    %v464 = vlaneseq
    %v465 = vshrl.u32 %v464, 7
    %v466 = vsub.s32 1, %v465
    %v467 = vrot.slane %v381, %v466
    %v468 = vlaneseq
    %v469 = vshrl.u32 %v468, 7
    %v470 = vsub.s32 2, %v469
    %v471 = vrot.slane %v381, %v470
    %v472 = vlaneseq
    %v473 = vshrl.u32 %v472, 7
    %v474 = vsub.s32 3, %v473
    %v475 = vrot.slane %v381, %v474
    %480 = vmatprep.subr.mxu0 %v314
    %481 = vmatpush1.msra.mxu0 %v313
    %482 = vmatprep.subr.mxu0 %v310
    %483 = vmatpush1.msra.mxu0 %v309
    %484 = vmatprep.subr.mxu0 %v306
    %485 = vmatpush1.msra.mxu0 %v305
    %486 = vmatprep.subr.mxu0 %v302
    %487 = vmatpush1.msra.mxu0 %v301
    %488 = vmatprep.subr.mxu0 %v298
    %489 = vmatpush1.msra.mxu0 %v297
    %490 = vmatprep.subr.mxu0 %v294
    %491 = vmatpush1.msra.mxu0 %v293
    %492 = vmatprep.subr.mxu0 %v290
    %493 = vmatpush1.msra.mxu0 %v289
    %494 = vmatprep.subr.mxu0 %v286
    %495 = vmatpush1.msra.mxu0 %v285
    %496 = vmatprep.subr.mxu0 %v282
    %497 = vmatpush1.msra.mxu0 %v281
    %498 = vmatprep.subr.mxu0 %v278
    %499 = vmatpush1.msra.mxu0 %v277
    %500 = vmatprep.subr.mxu0 %v274
    %501 = vmatpush1.msra.mxu0 %v273
    %502 = vmatprep.subr.mxu0 %v270
    %503 = vmatpush1.msra.mxu0 %v269
    %504 = vmatprep.subr.mxu0 %v266
    %505 = vmatpush1.msra.mxu0 %v265
    %506 = vmatprep.subr.mxu0 %v262
    %507 = vmatpush1.msra.mxu0 %v261
    %508 = vmatprep.subr.mxu0 %v258
    %509 = vmatpush1.msra.mxu0 %v257
    %510 = vmatprep.subr.mxu0 %v254
    %511 = vmatpush1.msra.mxu0 %v253
    %512 = vmatprep.subr.mxu0 %v378
    %513 = vmatpush2.msra.mxu0 %v377
    %514 = vmatprep.subr.mxu0 %v374
    %515 = vmatpush2.msra.mxu0 %v373
    %516 = vmatprep.subr.mxu0 %v370
    %517 = vmatpush2.msra.mxu0 %v369
    %518 = vmatprep.subr.mxu0 %v366
    %519 = vmatpush2.msra.mxu0 %v365
    %520 = vmatprep.subr.mxu0 %v362
    %521 = vmatpush2.msra.mxu0 %v361
    %522 = vmatprep.subr.mxu0 %v358
    %523 = vmatpush2.msra.mxu0 %v357
    %524 = vmatprep.subr.mxu0 %v354
    %525 = vmatpush2.msra.mxu0 %v353
    %526 = vmatprep.subr.mxu0 %v350
    %527 = vmatpush2.msra.mxu0 %v349
    %528 = vmatprep.subr.mxu0 %v346
    %529 = vmatpush2.msra.mxu0 %v345
    %530 = vmatprep.subr.mxu0 %v342
    %531 = vmatpush2.msra.mxu0 %v341
    %532 = vmatprep.subr.mxu0 %v338
    %533 = vmatpush2.msra.mxu0 %v337
    %534 = vmatprep.subr.mxu0 %v334
    %535 = vmatpush2.msra.mxu0 %v333
    %536 = vmatprep.subr.mxu0 %v330
    %537 = vmatpush2.msra.mxu0 %v329
    %538 = vmatprep.subr.mxu0 %v326
    %539 = vmatpush2.msra.mxu0 %v325
    %540 = vmatprep.subr.mxu0 %v322
    %541 = vmatpush2.msra.mxu0 %v321
    %542 = vmatprep.subr.mxu0 %v318
    %543 = vmatpush2.msra.mxu0 %v317
    %544 = vmatprep.mubr.f32.mxu0 %v451
    %545 = vmatmul.mubr.f32.gmra.mxu0 %v449
    %v546 = vpop.f32.mrf.mxu0
    %v547 = vadd.f32 %v463, %v546
    %v548 = vpop.f32.mrf.mxu0
    %v549 = vadd.f32 %v467, %v548
    %550 = vmatprep.mubr.f32.mxu0 %v457
    %551 = vmatmul.mubr.f32.gmra.mxu0 %v455
    %v552 = vpop.f32.mrf.mxu0
    %v553 = vadd.f32 %v463, %v552
    %v554 = vpop.f32.mrf.mxu0
    %v555 = vadd.f32 %v467, %v554
    %556 = vdwg.mxu0
    %557 = vmatprep.subr.mxu0 %v316
    %558 = vmatpush1.msra.mxu0 %v315
    %559 = vmatprep.subr.mxu0 %v312
    %560 = vmatpush1.msra.mxu0 %v311
    %561 = vmatprep.subr.mxu0 %v308
    %562 = vmatpush1.msra.mxu0 %v307
    %563 = vmatprep.subr.mxu0 %v304
    %564 = vmatpush1.msra.mxu0 %v303
    %565 = vmatprep.subr.mxu0 %v300
    %566 = vmatpush1.msra.mxu0 %v299
    %567 = vmatprep.subr.mxu0 %v296
    %568 = vmatpush1.msra.mxu0 %v295
    %569 = vmatprep.subr.mxu0 %v292
    %570 = vmatpush1.msra.mxu0 %v291
    %571 = vmatprep.subr.mxu0 %v288
    %572 = vmatpush1.msra.mxu0 %v287
    %573 = vmatprep.subr.mxu0 %v284
    %574 = vmatpush1.msra.mxu0 %v283
    %575 = vmatprep.subr.mxu0 %v280
    %576 = vmatpush1.msra.mxu0 %v279
    %577 = vmatprep.subr.mxu0 %v276
    %578 = vmatpush1.msra.mxu0 %v275
    %579 = vmatprep.subr.mxu0 %v272
    %580 = vmatpush1.msra.mxu0 %v271
    %581 = vmatprep.subr.mxu0 %v268
    %582 = vmatpush1.msra.mxu0 %v267
    %583 = vmatprep.subr.mxu0 %v264
    %584 = vmatpush1.msra.mxu0 %v263
    %585 = vmatprep.subr.mxu0 %v260
    %586 = vmatpush1.msra.mxu0 %v259
    %587 = vmatprep.subr.mxu0 %v256
    %588 = vmatpush1.msra.mxu0 %v255
    %589 = vmatprep.subr.mxu0 %v380
    %590 = vmatpush2.msra.mxu0 %v379
    %591 = vmatprep.subr.mxu0 %v376
    %592 = vmatpush2.msra.mxu0 %v375
    %593 = vmatprep.subr.mxu0 %v372
    %594 = vmatpush2.msra.mxu0 %v371
    %595 = vmatprep.subr.mxu0 %v368
    %596 = vmatpush2.msra.mxu0 %v367
    %597 = vmatprep.subr.mxu0 %v364
    %598 = vmatpush2.msra.mxu0 %v363
    %599 = vmatprep.subr.mxu0 %v360
    %600 = vmatpush2.msra.mxu0 %v359
    %601 = vmatprep.subr.mxu0 %v356
    %602 = vmatpush2.msra.mxu0 %v355
    %603 = vmatprep.subr.mxu0 %v352
    %604 = vmatpush2.msra.mxu0 %v351
    %605 = vmatprep.subr.mxu0 %v348
    %606 = vmatpush2.msra.mxu0 %v347
    %607 = vmatprep.subr.mxu0 %v344
    %608 = vmatpush2.msra.mxu0 %v343
    %609 = vmatprep.subr.mxu0 %v340
    %610 = vmatpush2.msra.mxu0 %v339
    %611 = vmatprep.subr.mxu0 %v336
    %612 = vmatpush2.msra.mxu0 %v335
    %613 = vmatprep.subr.mxu0 %v332
    %614 = vmatpush2.msra.mxu0 %v331
    %615 = vmatprep.subr.mxu0 %v328
    %616 = vmatpush2.msra.mxu0 %v327
    %617 = vmatprep.subr.mxu0 %v324
    %618 = vmatpush2.msra.mxu0 %v323
    %619 = vmatprep.subr.mxu0 %v320
    %620 = vmatpush2.msra.mxu0 %v319
    %621 = vmatprep.mubr.f32.mxu0 %v451
    %622 = vmatmul.mubr.f32.gmra.mxu0 %v449
    %v623 = vpop.f32.mrf.mxu0
    %v624 = vadd.f32 %v471, %v623
    %v625 = vpop.f32.mrf.mxu0
    %v626 = vadd.f32 %v475, %v625
    %627 = vmatprep.mubr.f32.mxu0 %v457
    %628 = vmatmul.mubr.f32.gmra.mxu0 %v455
    %v629 = vpop.f32.mrf.mxu0
    %v630 = vadd.f32 %v471, %v629
    %v631 = vpop.f32.mrf.mxu0
    %v632 = vadd.f32 %v475, %v631
    %633 = vdwg.mxu0
    %v634 = vmax.f32 %v547, 0.0
    %v635 = vmax.f32 %v549, 0.0
    %v636 = vmax.f32 %v624, 0.0
    %v637 = vmax.f32 %v626, 0.0
    %v638 = vmax.f32 %v553, 0.0
    %v639 = vmax.f32 %v555, 0.0
    %v640 = vmax.f32 %v630, 0.0
    %v641 = vmax.f32 %v632, 0.0
    %642 = vst [vmem:[%s6] sm:$0xff] %v634
    %643 = vst [vmem:[%s6 + $0x8] sm:$0xff] %v635
    %644 = vst [vmem:[%s6 + $0x10] sm:$0xff] %v636
    %645 = vst [vmem:[%s6 + $0x18] sm:$0xff] %v637
    %646 = vst [vmem:[%s6 + $0x20] sm:$0xff] %v638
    %647 = vst [vmem:[%s6 + $0x28] sm:$0xff] %v639
    %648 = vst [vmem:[%s6 + $0x30] sm:$0xff] %v640
    %649 = vst [vmem:[%s6 + $0x38] sm:$0xff] %v641
    // Predicated region
    $region34: #{gcn_lstm_forward.2} parent=1 // pred_check
      _
    $region35: #{gcn_lstm_forward.2} parent=1 // pred_check_branch
      %651 = sbr.rel (0) target = $region37
    $region36: #{gcn_lstm_forward.2} parent=1 // pred_region
      _
    $region37: #{gcn_lstm_forward.2} parent=1 // pred_fallthru
      _
    // Predicated region
    $region38: #{gcn_lstm_forward.2} parent=1 // pred_check
      _
    $region39: #{gcn_lstm_forward.2} parent=1 // pred_check_branch
      %653 = sbr.rel (0) target = $region41
    $region40: #{gcn_lstm_forward.2} parent=1 // pred_region
      _
    $region41: #{gcn_lstm_forward.2} parent=1 // pred_fallthru
      _
    %654 = vsyncpa [#allocation3], 1
    %655 = vsyncpa [#allocation5], 1

// kernel: gcn_lstm_forward.3
$region0: #{gcn_lstm_forward.3}
  #allocation0 [shape = 'u32[]', space=smem, size = 0x4, offset = 0x4, fixed_abs, tag = 'smem constant byte address 0x4 - core index']
  #allocation1 [shape = 'u32[144,128]{1,0:T(1,128)}', space=vmem, size = 0x12000, scoped, tag = 'internal scratch']
  %s0 = inlined_call_operand.vmem [shape: f32[16,2,8,32], index: 0, kind: input, shape index: {}]
  %s1 = inlined_call_operand.vmem [shape: f32[32,128], index: 1, kind: input, shape index: {}]
  %s2 = inlined_call_operand.vmem [shape: f32[32,128], index: 2, kind: input, shape index: {}]
  %s3 = inlined_call_operand.vmem [shape: f32[1,128], index: 3, kind: input, shape index: {}]
  %s4 = inlined_call_operand.vmem [shape: f32[32,128], index: 4, kind: input, shape index: {}]
  %s5 = inlined_call_operand.vmem [shape: f32[32,128], index: 5, kind: input, shape index: {}]
  %s6 = inlined_call_operand.vmem [shape: f32[1,128], index: 6, kind: input, shape index: {}]
  %s7 = inlined_call_operand.vmem [shape: f32[16,2,32], index: 7, kind: output, shape index: {}]
  %s8 = sld [smem:[#allocation0]]
  $region61: #{gcn_lstm_forward.3} parent=0
    _
  %s10 = ssub.s32 1, %s8
  %s11 = scalar_select 0, %s10, %s8
  loop: start=0, step=1, limit=4
  $region2: #{gcn_lstm_forward.3} parent=0 // loop_pre_header
    _
  $region3: #{gcn_lstm_forward.3} parent=0 // loop_header
    %s13 = sphi 0, %s17
    %p14 = scmp.ge.s32.totalorder %s13, 4
    %s23 = sphi 0, %s25
    %s26 = sphi 0, %s23
    %s27 = sphi 0, %s26
    %s43 = sphi 0, %s27
    %s47 = sphi 0, %s47
    %s49 = sphi 0, %s47
    %s50 = sphi 0, %s49
    %s64 = sphi 0, %s50
    %s68 = sphi 0, %s68
    %s70 = sphi 0, %s68
    %s71 = sphi 0, %s70
    %s85 = sphi 0, %s71
    %s89 = sphi 0, %s89
    %s91 = sphi 0, %s89
    %s92 = sphi 0, %s91
    %s106 = sphi 0, %s92
    %s110 = sphi 0, %s110
    %s112 = sphi 0, %s110
    %s113 = sphi 0, %s112
    %s127 = sphi 0, %s113
    %s131 = sphi 0, %s131
    %s133 = sphi 0, %s131
    %s134 = sphi 0, %s133
    %s148 = sphi 0, %s134
    %s152 = sphi 0, %s152
    %s154 = sphi 0, %s152
    %s155 = sphi 0, %s154
    %s169 = sphi 0, %s155
    %s175 = sphi 0, %s177
    %s178 = sphi 0, %s175
    %s179 = sphi 0, %s178
    %s195 = sphi 0, %s179
  $region4: #{gcn_lstm_forward.3} parent=0 // loop_header_branch
    %16 = sbr.rel (%p14) target = $region8
  $region5: #{gcn_lstm_forward.3} parent=0 // loop_body
    %s18 = ssub.s32 %s13, 1
    %s19 = ssub.s32 %s13, 2
    %s20 = sadd.s32 %s13, 1
    %s21 = ssub.s32 %s13, %s20
    %p22 = scmp.eq.s32.totalorder %s21, 0
    %s24 = sadd.s32 %s23, 1
    %s25 = scalar_select %p22, %s23, %s24
    %p28 = pneg %p22
    %p29 = scmp.eq.s32.totalorder %s13, 1
    %p30 = por %p28, %p29
    %p31 = scmp.ne.s32.totalorder %s23, %s26
    %p32 = scmp.eq.s32.totalorder %s13, 0
    %p33 = por %p31, %p32
    %p34 = scmp.ne.s32.totalorder %s23, %s26
    %p35 = scmp.eq.s32.totalorder %s18, 1
    %p36 = por %p34, %p35
    %p37 = scmp.ne.s32.totalorder %s26, %s27
    %p38 = scmp.eq.s32.totalorder %s18, 0
    %p39 = por %p37, %p38
    %p40 = scmp.ne.s32.totalorder %s26, %s27
    %p41 = scmp.eq.s32.totalorder %s19, 1
    %p42 = por %p40, %p41
    %p44 = scmp.ne.s32.totalorder %s27, %s43
    %p45 = scmp.eq.s32.totalorder %s19, 0
    %p46 = por %p44, %p45
    %s48 = sadd.s32 %s47, 1
    %p51 = scmp.eq.s32.totalorder %s13, 1
    %p52 = scmp.ne.s32.totalorder %s47, %s49
    %p53 = scmp.eq.s32.totalorder %s13, 0
    %p54 = por %p52, %p53
    %p55 = scmp.ne.s32.totalorder %s47, %s49
    %p56 = scmp.eq.s32.totalorder %s18, 1
    %p57 = por %p55, %p56
    %p58 = scmp.ne.s32.totalorder %s49, %s50
    %p59 = scmp.eq.s32.totalorder %s18, 0
    %p60 = por %p58, %p59
    %p61 = scmp.ne.s32.totalorder %s49, %s50
    %p62 = scmp.eq.s32.totalorder %s19, 1
    %p63 = por %p61, %p62
    %p65 = scmp.ne.s32.totalorder %s50, %s64
    %p66 = scmp.eq.s32.totalorder %s19, 0
    %p67 = por %p65, %p66
    %s69 = sadd.s32 %s68, 1
    %p72 = scmp.eq.s32.totalorder %s13, 1
    %p73 = scmp.ne.s32.totalorder %s68, %s70
    %p74 = scmp.eq.s32.totalorder %s13, 0
    %p75 = por %p73, %p74
    %p76 = scmp.ne.s32.totalorder %s68, %s70
    %p77 = scmp.eq.s32.totalorder %s18, 1
    %p78 = por %p76, %p77
    %p79 = scmp.ne.s32.totalorder %s70, %s71
    %p80 = scmp.eq.s32.totalorder %s18, 0
    %p81 = por %p79, %p80
    %p82 = scmp.ne.s32.totalorder %s70, %s71
    %p83 = scmp.eq.s32.totalorder %s19, 1
    %p84 = por %p82, %p83
    %p86 = scmp.ne.s32.totalorder %s71, %s85
    %p87 = scmp.eq.s32.totalorder %s19, 0
    %p88 = por %p86, %p87
    %s90 = sadd.s32 %s89, 1
    %p93 = scmp.eq.s32.totalorder %s13, 1
    %p94 = scmp.ne.s32.totalorder %s89, %s91
    %p95 = scmp.eq.s32.totalorder %s13, 0
    %p96 = por %p94, %p95
    %p97 = scmp.ne.s32.totalorder %s89, %s91
    %p98 = scmp.eq.s32.totalorder %s18, 1
    %p99 = por %p97, %p98
    %p100 = scmp.ne.s32.totalorder %s91, %s92
    %p101 = scmp.eq.s32.totalorder %s18, 0
    %p102 = por %p100, %p101
    %p103 = scmp.ne.s32.totalorder %s91, %s92
    %p104 = scmp.eq.s32.totalorder %s19, 1
    %p105 = por %p103, %p104
    %p107 = scmp.ne.s32.totalorder %s92, %s106
    %p108 = scmp.eq.s32.totalorder %s19, 0
    %p109 = por %p107, %p108
    %s111 = sadd.s32 %s110, 1
    %p114 = scmp.eq.s32.totalorder %s13, 1
    %p115 = scmp.ne.s32.totalorder %s110, %s112
    %p116 = scmp.eq.s32.totalorder %s13, 0
    %p117 = por %p115, %p116
    %p118 = scmp.ne.s32.totalorder %s110, %s112
    %p119 = scmp.eq.s32.totalorder %s18, 1
    %p120 = por %p118, %p119
    %p121 = scmp.ne.s32.totalorder %s112, %s113
    %p122 = scmp.eq.s32.totalorder %s18, 0
    %p123 = por %p121, %p122
    %p124 = scmp.ne.s32.totalorder %s112, %s113
    %p125 = scmp.eq.s32.totalorder %s19, 1
    %p126 = por %p124, %p125
    %p128 = scmp.ne.s32.totalorder %s113, %s127
    %p129 = scmp.eq.s32.totalorder %s19, 0
    %p130 = por %p128, %p129
    %s132 = sadd.s32 %s131, 1
    %p135 = scmp.eq.s32.totalorder %s13, 1
    %p136 = scmp.ne.s32.totalorder %s131, %s133
    %p137 = scmp.eq.s32.totalorder %s13, 0
    %p138 = por %p136, %p137
    %p139 = scmp.ne.s32.totalorder %s131, %s133
    %p140 = scmp.eq.s32.totalorder %s18, 1
    %p141 = por %p139, %p140
    %p142 = scmp.ne.s32.totalorder %s133, %s134
    %p143 = scmp.eq.s32.totalorder %s18, 0
    %p144 = por %p142, %p143
    %p145 = scmp.ne.s32.totalorder %s133, %s134
    %p146 = scmp.eq.s32.totalorder %s19, 1
    %p147 = por %p145, %p146
    %p149 = scmp.ne.s32.totalorder %s134, %s148
    %p150 = scmp.eq.s32.totalorder %s19, 0
    %p151 = por %p149, %p150
    %s153 = sadd.s32 %s152, 1
    %p156 = scmp.eq.s32.totalorder %s13, 1
    %p157 = scmp.ne.s32.totalorder %s152, %s154
    %p158 = scmp.eq.s32.totalorder %s13, 0
    %p159 = por %p157, %p158
    %p160 = scmp.ne.s32.totalorder %s152, %s154
    %p161 = scmp.eq.s32.totalorder %s18, 1
    %p162 = por %p160, %p161
    %p163 = scmp.ne.s32.totalorder %s154, %s155
    %p164 = scmp.eq.s32.totalorder %s18, 0
    %p165 = por %p163, %p164
    %p166 = scmp.ne.s32.totalorder %s154, %s155
    %p167 = scmp.eq.s32.totalorder %s19, 1
    %p168 = por %p166, %p167
    %p170 = scmp.ne.s32.totalorder %s155, %s169
    %p171 = scmp.eq.s32.totalorder %s19, 0
    %p172 = por %p170, %p171
    %s173 = ssub.s32 %s13, %s20
    %p174 = scmp.eq.s32.totalorder %s173, 0
    %s176 = sadd.s32 %s175, 1
    %s177 = scalar_select %p174, %s175, %s176
    %p180 = pneg %p174
    %p181 = scmp.eq.s32.totalorder %s13, 1
    %p182 = por %p180, %p181
    %p183 = scmp.ne.s32.totalorder %s175, %s178
    %p184 = scmp.eq.s32.totalorder %s13, 0
    %p185 = por %p183, %p184
    %p186 = scmp.ne.s32.totalorder %s175, %s178
    %p187 = scmp.eq.s32.totalorder %s18, 1
    %p188 = por %p186, %p187
    %p189 = scmp.ne.s32.totalorder %s178, %s179
    %p190 = scmp.eq.s32.totalorder %s18, 0
    %p191 = por %p189, %p190
    %p192 = scmp.ne.s32.totalorder %s178, %s179
    %p193 = scmp.eq.s32.totalorder %s19, 1
    %p194 = por %p192, %p193
    %p196 = scmp.ne.s32.totalorder %s179, %s195
    %p197 = scmp.eq.s32.totalorder %s19, 0
    %p198 = por %p196, %p197
    %p199 = scmp.le.s32.totalorder 1, %s13
    %p200 = scmp.lt.s32.totalorder %s13, 3
    %p201 = pnand %p199, %p200
    %p202 = pneg %p201
    // Predicated region
    $region9: #{gcn_lstm_forward.3} parent=5 // pred_check
      _
    $region10: #{gcn_lstm_forward.3} parent=5 // pred_check_branch
      %204 = sbr.rel (%p201) target = $region12
    $region11: #{gcn_lstm_forward.3} parent=5 // pred_region
      %s205 = ssub.s32 %s13, 1
      // Predicated region
      $region13: #{gcn_lstm_forward.3} parent=11 // pred_check
        %p206 = pneg %p60
      $region14: #{gcn_lstm_forward.3} parent=11 // pred_check_branch
        %208 = sbr.rel (%p206) target = $region16
      $region15: #{gcn_lstm_forward.3} parent=11 // pred_region
        _
      $region16: #{gcn_lstm_forward.3} parent=11 // pred_fallthru
        _
      // Predicated region
      $region17: #{gcn_lstm_forward.3} parent=11 // pred_check
        %p209 = pneg %p81
      $region18: #{gcn_lstm_forward.3} parent=11 // pred_check_branch
        %211 = sbr.rel (%p209) target = $region20
      $region19: #{gcn_lstm_forward.3} parent=11 // pred_region
        _
      $region20: #{gcn_lstm_forward.3} parent=11 // pred_fallthru
        _
      // Predicated region
      $region21: #{gcn_lstm_forward.3} parent=11 // pred_check
        %p212 = pneg %p102
      $region22: #{gcn_lstm_forward.3} parent=11 // pred_check_branch
        %214 = sbr.rel (%p212) target = $region24
      $region23: #{gcn_lstm_forward.3} parent=11 // pred_region
        _
      $region24: #{gcn_lstm_forward.3} parent=11 // pred_fallthru
        _
      // Predicated region
      $region25: #{gcn_lstm_forward.3} parent=11 // pred_check
        %p215 = pneg %p123
      $region26: #{gcn_lstm_forward.3} parent=11 // pred_check_branch
        %217 = sbr.rel (%p215) target = $region28
      $region27: #{gcn_lstm_forward.3} parent=11 // pred_region
        _
      $region28: #{gcn_lstm_forward.3} parent=11 // pred_fallthru
        _
      // Predicated region
      $region29: #{gcn_lstm_forward.3} parent=11 // pred_check
        %p218 = pneg %p144
      $region30: #{gcn_lstm_forward.3} parent=11 // pred_check_branch
        %220 = sbr.rel (%p218) target = $region32
      $region31: #{gcn_lstm_forward.3} parent=11 // pred_region
        _
      $region32: #{gcn_lstm_forward.3} parent=11 // pred_fallthru
        _
      // Predicated region
      $region33: #{gcn_lstm_forward.3} parent=11 // pred_check
        %p221 = pneg %p165
      $region34: #{gcn_lstm_forward.3} parent=11 // pred_check_branch
        %223 = sbr.rel (%p221) target = $region36
      $region35: #{gcn_lstm_forward.3} parent=11 // pred_region
        _
      $region36: #{gcn_lstm_forward.3} parent=11 // pred_fallthru
        _
    $region12: #{gcn_lstm_forward.3} parent=5 // pred_fallthru
      _
    %p224 = scmp.lt.s32.totalorder %s13, 2
    // Predicated region
    $region37: #{gcn_lstm_forward.3} parent=5 // pred_check
      %p225 = pneg %p224
    $region38: #{gcn_lstm_forward.3} parent=5 // pred_check_branch
      %227 = sbr.rel (%p225) target = $region40
    $region39: #{gcn_lstm_forward.3} parent=5 // pred_region
      // Predicated region
      $region41: #{gcn_lstm_forward.3} parent=39 // pred_check
        %p228 = pneg %p33
      $region42: #{gcn_lstm_forward.3} parent=39 // pred_check_branch
        %230 = sbr.rel (%p228) target = $region44
      $region43: #{gcn_lstm_forward.3} parent=39 // pred_region
        %s231 = smul.u32 8, %s13
        %p232 = scmp.lt.s32.totalorder %s231, 15
        %s233 = scalar_select %p232, %s231, 15
        %s234 = smul.addr %s233, 2
        %s235 = smul.addr %s234, 8
        %s236 = scalar_lea.vmem %s0, %s235
        %s237 = smul.u32 8, %s13
      $region44: #{gcn_lstm_forward.3} parent=39 // pred_fallthru
        _
    $region40: #{gcn_lstm_forward.3} parent=5 // pred_fallthru
      _
    %p238 = scmp.le.s32.totalorder 1, %s13
    %p239 = scmp.lt.s32.totalorder %s13, 3
    %p240 = pnand %p238, %p239
    %p241 = pneg %p240
    // Predicated region
    $region45: #{gcn_lstm_forward.3} parent=5 // pred_check
      _
    $region46: #{gcn_lstm_forward.3} parent=5 // pred_check_branch
      %243 = sbr.rel (%p240) target = $region48
    $region47: #{gcn_lstm_forward.3} parent=5 // pred_region
      %s244 = ssub.s32 %s13, 1
      %s245 = smul.u32 8, %s18
      %p246 = scmp.lt.s32.totalorder %s245, 15
      %s247 = scalar_select %p246, %s245, 15
      %s248 = smul.addr %s247, 2
      %s249 = smul.addr %s248, 8
      %s250 = scalar_lea.vmem %s0, %s249
      %p251 = pneg %p39
      %p252 = pneg %p36
      %p253 = pneg %p60
      %p254 = pneg %p57
      %p255 = pneg %p81
      %p256 = pneg %p78
      %p257 = pneg %p102
      %p258 = pneg %p99
      %p259 = pneg %p123
      %p260 = pneg %p120
      %p261 = pneg %p144
      %p262 = pneg %p141
      %p263 = pneg %p165
      %p264 = pneg %p162
      %p265 = pneg %p191
      %p266 = pneg %p188
      %s267 = smul.u32 8, %s18
      %p268 = scmp.lt.s32.totalorder %s267, 15
      %s269 = scalar_select %p268, %s267, 15
      %s270 = smul.addr %s269, 2
      %s271 = scalar_lea.vmem %s7, %s270
      %s272 = smul.u32 8, %s18
      %p273 = scmp.lt.s32.totalorder %s272, 15
      %s274 = scalar_select %p273, %s272, 15
      %s275 = smul.addr %s274, 2
      %s276 = smul.addr %s275, 8
      %s277 = scalar_lea.vmem %s0, %s276
      %s278 = smul.u32 8, %s18
      %s279 = smul.u32 8, %s18
      %p280 = scmp.lt.s32.totalorder %s279, 15
      %s281 = scalar_select %p280, %s279, 15
      %s282 = smul.addr %s281, 2
      %s283 = scalar_lea.vmem %s7, %s282
      %s284 = smul.u32 8, %s18
      %v285 = vld [vmem:[%s277] sm:$0x1]
      %v286 = vld [vmem:[%s277 + $0x8] sm:$0x1]
      %v287 = vld [vmem:[%s277 + $0x10] sm:$0x1]
      %v288 = vld [vmem:[%s277 + $0x18] sm:$0x1]
      %v289 = vld [vmem:[%s277 + $0x20] sm:$0x1]
      %v290 = vld [vmem:[%s277 + $0x28] sm:$0x1]
      %v291 = vld [vmem:[%s277 + $0x30] sm:$0x1]
      %v292 = vld [vmem:[%s277 + $0x38] sm:$0x1]
      %v293 = vld [vmem:[%s277 + $0x40] sm:$0x1]
      %v294 = vld [vmem:[%s277 + $0x48] sm:$0x1]
      %v295 = vld [vmem:[%s277 + $0x50] sm:$0x1]
      %v296 = vld [vmem:[%s277 + $0x58] sm:$0x1]
      %v297 = vld [vmem:[%s277 + $0x60] sm:$0x1]
      %v298 = vld [vmem:[%s277 + $0x68] sm:$0x1]
      %v299 = vld [vmem:[%s277 + $0x70] sm:$0x1]
      %v300 = vld [vmem:[%s277 + $0x78] sm:$0x1]
      %v301 = vld [vmem:[%s277 + $0x1] sm:$0x1]
      %v302 = vld [vmem:[%s277 + $0x9] sm:$0x1]
      %v303 = vld [vmem:[%s277 + $0x11] sm:$0x1]
      %v304 = vld [vmem:[%s277 + $0x19] sm:$0x1]
      %v305 = vld [vmem:[%s277 + $0x21] sm:$0x1]
      %v306 = vld [vmem:[%s277 + $0x29] sm:$0x1]
      %v307 = vld [vmem:[%s277 + $0x31] sm:$0x1]
      %v308 = vld [vmem:[%s277 + $0x39] sm:$0x1]
      %v309 = vld [vmem:[%s277 + $0x41] sm:$0x1]
      %v310 = vld [vmem:[%s277 + $0x49] sm:$0x1]
      %v311 = vld [vmem:[%s277 + $0x51] sm:$0x1]
      %v312 = vld [vmem:[%s277 + $0x59] sm:$0x1]
      %v313 = vld [vmem:[%s277 + $0x61] sm:$0x1]
      %v314 = vld [vmem:[%s277 + $0x69] sm:$0x1]
      %v315 = vld [vmem:[%s277 + $0x71] sm:$0x1]
      %v316 = vld [vmem:[%s277 + $0x79] sm:$0x1]
      %v317 = vld [vmem:[%s277 + $0x2] sm:$0x1]
      %v318 = vld [vmem:[%s277 + $0xa] sm:$0x1]
      %v319 = vld [vmem:[%s277 + $0x12] sm:$0x1]
      %v320 = vld [vmem:[%s277 + $0x1a] sm:$0x1]
      %v321 = vld [vmem:[%s277 + $0x22] sm:$0x1]
      %v322 = vld [vmem:[%s277 + $0x2a] sm:$0x1]
      %v323 = vld [vmem:[%s277 + $0x32] sm:$0x1]
      %v324 = vld [vmem:[%s277 + $0x3a] sm:$0x1]
      %v325 = vld [vmem:[%s277 + $0x42] sm:$0x1]
      %v326 = vld [vmem:[%s277 + $0x4a] sm:$0x1]
      %v327 = vld [vmem:[%s277 + $0x52] sm:$0x1]
      %v328 = vld [vmem:[%s277 + $0x5a] sm:$0x1]
      %v329 = vld [vmem:[%s277 + $0x62] sm:$0x1]
      %v330 = vld [vmem:[%s277 + $0x6a] sm:$0x1]
      %v331 = vld [vmem:[%s277 + $0x72] sm:$0x1]
      %v332 = vld [vmem:[%s277 + $0x7a] sm:$0x1]
      %v333 = vld [vmem:[%s277 + $0x3] sm:$0x1]
      %v334 = vld [vmem:[%s277 + $0xb] sm:$0x1]
      %v335 = vld [vmem:[%s277 + $0x13] sm:$0x1]
      %v336 = vld [vmem:[%s277 + $0x1b] sm:$0x1]
      %v337 = vld [vmem:[%s277 + $0x23] sm:$0x1]
      %v338 = vld [vmem:[%s277 + $0x2b] sm:$0x1]
      %v339 = vld [vmem:[%s277 + $0x33] sm:$0x1]
      %v340 = vld [vmem:[%s277 + $0x3b] sm:$0x1]
      %v341 = vld [vmem:[%s277 + $0x43] sm:$0x1]
      %v342 = vld [vmem:[%s277 + $0x4b] sm:$0x1]
      %v343 = vld [vmem:[%s277 + $0x53] sm:$0x1]
      %v344 = vld [vmem:[%s277 + $0x5b] sm:$0x1]
      %v345 = vld [vmem:[%s277 + $0x63] sm:$0x1]
      %v346 = vld [vmem:[%s277 + $0x6b] sm:$0x1]
      %v347 = vld [vmem:[%s277 + $0x73] sm:$0x1]
      %v348 = vld [vmem:[%s277 + $0x7b] sm:$0x1]
      %v349 = vld [vmem:[%s277 + $0x4] sm:$0x1]
      %v350 = vld [vmem:[%s277 + $0xc] sm:$0x1]
      %v351 = vld [vmem:[%s277 + $0x14] sm:$0x1]
      %v352 = vld [vmem:[%s277 + $0x1c] sm:$0x1]
      %v353 = vld [vmem:[%s277 + $0x24] sm:$0x1]
      %v354 = vld [vmem:[%s277 + $0x2c] sm:$0x1]
      %v355 = vld [vmem:[%s277 + $0x34] sm:$0x1]
      %v356 = vld [vmem:[%s277 + $0x3c] sm:$0x1]
      %v357 = vld [vmem:[%s277 + $0x44] sm:$0x1]
      %v358 = vld [vmem:[%s277 + $0x4c] sm:$0x1]
      %v359 = vld [vmem:[%s277 + $0x54] sm:$0x1]
      %v360 = vld [vmem:[%s277 + $0x5c] sm:$0x1]
      %v361 = vld [vmem:[%s277 + $0x64] sm:$0x1]
      %v362 = vld [vmem:[%s277 + $0x6c] sm:$0x1]
      %v363 = vld [vmem:[%s277 + $0x74] sm:$0x1]
      %v364 = vld [vmem:[%s277 + $0x7c] sm:$0x1]
      %v365 = vld [vmem:[%s277 + $0x5] sm:$0x1]
      %v366 = vld [vmem:[%s277 + $0xd] sm:$0x1]
      %v367 = vld [vmem:[%s277 + $0x15] sm:$0x1]
      %v368 = vld [vmem:[%s277 + $0x1d] sm:$0x1]
      %v369 = vld [vmem:[%s277 + $0x25] sm:$0x1]
      %v370 = vld [vmem:[%s277 + $0x2d] sm:$0x1]
      %v371 = vld [vmem:[%s277 + $0x35] sm:$0x1]
      %v372 = vld [vmem:[%s277 + $0x3d] sm:$0x1]
      %v373 = vld [vmem:[%s277 + $0x45] sm:$0x1]
      %v374 = vld [vmem:[%s277 + $0x4d] sm:$0x1]
      %v375 = vld [vmem:[%s277 + $0x55] sm:$0x1]
      %v376 = vld [vmem:[%s277 + $0x5d] sm:$0x1]
      %v377 = vld [vmem:[%s277 + $0x65] sm:$0x1]
      %v378 = vld [vmem:[%s277 + $0x6d] sm:$0x1]
      %v379 = vld [vmem:[%s277 + $0x75] sm:$0x1]
      %v380 = vld [vmem:[%s277 + $0x7d] sm:$0x1]
      %v381 = vld [vmem:[%s277 + $0x6] sm:$0x1]
      %v382 = vld [vmem:[%s277 + $0xe] sm:$0x1]
      %v383 = vld [vmem:[%s277 + $0x16] sm:$0x1]
      %v384 = vld [vmem:[%s277 + $0x1e] sm:$0x1]
      %v385 = vld [vmem:[%s277 + $0x26] sm:$0x1]
      %v386 = vld [vmem:[%s277 + $0x2e] sm:$0x1]
      %v387 = vld [vmem:[%s277 + $0x36] sm:$0x1]
      %v388 = vld [vmem:[%s277 + $0x3e] sm:$0x1]
      %v389 = vld [vmem:[%s277 + $0x46] sm:$0x1]
      %v390 = vld [vmem:[%s277 + $0x4e] sm:$0x1]
      %v391 = vld [vmem:[%s277 + $0x56] sm:$0x1]
      %v392 = vld [vmem:[%s277 + $0x5e] sm:$0x1]
      %v393 = vld [vmem:[%s277 + $0x66] sm:$0x1]
      %v394 = vld [vmem:[%s277 + $0x6e] sm:$0x1]
      %v395 = vld [vmem:[%s277 + $0x76] sm:$0x1]
      %v396 = vld [vmem:[%s277 + $0x7e] sm:$0x1]
      %v397 = vld [vmem:[%s277 + $0x7] sm:$0x1]
      %v398 = vld [vmem:[%s277 + $0xf] sm:$0x1]
      %v399 = vld [vmem:[%s277 + $0x17] sm:$0x1]
      %v400 = vld [vmem:[%s277 + $0x1f] sm:$0x1]
      %v401 = vld [vmem:[%s277 + $0x27] sm:$0x1]
      %v402 = vld [vmem:[%s277 + $0x2f] sm:$0x1]
      %v403 = vld [vmem:[%s277 + $0x37] sm:$0x1]
      %v404 = vld [vmem:[%s277 + $0x3f] sm:$0x1]
      %v405 = vld [vmem:[%s277 + $0x47] sm:$0x1]
      %v406 = vld [vmem:[%s277 + $0x4f] sm:$0x1]
      %v407 = vld [vmem:[%s277 + $0x57] sm:$0x1]
      %v408 = vld [vmem:[%s277 + $0x5f] sm:$0x1]
      %v409 = vld [vmem:[%s277 + $0x67] sm:$0x1]
      %v410 = vld [vmem:[%s277 + $0x6f] sm:$0x1]
      %v411 = vld [vmem:[%s277 + $0x77] sm:$0x1]
      %v412 = vld [vmem:[%s277 + $0x7f] sm:$0x1]
      %v429 = vrot.slane %v286, 7
      %vm430 = vcmask 1041409
      %v431 = vsel %vm430, %v429, %v285
      %v432 = vrot.slane %v287, 6
      %vm433 = vcmask 1042434
      %v434 = vsel %vm433, %v432, %v431
      %v435 = vrot.slane %v288, 5
      %vm436 = vcmask 1043459
      %v437 = vsel %vm436, %v435, %v434
      %v438 = vrot.slane %v289, 4
      %vm439 = vcmask 1044484
      %v440 = vsel %vm439, %v438, %v437
      %v441 = vrot.slane %v290, 3
      %vm442 = vcmask 1045509
      %v443 = vsel %vm442, %v441, %v440
      %v444 = vrot.slane %v291, 2
      %vm445 = vcmask 1046534
      %v446 = vsel %vm445, %v444, %v443
      %v447 = vrot.slane %v292, 1
      %vm448 = vcmask 1047559
      %v449 = vsel %vm448, %v447, %v446
      %v450 = vrot.slane %v294, 7
      %v451 = vsel %vm430, %v450, %v293
      %v452 = vrot.slane %v295, 6
      %v453 = vsel %vm433, %v452, %v451
      %v454 = vrot.slane %v296, 5
      %v455 = vsel %vm436, %v454, %v453
      %v456 = vrot.slane %v297, 4
      %v457 = vsel %vm439, %v456, %v455
      %v458 = vrot.slane %v298, 3
      %v459 = vsel %vm442, %v458, %v457
      %v460 = vrot.slane %v299, 2
      %v461 = vsel %vm445, %v460, %v459
      %v462 = vrot.slane %v300, 1
      %v463 = vsel %vm448, %v462, %v461
      %v480 = vrot.slane %v302, 7
      %v481 = vsel %vm430, %v480, %v301
      %v482 = vrot.slane %v303, 6
      %v483 = vsel %vm433, %v482, %v481
      %v484 = vrot.slane %v304, 5
      %v485 = vsel %vm436, %v484, %v483
      %v486 = vrot.slane %v305, 4
      %v487 = vsel %vm439, %v486, %v485
      %v488 = vrot.slane %v306, 3
      %v489 = vsel %vm442, %v488, %v487
      %v490 = vrot.slane %v307, 2
      %v491 = vsel %vm445, %v490, %v489
      %v492 = vrot.slane %v308, 1
      %v493 = vsel %vm448, %v492, %v491
      %v494 = vrot.slane %v310, 7
      %v495 = vsel %vm430, %v494, %v309
      %v496 = vrot.slane %v311, 6
      %v497 = vsel %vm433, %v496, %v495
      %v498 = vrot.slane %v312, 5
      %v499 = vsel %vm436, %v498, %v497
      %v500 = vrot.slane %v313, 4
      %v501 = vsel %vm439, %v500, %v499
      %v502 = vrot.slane %v314, 3
      %v503 = vsel %vm442, %v502, %v501
      %v504 = vrot.slane %v315, 2
      %v505 = vsel %vm445, %v504, %v503
      %v506 = vrot.slane %v316, 1
      %v507 = vsel %vm448, %v506, %v505
      %v524 = vrot.slane %v318, 7
      %v525 = vsel %vm430, %v524, %v317
      %v526 = vrot.slane %v319, 6
      %v527 = vsel %vm433, %v526, %v525
      %v528 = vrot.slane %v320, 5
      %v529 = vsel %vm436, %v528, %v527
      %v530 = vrot.slane %v321, 4
      %v531 = vsel %vm439, %v530, %v529
      %v532 = vrot.slane %v322, 3
      %v533 = vsel %vm442, %v532, %v531
      %v534 = vrot.slane %v323, 2
      %v535 = vsel %vm445, %v534, %v533
      %v536 = vrot.slane %v324, 1
      %v537 = vsel %vm448, %v536, %v535
      %v538 = vrot.slane %v326, 7
      %v539 = vsel %vm430, %v538, %v325
      %v540 = vrot.slane %v327, 6
      %v541 = vsel %vm433, %v540, %v539
      %v542 = vrot.slane %v328, 5
      %v543 = vsel %vm436, %v542, %v541
      %v544 = vrot.slane %v329, 4
      %v545 = vsel %vm439, %v544, %v543
      %v546 = vrot.slane %v330, 3
      %v547 = vsel %vm442, %v546, %v545
      %v548 = vrot.slane %v331, 2
      %v549 = vsel %vm445, %v548, %v547
      %v550 = vrot.slane %v332, 1
      %v551 = vsel %vm448, %v550, %v549
      %v568 = vrot.slane %v334, 7
      %v569 = vsel %vm430, %v568, %v333
      %v570 = vrot.slane %v335, 6
      %v571 = vsel %vm433, %v570, %v569
      %v572 = vrot.slane %v336, 5
      %v573 = vsel %vm436, %v572, %v571
      %v574 = vrot.slane %v337, 4
      %v575 = vsel %vm439, %v574, %v573
      %v576 = vrot.slane %v338, 3
      %v577 = vsel %vm442, %v576, %v575
      %v578 = vrot.slane %v339, 2
      %v579 = vsel %vm445, %v578, %v577
      %v580 = vrot.slane %v340, 1
      %v581 = vsel %vm448, %v580, %v579
      %v582 = vrot.slane %v342, 7
      %v583 = vsel %vm430, %v582, %v341
      %v584 = vrot.slane %v343, 6
      %v585 = vsel %vm433, %v584, %v583
      %v586 = vrot.slane %v344, 5
      %v587 = vsel %vm436, %v586, %v585
      %v588 = vrot.slane %v345, 4
      %v589 = vsel %vm439, %v588, %v587
      %v590 = vrot.slane %v346, 3
      %v591 = vsel %vm442, %v590, %v589
      %v592 = vrot.slane %v347, 2
      %v593 = vsel %vm445, %v592, %v591
      %v594 = vrot.slane %v348, 1
      %v595 = vsel %vm448, %v594, %v593
      %v612 = vrot.slane %v350, 7
      %v613 = vsel %vm430, %v612, %v349
      %v614 = vrot.slane %v351, 6
      %v615 = vsel %vm433, %v614, %v613
      %v616 = vrot.slane %v352, 5
      %v617 = vsel %vm436, %v616, %v615
      %v618 = vrot.slane %v353, 4
      %v619 = vsel %vm439, %v618, %v617
      %v620 = vrot.slane %v354, 3
      %v621 = vsel %vm442, %v620, %v619
      %v622 = vrot.slane %v355, 2
      %v623 = vsel %vm445, %v622, %v621
      %v624 = vrot.slane %v356, 1
      %v625 = vsel %vm448, %v624, %v623
      %v626 = vrot.slane %v358, 7
      %v627 = vsel %vm430, %v626, %v357
      %v628 = vrot.slane %v359, 6
      %v629 = vsel %vm433, %v628, %v627
      %v630 = vrot.slane %v360, 5
      %v631 = vsel %vm436, %v630, %v629
      %v632 = vrot.slane %v361, 4
      %v633 = vsel %vm439, %v632, %v631
      %v634 = vrot.slane %v362, 3
      %v635 = vsel %vm442, %v634, %v633
      %v636 = vrot.slane %v363, 2
      %v637 = vsel %vm445, %v636, %v635
      %v638 = vrot.slane %v364, 1
      %v639 = vsel %vm448, %v638, %v637
      %v656 = vrot.slane %v366, 7
      %v657 = vsel %vm430, %v656, %v365
      %v658 = vrot.slane %v367, 6
      %v659 = vsel %vm433, %v658, %v657
      %v660 = vrot.slane %v368, 5
      %v661 = vsel %vm436, %v660, %v659
      %v662 = vrot.slane %v369, 4
      %v663 = vsel %vm439, %v662, %v661
      %v664 = vrot.slane %v370, 3
      %v665 = vsel %vm442, %v664, %v663
      %v666 = vrot.slane %v371, 2
      %v667 = vsel %vm445, %v666, %v665
      %v668 = vrot.slane %v372, 1
      %v669 = vsel %vm448, %v668, %v667
      %v670 = vrot.slane %v374, 7
      %v671 = vsel %vm430, %v670, %v373
      %v672 = vrot.slane %v375, 6
      %v673 = vsel %vm433, %v672, %v671
      %v674 = vrot.slane %v376, 5
      %v675 = vsel %vm436, %v674, %v673
      %v676 = vrot.slane %v377, 4
      %v677 = vsel %vm439, %v676, %v675
      %v678 = vrot.slane %v378, 3
      %v679 = vsel %vm442, %v678, %v677
      %v680 = vrot.slane %v379, 2
      %v681 = vsel %vm445, %v680, %v679
      %v682 = vrot.slane %v380, 1
      %v683 = vsel %vm448, %v682, %v681
      %v700 = vrot.slane %v382, 7
      %v701 = vsel %vm430, %v700, %v381
      %v702 = vrot.slane %v383, 6
      %v703 = vsel %vm433, %v702, %v701
      %v704 = vrot.slane %v384, 5
      %v705 = vsel %vm436, %v704, %v703
      %v706 = vrot.slane %v385, 4
      %v707 = vsel %vm439, %v706, %v705
      %v708 = vrot.slane %v386, 3
      %v709 = vsel %vm442, %v708, %v707
      %v710 = vrot.slane %v387, 2
      %v711 = vsel %vm445, %v710, %v709
      %v712 = vrot.slane %v388, 1
      %v713 = vsel %vm448, %v712, %v711
      %v714 = vrot.slane %v390, 7
      %v715 = vsel %vm430, %v714, %v389
      %v716 = vrot.slane %v391, 6
      %v717 = vsel %vm433, %v716, %v715
      %v718 = vrot.slane %v392, 5
      %v719 = vsel %vm436, %v718, %v717
      %v720 = vrot.slane %v393, 4
      %v721 = vsel %vm439, %v720, %v719
      %v722 = vrot.slane %v394, 3
      %v723 = vsel %vm442, %v722, %v721
      %v724 = vrot.slane %v395, 2
      %v725 = vsel %vm445, %v724, %v723
      %v726 = vrot.slane %v396, 1
      %v727 = vsel %vm448, %v726, %v725
      %v744 = vrot.slane %v398, 7
      %v745 = vsel %vm430, %v744, %v397
      %v746 = vrot.slane %v399, 6
      %v747 = vsel %vm433, %v746, %v745
      %v748 = vrot.slane %v400, 5
      %v749 = vsel %vm436, %v748, %v747
      %v750 = vrot.slane %v401, 4
      %v751 = vsel %vm439, %v750, %v749
      %v752 = vrot.slane %v402, 3
      %v753 = vsel %vm442, %v752, %v751
      %v754 = vrot.slane %v403, 2
      %v755 = vsel %vm445, %v754, %v753
      %v756 = vrot.slane %v404, 1
      %v757 = vsel %vm448, %v756, %v755
      %v758 = vrot.slane %v406, 7
      %v759 = vsel %vm430, %v758, %v405
      %v760 = vrot.slane %v407, 6
      %v761 = vsel %vm433, %v760, %v759
      %v762 = vrot.slane %v408, 5
      %v763 = vsel %vm436, %v762, %v761
      %v764 = vrot.slane %v409, 4
      %v765 = vsel %vm439, %v764, %v763
      %v766 = vrot.slane %v410, 3
      %v767 = vsel %vm442, %v766, %v765
      %v768 = vrot.slane %v411, 2
      %v769 = vsel %vm445, %v768, %v767
      %v770 = vrot.slane %v412, 1
      %v771 = vsel %vm448, %v770, %v769
      %v772 = vld [vmem:[%s1] sm:$0xff]
      %v773 = vld [vmem:[%s1 + $0x8] sm:$0xff]
      %v774 = vld [vmem:[%s1 + $0x10] sm:$0xff]
      %v775 = vld [vmem:[%s1 + $0x18] sm:$0xff]
      %v776 = vld [vmem:[%s3] sm:$0x1]
      %v778 = vlaneseq
      %v779 = vshrl.u32 %v778, 7
      %v780 = vsub.s32 0, %v779
      %v781 = vrot.slane %v776, %v780
      %vm783 = vcmask 261120
      %v784 = vsel %vm783, %v449, 0
      %v786 = vsel %vm783, %v463, 0
      %v788 = vsel %vm783, %v493, 0
      %v790 = vsel %vm783, %v507, 0
      %v792 = vsel %vm783, %v537, 0
      %v794 = vsel %vm783, %v551, 0
      %v796 = vsel %vm783, %v581, 0
      %v798 = vsel %vm783, %v595, 0
      %v800 = vsel %vm783, %v625, 0
      %v802 = vsel %vm783, %v639, 0
      %v804 = vsel %vm783, %v669, 0
      %v806 = vsel %vm783, %v683, 0
      %v808 = vsel %vm783, %v713, 0
      %v810 = vsel %vm783, %v727, 0
      %v812 = vsel %vm783, %v757, 0
      %v814 = vsel %vm783, %v771, 0
      %816 = vmatprep.subr.mxu0 0.0
      %817 = vmatpush1.msra.mxu0 0.0
      %818 = vmatprep.subr.mxu0 0.0
      %819 = vmatpush1.msra.mxu0 0.0
      %820 = vmatprep.subr.mxu0 0.0
      %821 = vmatpush1.msra.mxu0 0.0
      %822 = vmatprep.subr.mxu0 0.0
      %823 = vmatpush1.msra.mxu0 0.0
      %824 = vmatprep.subr.mxu0 0.0
      %825 = vmatpush1.msra.mxu0 0.0
      %826 = vmatprep.subr.mxu0 0.0
      %827 = vmatpush1.msra.mxu0 0.0
      %828 = vmatprep.subr.mxu0 0.0
      %829 = vmatpush1.msra.mxu0 0.0
      %830 = vmatprep.subr.mxu0 0.0
      %831 = vmatpush1.msra.mxu0 0.0
      %832 = vmatprep.subr.mxu0 0.0
      %833 = vmatpush1.msra.mxu0 0.0
      %834 = vmatprep.subr.mxu0 0.0
      %835 = vmatpush1.msra.mxu0 0.0
      %836 = vmatprep.subr.mxu0 0.0
      %837 = vmatpush1.msra.mxu0 0.0
      %838 = vmatprep.subr.mxu0 0.0
      %839 = vmatpush1.msra.mxu0 0.0
      %840 = vmatprep.subr.mxu0 0.0
      %841 = vmatpush1.msra.mxu0 %v775
      %842 = vmatprep.subr.mxu0 0.0
      %843 = vmatpush1.msra.mxu0 %v774
      %844 = vmatprep.subr.mxu0 0.0
      %845 = vmatpush1.msra.mxu0 %v773
      %846 = vmatprep.subr.mxu0 0.0
      %847 = vmatpush1.msra.mxu0 %v772
      %848 = vmatprep.subr.mxu0 0.0
      %849 = vmatpush2.msra.mxu0 0.0
      %850 = vmatprep.subr.mxu0 0.0
      %851 = vmatpush2.msra.mxu0 0.0
      %852 = vmatprep.subr.mxu0 0.0
      %853 = vmatpush2.msra.mxu0 0.0
      %854 = vmatprep.subr.mxu0 0.0
      %855 = vmatpush2.msra.mxu0 0.0
      %856 = vmatprep.subr.mxu0 0.0
      %857 = vmatpush2.msra.mxu0 0.0
      %858 = vmatprep.subr.mxu0 0.0
      %859 = vmatpush2.msra.mxu0 0.0
      %860 = vmatprep.subr.mxu0 0.0
      %861 = vmatpush2.msra.mxu0 0.0
      %862 = vmatprep.subr.mxu0 0.0
      %863 = vmatpush2.msra.mxu0 0.0
      %864 = vmatprep.subr.mxu0 0.0
      %865 = vmatpush2.msra.mxu0 0.0
      %866 = vmatprep.subr.mxu0 0.0
      %867 = vmatpush2.msra.mxu0 0.0
      %868 = vmatprep.subr.mxu0 0.0
      %869 = vmatpush2.msra.mxu0 0.0
      %870 = vmatprep.subr.mxu0 0.0
      %871 = vmatpush2.msra.mxu0 0.0
      %872 = vmatprep.subr.mxu0 0.0
      %873 = vmatpush2.msra.mxu0 0.0
      %874 = vmatprep.subr.mxu0 0.0
      %875 = vmatpush2.msra.mxu0 0.0
      %876 = vmatprep.subr.mxu0 0.0
      %877 = vmatpush2.msra.mxu0 0.0
      %878 = vmatprep.subr.mxu0 0.0
      %879 = vmatpush2.msra.mxu0 0.0
      %880 = vmatprep.mubr.f32.mxu0 0.0
      %881 = vmatmul.mubr.f32.gmra.mxu0 %v784
      %v882 = vpop.f32.mrf.mxu0
      %v883 = vadd.f32 %v781, %v882
      %v884 = vpop.f32.mrf.mxu0
      %885 = vmatprep.mubr.f32.mxu0 0.0
      %886 = vmatmul.mubr.f32.gmra.mxu0 %v786
      %v887 = vpop.f32.mrf.mxu0
      %v888 = vadd.f32 %v781, %v887
      %v889 = vpop.f32.mrf.mxu0
      %890 = vmatprep.mubr.f32.mxu0 0.0
      %891 = vmatmul.mubr.f32.gmra.mxu0 %v788
      %v892 = vpop.f32.mrf.mxu0
      %v893 = vadd.f32 %v781, %v892
      %v894 = vpop.f32.mrf.mxu0
      %895 = vmatprep.mubr.f32.mxu0 0.0
      %896 = vmatmul.mubr.f32.gmra.mxu0 %v790
      %v897 = vpop.f32.mrf.mxu0
      %v898 = vadd.f32 %v781, %v897
      %v899 = vpop.f32.mrf.mxu0
      %900 = vmatprep.mubr.f32.mxu0 0.0
      %901 = vmatmul.mubr.f32.gmra.mxu0 %v792
      %v902 = vpop.f32.mrf.mxu0
      %v903 = vadd.f32 %v781, %v902
      %v904 = vpop.f32.mrf.mxu0
      %905 = vmatprep.mubr.f32.mxu0 0.0
      %906 = vmatmul.mubr.f32.gmra.mxu0 %v794
      %v907 = vpop.f32.mrf.mxu0
      %v908 = vadd.f32 %v781, %v907
      %v909 = vpop.f32.mrf.mxu0
      %910 = vmatprep.mubr.f32.mxu0 0.0
      %911 = vmatmul.mubr.f32.gmra.mxu0 %v796
      %v912 = vpop.f32.mrf.mxu0
      %v913 = vadd.f32 %v781, %v912
      %v914 = vpop.f32.mrf.mxu0
      %915 = vmatprep.mubr.f32.mxu0 0.0
      %916 = vmatmul.mubr.f32.gmra.mxu0 %v798
      %v917 = vpop.f32.mrf.mxu0
      %v918 = vadd.f32 %v781, %v917
      %v919 = vpop.f32.mrf.mxu0
      %920 = vmatprep.mubr.f32.mxu0 0.0
      %921 = vmatmul.mubr.f32.gmra.mxu0 %v800
      %v922 = vpop.f32.mrf.mxu0
      %v923 = vadd.f32 %v781, %v922
      %v924 = vpop.f32.mrf.mxu0
      %925 = vmatprep.mubr.f32.mxu0 0.0
      %926 = vmatmul.mubr.f32.gmra.mxu0 %v802
      %v927 = vpop.f32.mrf.mxu0
      %v928 = vadd.f32 %v781, %v927
      %v929 = vpop.f32.mrf.mxu0
      %930 = vmatprep.mubr.f32.mxu0 0.0
      %931 = vmatmul.mubr.f32.gmra.mxu0 %v804
      %v932 = vpop.f32.mrf.mxu0
      %v933 = vadd.f32 %v781, %v932
      %v934 = vpop.f32.mrf.mxu0
      %935 = vmatprep.mubr.f32.mxu0 0.0
      %936 = vmatmul.mubr.f32.gmra.mxu0 %v806
      %v937 = vpop.f32.mrf.mxu0
      %v938 = vadd.f32 %v781, %v937
      %v939 = vpop.f32.mrf.mxu0
      %940 = vmatprep.mubr.f32.mxu0 0.0
      %941 = vmatmul.mubr.f32.gmra.mxu0 %v808
      %v942 = vpop.f32.mrf.mxu0
      %v943 = vadd.f32 %v781, %v942
      %v944 = vpop.f32.mrf.mxu0
      %945 = vmatprep.mubr.f32.mxu0 0.0
      %946 = vmatmul.mubr.f32.gmra.mxu0 %v810
      %v947 = vpop.f32.mrf.mxu0
      %v948 = vadd.f32 %v781, %v947
      %v949 = vpop.f32.mrf.mxu0
      %950 = vmatprep.mubr.f32.mxu0 0.0
      %951 = vmatmul.mubr.f32.gmra.mxu0 %v812
      %v952 = vpop.f32.mrf.mxu0
      %v953 = vadd.f32 %v781, %v952
      %v954 = vpop.f32.mrf.mxu0
      %955 = vmatprep.mubr.f32.mxu0 0.0
      %956 = vmatmul.mubr.f32.gmra.mxu0 %v814
      %v957 = vpop.f32.mrf.mxu0
      %v958 = vadd.f32 %v781, %v957
      %v959 = vpop.f32.mrf.mxu0
      %960 = vdwg.mxu0
      %v961 = vld [vmem:[%s2] sm:$0xff]
      %v962 = vld [vmem:[%s2 + $0x8] sm:$0xff]
      %v963 = vld [vmem:[%s2 + $0x10] sm:$0xff]
      %v964 = vld [vmem:[%s2 + $0x18] sm:$0xff]
      %v966 = vsel %vm783, 0.0, 0
      %968 = vmatprep.subr.mxu0 0.0
      %969 = vmatpush1.msra.mxu0 0.0
      %970 = vmatprep.subr.mxu0 0.0
      %971 = vmatpush1.msra.mxu0 0.0
      %972 = vmatprep.subr.mxu0 0.0
      %973 = vmatpush1.msra.mxu0 0.0
      %974 = vmatprep.subr.mxu0 0.0
      %975 = vmatpush1.msra.mxu0 0.0
      %976 = vmatprep.subr.mxu0 0.0
      %977 = vmatpush1.msra.mxu0 0.0
      %978 = vmatprep.subr.mxu0 0.0
      %979 = vmatpush1.msra.mxu0 0.0
      %980 = vmatprep.subr.mxu0 0.0
      %981 = vmatpush1.msra.mxu0 0.0
      %982 = vmatprep.subr.mxu0 0.0
      %983 = vmatpush1.msra.mxu0 0.0
      %984 = vmatprep.subr.mxu0 0.0
      %985 = vmatpush1.msra.mxu0 0.0
      %986 = vmatprep.subr.mxu0 0.0
      %987 = vmatpush1.msra.mxu0 0.0
      %988 = vmatprep.subr.mxu0 0.0
      %989 = vmatpush1.msra.mxu0 0.0
      %990 = vmatprep.subr.mxu0 0.0
      %991 = vmatpush1.msra.mxu0 0.0
      %992 = vmatprep.subr.mxu0 0.0
      %993 = vmatpush1.msra.mxu0 %v964
      %994 = vmatprep.subr.mxu0 0.0
      %995 = vmatpush1.msra.mxu0 %v963
      %996 = vmatprep.subr.mxu0 0.0
      %997 = vmatpush1.msra.mxu0 %v962
      %998 = vmatprep.subr.mxu0 0.0
      %999 = vmatpush1.msra.mxu0 %v961
      %1000 = vmatprep.subr.mxu0 0.0
      %1001 = vmatpush2.msra.mxu0 0.0
      %1002 = vmatprep.subr.mxu0 0.0
      %1003 = vmatpush2.msra.mxu0 0.0
      %1004 = vmatprep.subr.mxu0 0.0
      %1005 = vmatpush2.msra.mxu0 0.0
      %1006 = vmatprep.subr.mxu0 0.0
      %1007 = vmatpush2.msra.mxu0 0.0
      %1008 = vmatprep.subr.mxu0 0.0
      %1009 = vmatpush2.msra.mxu0 0.0
      %1010 = vmatprep.subr.mxu0 0.0
      %1011 = vmatpush2.msra.mxu0 0.0
      %1012 = vmatprep.subr.mxu0 0.0
      %1013 = vmatpush2.msra.mxu0 0.0
      %1014 = vmatprep.subr.mxu0 0.0
      %1015 = vmatpush2.msra.mxu0 0.0
      %1016 = vmatprep.subr.mxu0 0.0
      %1017 = vmatpush2.msra.mxu0 0.0
      %1018 = vmatprep.subr.mxu0 0.0
      %1019 = vmatpush2.msra.mxu0 0.0
      %1020 = vmatprep.subr.mxu0 0.0
      %1021 = vmatpush2.msra.mxu0 0.0
      %1022 = vmatprep.subr.mxu0 0.0
      %1023 = vmatpush2.msra.mxu0 0.0
      %1024 = vmatprep.subr.mxu0 0.0
      %1025 = vmatpush2.msra.mxu0 0.0
      %1026 = vmatprep.subr.mxu0 0.0
      %1027 = vmatpush2.msra.mxu0 0.0
      %1028 = vmatprep.subr.mxu0 0.0
      %1029 = vmatpush2.msra.mxu0 0.0
      %1030 = vmatprep.subr.mxu0 0.0
      %1031 = vmatpush2.msra.mxu0 0.0
      %1032 = vmatprep.mubr.f32.mxu0 0.0
      %1033 = vmatmul.mubr.f32.gmra.mxu0 %v966
      %v1034 = vpop.f32.mrf.mxu0
      %v1035 = vadd.f32 0.0, %v1034
      %v1036 = vpop.f32.mrf.mxu0
      %1037 = vmatprep.mubr.f32.mxu0 0.0
      %1038 = vmatmul.mubr.f32.gmra.mxu0 %v966
      %v1039 = vpop.f32.mrf.mxu0
      %v1040 = vadd.f32 0.0, %v1039
      %v1041 = vpop.f32.mrf.mxu0
      %1042 = vdwg.mxu0
      %v1043 = vadd.f32 %v883, %v1035
      %v1044 = vadd.f32 %v888, %v1040
      %v1045 = vxor.u32 %v1043, 2147483648
      %v1046 = vxor.u32 %v1044, 2147483648
      %v1047 = vmul.f32 %v1045, 1.442695
      %v1048 = vpow.pop %v1047
      %v1049 = vmul.f32 %v1046, 1.442695
      %v1050 = vpow.pop %v1049
      %v1051 = vadd.f32 %v1048, 1.0
      %v1052 = vadd.f32 %v1050, 1.0
      %v1053 = vrcp.pop %v1051
      %v1054 = vmul.f32 1.0, %v1053
      %v1055 = vrcp.pop %v1052
      %v1056 = vmul.f32 1.0, %v1055
      %v1057 = vtanh.pop %v1043
      %v1058 = vtanh.pop %v1044
      %v1059 = vmul.f32 %v1054, 0.0
      %v1060 = vmul.f32 %v1056, 0.0
      %1063 = vrot.lane.b32.xlu0 %v1057, 32
      %v1064 = vpop.permute.xlu0 %1063
      %1065 = vrot.lane.b32.xlu0 %v1058, 32
      %v1066 = vpop.permute.xlu0 %1065
      %v1069 = vmul.f32 %v1054, %v1064
      %v1070 = vmul.f32 %v1056, %v1066
      %1073 = vrot.lane.b32.xlu0 %v1069, 32
      %v1074 = vpop.permute.xlu0 %1073
      %1075 = vrot.lane.b32.xlu0 %v1070, 32
      %v1076 = vpop.permute.xlu0 %1075
      %v1079 = vadd.f32 %v1059, %v1074
      %v1080 = vadd.f32 %v1060, %v1076
      %v1081 = vtanh.pop %v1079
      %v1082 = vtanh.pop %v1080
      %1085 = vrot.lane.b32.xlu0 %v1081, 32
      %v1086 = vpop.permute.xlu0 %1085
      %1087 = vrot.lane.b32.xlu0 %v1082, 32
      %v1088 = vpop.permute.xlu0 %1087
      %v1091 = vmul.f32 %v1054, %v1086
      %v1092 = vmul.f32 %v1056, %v1088
      %1095 = vrot.lane.b32.xlu0 %v1091, 64
      %v1096 = vpop.permute.xlu0 %1095
      %1097 = vrot.lane.b32.xlu0 %v1092, 64
      %v1098 = vpop.permute.xlu0 %1097
      %v1099 = vsel %vm783, %v1096, 0
      %v1101 = vsel %vm783, %v1098, 0
      %1103 = vmatprep.subr.mxu0 0.0
      %1104 = vmatpush1.msra.mxu0 0.0
      %1105 = vmatprep.subr.mxu0 0.0
      %1106 = vmatpush1.msra.mxu0 0.0
      %1107 = vmatprep.subr.mxu0 0.0
      %1108 = vmatpush1.msra.mxu0 0.0
      %1109 = vmatprep.subr.mxu0 0.0
      %1110 = vmatpush1.msra.mxu0 0.0
      %1111 = vmatprep.subr.mxu0 0.0
      %1112 = vmatpush1.msra.mxu0 0.0
      %1113 = vmatprep.subr.mxu0 0.0
      %1114 = vmatpush1.msra.mxu0 0.0
      %1115 = vmatprep.subr.mxu0 0.0
      %1116 = vmatpush1.msra.mxu0 0.0
      %1117 = vmatprep.subr.mxu0 0.0
      %1118 = vmatpush1.msra.mxu0 0.0
      %1119 = vmatprep.subr.mxu0 0.0
      %1120 = vmatpush1.msra.mxu0 0.0
      %1121 = vmatprep.subr.mxu0 0.0
      %1122 = vmatpush1.msra.mxu0 0.0
      %1123 = vmatprep.subr.mxu0 0.0
      %1124 = vmatpush1.msra.mxu0 0.0
      %1125 = vmatprep.subr.mxu0 0.0
      %1126 = vmatpush1.msra.mxu0 0.0
      %1127 = vmatprep.subr.mxu0 0.0
      %1128 = vmatpush1.msra.mxu0 %v964
      %1129 = vmatprep.subr.mxu0 0.0
      %1130 = vmatpush1.msra.mxu0 %v963
      %1131 = vmatprep.subr.mxu0 0.0
      %1132 = vmatpush1.msra.mxu0 %v962
      %1133 = vmatprep.subr.mxu0 0.0
      %1134 = vmatpush1.msra.mxu0 %v961
      %1135 = vmatprep.subr.mxu0 0.0
      %1136 = vmatpush2.msra.mxu0 0.0
      %1137 = vmatprep.subr.mxu0 0.0
      %1138 = vmatpush2.msra.mxu0 0.0
      %1139 = vmatprep.subr.mxu0 0.0
      %1140 = vmatpush2.msra.mxu0 0.0
      %1141 = vmatprep.subr.mxu0 0.0
      %1142 = vmatpush2.msra.mxu0 0.0
      %1143 = vmatprep.subr.mxu0 0.0
      %1144 = vmatpush2.msra.mxu0 0.0
      %1145 = vmatprep.subr.mxu0 0.0
      %1146 = vmatpush2.msra.mxu0 0.0
      %1147 = vmatprep.subr.mxu0 0.0
      %1148 = vmatpush2.msra.mxu0 0.0
      %1149 = vmatprep.subr.mxu0 0.0
      %1150 = vmatpush2.msra.mxu0 0.0
      %1151 = vmatprep.subr.mxu0 0.0
      %1152 = vmatpush2.msra.mxu0 0.0
      %1153 = vmatprep.subr.mxu0 0.0
      %1154 = vmatpush2.msra.mxu0 0.0
      %1155 = vmatprep.subr.mxu0 0.0
      %1156 = vmatpush2.msra.mxu0 0.0
      %1157 = vmatprep.subr.mxu0 0.0
      %1158 = vmatpush2.msra.mxu0 0.0
      %1159 = vmatprep.subr.mxu0 0.0
      %1160 = vmatpush2.msra.mxu0 0.0
      %1161 = vmatprep.subr.mxu0 0.0
      %1162 = vmatpush2.msra.mxu0 0.0
      %1163 = vmatprep.subr.mxu0 0.0
      %1164 = vmatpush2.msra.mxu0 0.0
      %1165 = vmatprep.subr.mxu0 0.0
      %1166 = vmatpush2.msra.mxu0 0.0
      %1167 = vmatprep.mubr.f32.mxu0 0.0
      %1168 = vmatmul.mubr.f32.gmra.mxu0 %v1099
      %v1169 = vpop.f32.mrf.mxu0
      %v1170 = vadd.f32 0.0, %v1169
      %v1171 = vpop.f32.mrf.mxu0
      %1172 = vmatprep.mubr.f32.mxu0 0.0
      %1173 = vmatmul.mubr.f32.gmra.mxu0 %v1101
      %v1174 = vpop.f32.mrf.mxu0
      %v1175 = vadd.f32 0.0, %v1174
      %v1176 = vpop.f32.mrf.mxu0
      %1177 = vdwg.mxu0
      %v1178 = vadd.f32 %v893, %v1170
      %v1179 = vadd.f32 %v898, %v1175
      %v1180 = vxor.u32 %v1178, 2147483648
      %v1181 = vxor.u32 %v1179, 2147483648
      %v1182 = vmul.f32 %v1180, 1.442695
      %v1183 = vpow.pop %v1182
      %v1184 = vmul.f32 %v1181, 1.442695
      %v1185 = vpow.pop %v1184
      %v1186 = vadd.f32 %v1183, 1.0
      %v1187 = vadd.f32 %v1185, 1.0
      %v1188 = vrcp.pop %v1186
      %v1189 = vmul.f32 1.0, %v1188
      %v1190 = vrcp.pop %v1187
      %v1191 = vmul.f32 1.0, %v1190
      %v1192 = vtanh.pop %v1178
      %v1193 = vtanh.pop %v1179
      %v1194 = vmul.f32 %v1189, %v1079
      %v1195 = vmul.f32 %v1191, %v1080
      %1198 = vrot.lane.b32.xlu0 %v1192, 32
      %v1199 = vpop.permute.xlu0 %1198
      %1200 = vrot.lane.b32.xlu0 %v1193, 32
      %v1201 = vpop.permute.xlu0 %1200
      %v1204 = vmul.f32 %v1189, %v1199
      %v1205 = vmul.f32 %v1191, %v1201
      %1208 = vrot.lane.b32.xlu0 %v1204, 32
      %v1209 = vpop.permute.xlu0 %1208
      %1210 = vrot.lane.b32.xlu0 %v1205, 32
      %v1211 = vpop.permute.xlu0 %1210
      %v1214 = vadd.f32 %v1194, %v1209
      %v1215 = vadd.f32 %v1195, %v1211
      %v1216 = vtanh.pop %v1214
      %v1217 = vtanh.pop %v1215
      %1220 = vrot.lane.b32.xlu0 %v1216, 32
      %v1221 = vpop.permute.xlu0 %1220
      %1222 = vrot.lane.b32.xlu0 %v1217, 32
      %v1223 = vpop.permute.xlu0 %1222
      %v1226 = vmul.f32 %v1189, %v1221
      %v1227 = vmul.f32 %v1191, %v1223
      %1230 = vrot.lane.b32.xlu0 %v1226, 64
      %v1231 = vpop.permute.xlu0 %1230
      %1232 = vrot.lane.b32.xlu0 %v1227, 64
      %v1233 = vpop.permute.xlu0 %1232
      %v1234 = vsel %vm783, %v1231, 0
      %v1236 = vsel %vm783, %v1233, 0
      %1238 = vmatprep.subr.mxu0 0.0
      %1239 = vmatpush1.msra.mxu0 0.0
      %1240 = vmatprep.subr.mxu0 0.0
      %1241 = vmatpush1.msra.mxu0 0.0
      %1242 = vmatprep.subr.mxu0 0.0
      %1243 = vmatpush1.msra.mxu0 0.0
      %1244 = vmatprep.subr.mxu0 0.0
      %1245 = vmatpush1.msra.mxu0 0.0
      %1246 = vmatprep.subr.mxu0 0.0
      %1247 = vmatpush1.msra.mxu0 0.0
      %1248 = vmatprep.subr.mxu0 0.0
      %1249 = vmatpush1.msra.mxu0 0.0
      %1250 = vmatprep.subr.mxu0 0.0
      %1251 = vmatpush1.msra.mxu0 0.0
      %1252 = vmatprep.subr.mxu0 0.0
      %1253 = vmatpush1.msra.mxu0 0.0
      %1254 = vmatprep.subr.mxu0 0.0
      %1255 = vmatpush1.msra.mxu0 0.0
      %1256 = vmatprep.subr.mxu0 0.0
      %1257 = vmatpush1.msra.mxu0 0.0
      %1258 = vmatprep.subr.mxu0 0.0
      %1259 = vmatpush1.msra.mxu0 0.0
      %1260 = vmatprep.subr.mxu0 0.0
      %1261 = vmatpush1.msra.mxu0 0.0
      %1262 = vmatprep.subr.mxu0 0.0
      %1263 = vmatpush1.msra.mxu0 %v964
      %1264 = vmatprep.subr.mxu0 0.0
      %1265 = vmatpush1.msra.mxu0 %v963
      %1266 = vmatprep.subr.mxu0 0.0
      %1267 = vmatpush1.msra.mxu0 %v962
      %1268 = vmatprep.subr.mxu0 0.0
      %1269 = vmatpush1.msra.mxu0 %v961
      %1270 = vmatprep.subr.mxu0 0.0
      %1271 = vmatpush2.msra.mxu0 0.0
      %1272 = vmatprep.subr.mxu0 0.0
      %1273 = vmatpush2.msra.mxu0 0.0
      %1274 = vmatprep.subr.mxu0 0.0
      %1275 = vmatpush2.msra.mxu0 0.0
      %1276 = vmatprep.subr.mxu0 0.0
      %1277 = vmatpush2.msra.mxu0 0.0
      %1278 = vmatprep.subr.mxu0 0.0
      %1279 = vmatpush2.msra.mxu0 0.0
      %1280 = vmatprep.subr.mxu0 0.0
      %1281 = vmatpush2.msra.mxu0 0.0
      %1282 = vmatprep.subr.mxu0 0.0
      %1283 = vmatpush2.msra.mxu0 0.0
      %1284 = vmatprep.subr.mxu0 0.0
      %1285 = vmatpush2.msra.mxu0 0.0
      %1286 = vmatprep.subr.mxu0 0.0
      %1287 = vmatpush2.msra.mxu0 0.0
      %1288 = vmatprep.subr.mxu0 0.0
      %1289 = vmatpush2.msra.mxu0 0.0
      %1290 = vmatprep.subr.mxu0 0.0
      %1291 = vmatpush2.msra.mxu0 0.0
      %1292 = vmatprep.subr.mxu0 0.0
      %1293 = vmatpush2.msra.mxu0 0.0
      %1294 = vmatprep.subr.mxu0 0.0
      %1295 = vmatpush2.msra.mxu0 0.0
      %1296 = vmatprep.subr.mxu0 0.0
      %1297 = vmatpush2.msra.mxu0 0.0
      %1298 = vmatprep.subr.mxu0 0.0
      %1299 = vmatpush2.msra.mxu0 0.0
      %1300 = vmatprep.subr.mxu0 0.0
      %1301 = vmatpush2.msra.mxu0 0.0
      %1302 = vmatprep.mubr.f32.mxu0 0.0
      %1303 = vmatmul.mubr.f32.gmra.mxu0 %v1234
      %v1304 = vpop.f32.mrf.mxu0
      %v1305 = vadd.f32 0.0, %v1304
      %v1306 = vpop.f32.mrf.mxu0
      %1307 = vmatprep.mubr.f32.mxu0 0.0
      %1308 = vmatmul.mubr.f32.gmra.mxu0 %v1236
      %v1309 = vpop.f32.mrf.mxu0
      %v1310 = vadd.f32 0.0, %v1309
      %v1311 = vpop.f32.mrf.mxu0
      %1312 = vdwg.mxu0
      %v1313 = vadd.f32 %v903, %v1305
      %v1314 = vadd.f32 %v908, %v1310
      %v1315 = vxor.u32 %v1313, 2147483648
      %v1316 = vxor.u32 %v1314, 2147483648
      %v1317 = vmul.f32 %v1315, 1.442695
      %v1318 = vpow.pop %v1317
      %v1319 = vmul.f32 %v1316, 1.442695
      %v1320 = vpow.pop %v1319
      %v1321 = vadd.f32 %v1318, 1.0
      %v1322 = vadd.f32 %v1320, 1.0
      %v1323 = vrcp.pop %v1321
      %v1324 = vmul.f32 1.0, %v1323
      %v1325 = vrcp.pop %v1322
      %v1326 = vmul.f32 1.0, %v1325
      %v1327 = vtanh.pop %v1313
      %v1328 = vtanh.pop %v1314
      %v1329 = vmul.f32 %v1324, %v1214
      %v1330 = vmul.f32 %v1326, %v1215
      %1333 = vrot.lane.b32.xlu0 %v1327, 32
      %v1334 = vpop.permute.xlu0 %1333
      %1335 = vrot.lane.b32.xlu0 %v1328, 32
      %v1336 = vpop.permute.xlu0 %1335
      %v1339 = vmul.f32 %v1324, %v1334
      %v1340 = vmul.f32 %v1326, %v1336
      %1343 = vrot.lane.b32.xlu0 %v1339, 32
      %v1344 = vpop.permute.xlu0 %1343
      %1345 = vrot.lane.b32.xlu0 %v1340, 32
      %v1346 = vpop.permute.xlu0 %1345
      %v1349 = vadd.f32 %v1329, %v1344
      %v1350 = vadd.f32 %v1330, %v1346
      %v1351 = vtanh.pop %v1349
      %v1352 = vtanh.pop %v1350
      %1355 = vrot.lane.b32.xlu0 %v1351, 32
      %v1356 = vpop.permute.xlu0 %1355
      %1357 = vrot.lane.b32.xlu0 %v1352, 32
      %v1358 = vpop.permute.xlu0 %1357
      %v1361 = vmul.f32 %v1324, %v1356
      %v1362 = vmul.f32 %v1326, %v1358
      %1365 = vrot.lane.b32.xlu0 %v1361, 64
      %v1366 = vpop.permute.xlu0 %1365
      %1367 = vrot.lane.b32.xlu0 %v1362, 64
      %v1368 = vpop.permute.xlu0 %1367
      %v1369 = vsel %vm783, %v1366, 0
      %v1371 = vsel %vm783, %v1368, 0
      %1373 = vmatprep.subr.mxu0 0.0
      %1374 = vmatpush1.msra.mxu0 0.0
      %1375 = vmatprep.subr.mxu0 0.0
      %1376 = vmatpush1.msra.mxu0 0.0
      %1377 = vmatprep.subr.mxu0 0.0
      %1378 = vmatpush1.msra.mxu0 0.0
      %1379 = vmatprep.subr.mxu0 0.0
      %1380 = vmatpush1.msra.mxu0 0.0
      %1381 = vmatprep.subr.mxu0 0.0
      %1382 = vmatpush1.msra.mxu0 0.0
      %1383 = vmatprep.subr.mxu0 0.0
      %1384 = vmatpush1.msra.mxu0 0.0
      %1385 = vmatprep.subr.mxu0 0.0
      %1386 = vmatpush1.msra.mxu0 0.0
      %1387 = vmatprep.subr.mxu0 0.0
      %1388 = vmatpush1.msra.mxu0 0.0
      %1389 = vmatprep.subr.mxu0 0.0
      %1390 = vmatpush1.msra.mxu0 0.0
      %1391 = vmatprep.subr.mxu0 0.0
      %1392 = vmatpush1.msra.mxu0 0.0
      %1393 = vmatprep.subr.mxu0 0.0
      %1394 = vmatpush1.msra.mxu0 0.0
      %1395 = vmatprep.subr.mxu0 0.0
      %1396 = vmatpush1.msra.mxu0 0.0
      %1397 = vmatprep.subr.mxu0 0.0
      %1398 = vmatpush1.msra.mxu0 %v964
      %1399 = vmatprep.subr.mxu0 0.0
      %1400 = vmatpush1.msra.mxu0 %v963
      %1401 = vmatprep.subr.mxu0 0.0
      %1402 = vmatpush1.msra.mxu0 %v962
      %1403 = vmatprep.subr.mxu0 0.0
      %1404 = vmatpush1.msra.mxu0 %v961
      %1405 = vmatprep.subr.mxu0 0.0
      %1406 = vmatpush2.msra.mxu0 0.0
      %1407 = vmatprep.subr.mxu0 0.0
      %1408 = vmatpush2.msra.mxu0 0.0
      %1409 = vmatprep.subr.mxu0 0.0
      %1410 = vmatpush2.msra.mxu0 0.0
      %1411 = vmatprep.subr.mxu0 0.0
      %1412 = vmatpush2.msra.mxu0 0.0
      %1413 = vmatprep.subr.mxu0 0.0
      %1414 = vmatpush2.msra.mxu0 0.0
      %1415 = vmatprep.subr.mxu0 0.0
      %1416 = vmatpush2.msra.mxu0 0.0
      %1417 = vmatprep.subr.mxu0 0.0
      %1418 = vmatpush2.msra.mxu0 0.0
      %1419 = vmatprep.subr.mxu0 0.0
      %1420 = vmatpush2.msra.mxu0 0.0
      %1421 = vmatprep.subr.mxu0 0.0
      %1422 = vmatpush2.msra.mxu0 0.0
      %1423 = vmatprep.subr.mxu0 0.0
      %1424 = vmatpush2.msra.mxu0 0.0
      %1425 = vmatprep.subr.mxu0 0.0
      %1426 = vmatpush2.msra.mxu0 0.0
      %1427 = vmatprep.subr.mxu0 0.0
      %1428 = vmatpush2.msra.mxu0 0.0
      %1429 = vmatprep.subr.mxu0 0.0
      %1430 = vmatpush2.msra.mxu0 0.0
      %1431 = vmatprep.subr.mxu0 0.0
      %1432 = vmatpush2.msra.mxu0 0.0
      %1433 = vmatprep.subr.mxu0 0.0
      %1434 = vmatpush2.msra.mxu0 0.0
      %1435 = vmatprep.subr.mxu0 0.0
      %1436 = vmatpush2.msra.mxu0 0.0
      %1437 = vmatprep.mubr.f32.mxu0 0.0
      %1438 = vmatmul.mubr.f32.gmra.mxu0 %v1369
      %v1439 = vpop.f32.mrf.mxu0
      %v1440 = vadd.f32 0.0, %v1439
      %v1441 = vpop.f32.mrf.mxu0
      %1442 = vmatprep.mubr.f32.mxu0 0.0
      %1443 = vmatmul.mubr.f32.gmra.mxu0 %v1371
      %v1444 = vpop.f32.mrf.mxu0
      %v1445 = vadd.f32 0.0, %v1444
      %v1446 = vpop.f32.mrf.mxu0
      %1447 = vdwg.mxu0
      %v1448 = vadd.f32 %v913, %v1440
      %v1449 = vadd.f32 %v918, %v1445
      %v1450 = vxor.u32 %v1448, 2147483648
      %v1451 = vxor.u32 %v1449, 2147483648
      %v1452 = vmul.f32 %v1450, 1.442695
      %v1453 = vpow.pop %v1452
      %v1454 = vmul.f32 %v1451, 1.442695
      %v1455 = vpow.pop %v1454
      %v1456 = vadd.f32 %v1453, 1.0
      %v1457 = vadd.f32 %v1455, 1.0
      %v1458 = vrcp.pop %v1456
      %v1459 = vmul.f32 1.0, %v1458
      %v1460 = vrcp.pop %v1457
      %v1461 = vmul.f32 1.0, %v1460
      %v1462 = vtanh.pop %v1448
      %v1463 = vtanh.pop %v1449
      %v1464 = vmul.f32 %v1459, %v1349
      %v1465 = vmul.f32 %v1461, %v1350
      %1468 = vrot.lane.b32.xlu0 %v1462, 32
      %v1469 = vpop.permute.xlu0 %1468
      %1470 = vrot.lane.b32.xlu0 %v1463, 32
      %v1471 = vpop.permute.xlu0 %1470
      %v1474 = vmul.f32 %v1459, %v1469
      %v1475 = vmul.f32 %v1461, %v1471
      %1478 = vrot.lane.b32.xlu0 %v1474, 32
      %v1479 = vpop.permute.xlu0 %1478
      %1480 = vrot.lane.b32.xlu0 %v1475, 32
      %v1481 = vpop.permute.xlu0 %1480
      %v1484 = vadd.f32 %v1464, %v1479
      %v1485 = vadd.f32 %v1465, %v1481
      %v1486 = vtanh.pop %v1484
      %v1487 = vtanh.pop %v1485
      %1490 = vrot.lane.b32.xlu0 %v1486, 32
      %v1491 = vpop.permute.xlu0 %1490
      %1492 = vrot.lane.b32.xlu0 %v1487, 32
      %v1493 = vpop.permute.xlu0 %1492
      %v1496 = vmul.f32 %v1459, %v1491
      %v1497 = vmul.f32 %v1461, %v1493
      %1500 = vrot.lane.b32.xlu0 %v1496, 64
      %v1501 = vpop.permute.xlu0 %1500
      %1502 = vrot.lane.b32.xlu0 %v1497, 64
      %v1503 = vpop.permute.xlu0 %1502
      %v1504 = vsel %vm783, %v1501, 0
      %v1506 = vsel %vm783, %v1503, 0
      %1508 = vmatprep.subr.mxu0 0.0
      %1509 = vmatpush1.msra.mxu0 0.0
      %1510 = vmatprep.subr.mxu0 0.0
      %1511 = vmatpush1.msra.mxu0 0.0
      %1512 = vmatprep.subr.mxu0 0.0
      %1513 = vmatpush1.msra.mxu0 0.0
      %1514 = vmatprep.subr.mxu0 0.0
      %1515 = vmatpush1.msra.mxu0 0.0
      %1516 = vmatprep.subr.mxu0 0.0
      %1517 = vmatpush1.msra.mxu0 0.0
      %1518 = vmatprep.subr.mxu0 0.0
      %1519 = vmatpush1.msra.mxu0 0.0
      %1520 = vmatprep.subr.mxu0 0.0
      %1521 = vmatpush1.msra.mxu0 0.0
      %1522 = vmatprep.subr.mxu0 0.0
      %1523 = vmatpush1.msra.mxu0 0.0
      %1524 = vmatprep.subr.mxu0 0.0
      %1525 = vmatpush1.msra.mxu0 0.0
      %1526 = vmatprep.subr.mxu0 0.0
      %1527 = vmatpush1.msra.mxu0 0.0
      %1528 = vmatprep.subr.mxu0 0.0
      %1529 = vmatpush1.msra.mxu0 0.0
      %1530 = vmatprep.subr.mxu0 0.0
      %1531 = vmatpush1.msra.mxu0 0.0
      %1532 = vmatprep.subr.mxu0 0.0
      %1533 = vmatpush1.msra.mxu0 %v964
      %1534 = vmatprep.subr.mxu0 0.0
      %1535 = vmatpush1.msra.mxu0 %v963
      %1536 = vmatprep.subr.mxu0 0.0
      %1537 = vmatpush1.msra.mxu0 %v962
      %1538 = vmatprep.subr.mxu0 0.0
      %1539 = vmatpush1.msra.mxu0 %v961
      %1540 = vmatprep.subr.mxu0 0.0
      %1541 = vmatpush2.msra.mxu0 0.0
      %1542 = vmatprep.subr.mxu0 0.0
      %1543 = vmatpush2.msra.mxu0 0.0
      %1544 = vmatprep.subr.mxu0 0.0
      %1545 = vmatpush2.msra.mxu0 0.0
      %1546 = vmatprep.subr.mxu0 0.0
      %1547 = vmatpush2.msra.mxu0 0.0
      %1548 = vmatprep.subr.mxu0 0.0
      %1549 = vmatpush2.msra.mxu0 0.0
      %1550 = vmatprep.subr.mxu0 0.0
      %1551 = vmatpush2.msra.mxu0 0.0
      %1552 = vmatprep.subr.mxu0 0.0
      %1553 = vmatpush2.msra.mxu0 0.0
      %1554 = vmatprep.subr.mxu0 0.0
      %1555 = vmatpush2.msra.mxu0 0.0
      %1556 = vmatprep.subr.mxu0 0.0
      %1557 = vmatpush2.msra.mxu0 0.0
      %1558 = vmatprep.subr.mxu0 0.0
      %1559 = vmatpush2.msra.mxu0 0.0
      %1560 = vmatprep.subr.mxu0 0.0
      %1561 = vmatpush2.msra.mxu0 0.0
      %1562 = vmatprep.subr.mxu0 0.0
      %1563 = vmatpush2.msra.mxu0 0.0
      %1564 = vmatprep.subr.mxu0 0.0
      %1565 = vmatpush2.msra.mxu0 0.0
      %1566 = vmatprep.subr.mxu0 0.0
      %1567 = vmatpush2.msra.mxu0 0.0
      %1568 = vmatprep.subr.mxu0 0.0
      %1569 = vmatpush2.msra.mxu0 0.0
      %1570 = vmatprep.subr.mxu0 0.0
      %1571 = vmatpush2.msra.mxu0 0.0
      %1572 = vmatprep.mubr.f32.mxu0 0.0
      %1573 = vmatmul.mubr.f32.gmra.mxu0 %v1504
      %v1574 = vpop.f32.mrf.mxu0
      %v1575 = vadd.f32 0.0, %v1574
      %v1576 = vpop.f32.mrf.mxu0
      %1577 = vmatprep.mubr.f32.mxu0 0.0
      %1578 = vmatmul.mubr.f32.gmra.mxu0 %v1506
      %v1579 = vpop.f32.mrf.mxu0
      %v1580 = vadd.f32 0.0, %v1579
      %v1581 = vpop.f32.mrf.mxu0
      %1582 = vdwg.mxu0
      %v1583 = vadd.f32 %v923, %v1575
      %v1584 = vadd.f32 %v928, %v1580
      %v1585 = vxor.u32 %v1583, 2147483648
      %v1586 = vxor.u32 %v1584, 2147483648
      %v1587 = vmul.f32 %v1585, 1.442695
      %v1588 = vpow.pop %v1587
      %v1589 = vmul.f32 %v1586, 1.442695
      %v1590 = vpow.pop %v1589
      %v1591 = vadd.f32 %v1588, 1.0
      %v1592 = vadd.f32 %v1590, 1.0
      %v1593 = vrcp.pop %v1591
      %v1594 = vmul.f32 1.0, %v1593
      %v1595 = vrcp.pop %v1592
      %v1596 = vmul.f32 1.0, %v1595
      %v1597 = vtanh.pop %v1583
      %v1598 = vtanh.pop %v1584
      %v1599 = vmul.f32 %v1594, %v1484
      %v1600 = vmul.f32 %v1596, %v1485
      %1603 = vrot.lane.b32.xlu0 %v1597, 32
      %v1604 = vpop.permute.xlu0 %1603
      %1605 = vrot.lane.b32.xlu0 %v1598, 32
      %v1606 = vpop.permute.xlu0 %1605
      %v1609 = vmul.f32 %v1594, %v1604
      %v1610 = vmul.f32 %v1596, %v1606
      %1613 = vrot.lane.b32.xlu0 %v1609, 32
      %v1614 = vpop.permute.xlu0 %1613
      %1615 = vrot.lane.b32.xlu0 %v1610, 32
      %v1616 = vpop.permute.xlu0 %1615
      %v1619 = vadd.f32 %v1599, %v1614
      %v1620 = vadd.f32 %v1600, %v1616
      %v1621 = vtanh.pop %v1619
      %v1622 = vtanh.pop %v1620
      %1625 = vrot.lane.b32.xlu0 %v1621, 32
      %v1626 = vpop.permute.xlu0 %1625
      %1627 = vrot.lane.b32.xlu0 %v1622, 32
      %v1628 = vpop.permute.xlu0 %1627
      %v1631 = vmul.f32 %v1594, %v1626
      %v1632 = vmul.f32 %v1596, %v1628
      %1635 = vrot.lane.b32.xlu0 %v1631, 64
      %v1636 = vpop.permute.xlu0 %1635
      %1637 = vrot.lane.b32.xlu0 %v1632, 64
      %v1638 = vpop.permute.xlu0 %1637
      %v1639 = vsel %vm783, %v1636, 0
      %v1641 = vsel %vm783, %v1638, 0
      %1643 = vmatprep.subr.mxu0 0.0
      %1644 = vmatpush1.msra.mxu0 0.0
      %1645 = vmatprep.subr.mxu0 0.0
      %1646 = vmatpush1.msra.mxu0 0.0
      %1647 = vmatprep.subr.mxu0 0.0
      %1648 = vmatpush1.msra.mxu0 0.0
      %1649 = vmatprep.subr.mxu0 0.0
      %1650 = vmatpush1.msra.mxu0 0.0
      %1651 = vmatprep.subr.mxu0 0.0
      %1652 = vmatpush1.msra.mxu0 0.0
      %1653 = vmatprep.subr.mxu0 0.0
      %1654 = vmatpush1.msra.mxu0 0.0
      %1655 = vmatprep.subr.mxu0 0.0
      %1656 = vmatpush1.msra.mxu0 0.0
      %1657 = vmatprep.subr.mxu0 0.0
      %1658 = vmatpush1.msra.mxu0 0.0
      %1659 = vmatprep.subr.mxu0 0.0
      %1660 = vmatpush1.msra.mxu0 0.0
      %1661 = vmatprep.subr.mxu0 0.0
      %1662 = vmatpush1.msra.mxu0 0.0
      %1663 = vmatprep.subr.mxu0 0.0
      %1664 = vmatpush1.msra.mxu0 0.0
      %1665 = vmatprep.subr.mxu0 0.0
      %1666 = vmatpush1.msra.mxu0 0.0
      %1667 = vmatprep.subr.mxu0 0.0
      %1668 = vmatpush1.msra.mxu0 %v964
      %1669 = vmatprep.subr.mxu0 0.0
      %1670 = vmatpush1.msra.mxu0 %v963
      %1671 = vmatprep.subr.mxu0 0.0
      %1672 = vmatpush1.msra.mxu0 %v962
      %1673 = vmatprep.subr.mxu0 0.0
      %1674 = vmatpush1.msra.mxu0 %v961
      %1675 = vmatprep.subr.mxu0 0.0
      %1676 = vmatpush2.msra.mxu0 0.0
      %1677 = vmatprep.subr.mxu0 0.0
      %1678 = vmatpush2.msra.mxu0 0.0
      %1679 = vmatprep.subr.mxu0 0.0
      %1680 = vmatpush2.msra.mxu0 0.0
      %1681 = vmatprep.subr.mxu0 0.0
      %1682 = vmatpush2.msra.mxu0 0.0
      %1683 = vmatprep.subr.mxu0 0.0
      %1684 = vmatpush2.msra.mxu0 0.0
      %1685 = vmatprep.subr.mxu0 0.0
      %1686 = vmatpush2.msra.mxu0 0.0
      %1687 = vmatprep.subr.mxu0 0.0
      %1688 = vmatpush2.msra.mxu0 0.0
      %1689 = vmatprep.subr.mxu0 0.0
      %1690 = vmatpush2.msra.mxu0 0.0
      %1691 = vmatprep.subr.mxu0 0.0
      %1692 = vmatpush2.msra.mxu0 0.0
      %1693 = vmatprep.subr.mxu0 0.0
      %1694 = vmatpush2.msra.mxu0 0.0
      %1695 = vmatprep.subr.mxu0 0.0
      %1696 = vmatpush2.msra.mxu0 0.0
      %1697 = vmatprep.subr.mxu0 0.0
      %1698 = vmatpush2.msra.mxu0 0.0
      %1699 = vmatprep.subr.mxu0 0.0
      %1700 = vmatpush2.msra.mxu0 0.0
      %1701 = vmatprep.subr.mxu0 0.0
      %1702 = vmatpush2.msra.mxu0 0.0
      %1703 = vmatprep.subr.mxu0 0.0
      %1704 = vmatpush2.msra.mxu0 0.0
      %1705 = vmatprep.subr.mxu0 0.0
      %1706 = vmatpush2.msra.mxu0 0.0
      %1707 = vmatprep.mubr.f32.mxu0 0.0
      %1708 = vmatmul.mubr.f32.gmra.mxu0 %v1639
      %v1709 = vpop.f32.mrf.mxu0
      %v1710 = vadd.f32 0.0, %v1709
      %v1711 = vpop.f32.mrf.mxu0
      %1712 = vmatprep.mubr.f32.mxu0 0.0
      %1713 = vmatmul.mubr.f32.gmra.mxu0 %v1641
      %v1714 = vpop.f32.mrf.mxu0
      %v1715 = vadd.f32 0.0, %v1714
      %v1716 = vpop.f32.mrf.mxu0
      %1717 = vdwg.mxu0
      %v1718 = vadd.f32 %v933, %v1710
      %v1719 = vadd.f32 %v938, %v1715
      %v1720 = vxor.u32 %v1718, 2147483648
      %v1721 = vxor.u32 %v1719, 2147483648
      %v1722 = vmul.f32 %v1720, 1.442695
      %v1723 = vpow.pop %v1722
      %v1724 = vmul.f32 %v1721, 1.442695
      %v1725 = vpow.pop %v1724
      %v1726 = vadd.f32 %v1723, 1.0
      %v1727 = vadd.f32 %v1725, 1.0
      %v1728 = vrcp.pop %v1726
      %v1729 = vmul.f32 1.0, %v1728
      %v1730 = vrcp.pop %v1727
      %v1731 = vmul.f32 1.0, %v1730
      %v1732 = vtanh.pop %v1718
      %v1733 = vtanh.pop %v1719
      %v1734 = vmul.f32 %v1729, %v1619
      %v1735 = vmul.f32 %v1731, %v1620
      %1738 = vrot.lane.b32.xlu0 %v1732, 32
      %v1739 = vpop.permute.xlu0 %1738
      %1740 = vrot.lane.b32.xlu0 %v1733, 32
      %v1741 = vpop.permute.xlu0 %1740
      %v1744 = vmul.f32 %v1729, %v1739
      %v1745 = vmul.f32 %v1731, %v1741
      %1748 = vrot.lane.b32.xlu0 %v1744, 32
      %v1749 = vpop.permute.xlu0 %1748
      %1750 = vrot.lane.b32.xlu0 %v1745, 32
      %v1751 = vpop.permute.xlu0 %1750
      %v1754 = vadd.f32 %v1734, %v1749
      %v1755 = vadd.f32 %v1735, %v1751
      %v1756 = vtanh.pop %v1754
      %v1757 = vtanh.pop %v1755
      %1760 = vrot.lane.b32.xlu0 %v1756, 32
      %v1761 = vpop.permute.xlu0 %1760
      %1762 = vrot.lane.b32.xlu0 %v1757, 32
      %v1763 = vpop.permute.xlu0 %1762
      %v1766 = vmul.f32 %v1729, %v1761
      %v1767 = vmul.f32 %v1731, %v1763
      %1770 = vrot.lane.b32.xlu0 %v1766, 64
      %v1771 = vpop.permute.xlu0 %1770
      %1772 = vrot.lane.b32.xlu0 %v1767, 64
      %v1773 = vpop.permute.xlu0 %1772
      %v1774 = vsel %vm783, %v1771, 0
      %v1776 = vsel %vm783, %v1773, 0
      %1778 = vmatprep.subr.mxu0 0.0
      %1779 = vmatpush1.msra.mxu0 0.0
      %1780 = vmatprep.subr.mxu0 0.0
      %1781 = vmatpush1.msra.mxu0 0.0
      %1782 = vmatprep.subr.mxu0 0.0
      %1783 = vmatpush1.msra.mxu0 0.0
      %1784 = vmatprep.subr.mxu0 0.0
      %1785 = vmatpush1.msra.mxu0 0.0
      %1786 = vmatprep.subr.mxu0 0.0
      %1787 = vmatpush1.msra.mxu0 0.0
      %1788 = vmatprep.subr.mxu0 0.0
      %1789 = vmatpush1.msra.mxu0 0.0
      %1790 = vmatprep.subr.mxu0 0.0
      %1791 = vmatpush1.msra.mxu0 0.0
      %1792 = vmatprep.subr.mxu0 0.0
      %1793 = vmatpush1.msra.mxu0 0.0
      %1794 = vmatprep.subr.mxu0 0.0
      %1795 = vmatpush1.msra.mxu0 0.0
      %1796 = vmatprep.subr.mxu0 0.0
      %1797 = vmatpush1.msra.mxu0 0.0
      %1798 = vmatprep.subr.mxu0 0.0
      %1799 = vmatpush1.msra.mxu0 0.0
      %1800 = vmatprep.subr.mxu0 0.0
      %1801 = vmatpush1.msra.mxu0 0.0
      %1802 = vmatprep.subr.mxu0 0.0
      %1803 = vmatpush1.msra.mxu0 %v964
      %1804 = vmatprep.subr.mxu0 0.0
      %1805 = vmatpush1.msra.mxu0 %v963
      %1806 = vmatprep.subr.mxu0 0.0
      %1807 = vmatpush1.msra.mxu0 %v962
      %1808 = vmatprep.subr.mxu0 0.0
      %1809 = vmatpush1.msra.mxu0 %v961
      %1810 = vmatprep.subr.mxu0 0.0
      %1811 = vmatpush2.msra.mxu0 0.0
      %1812 = vmatprep.subr.mxu0 0.0
      %1813 = vmatpush2.msra.mxu0 0.0
      %1814 = vmatprep.subr.mxu0 0.0
      %1815 = vmatpush2.msra.mxu0 0.0
      %1816 = vmatprep.subr.mxu0 0.0
      %1817 = vmatpush2.msra.mxu0 0.0
      %1818 = vmatprep.subr.mxu0 0.0
      %1819 = vmatpush2.msra.mxu0 0.0
      %1820 = vmatprep.subr.mxu0 0.0
      %1821 = vmatpush2.msra.mxu0 0.0
      %1822 = vmatprep.subr.mxu0 0.0
      %1823 = vmatpush2.msra.mxu0 0.0
      %1824 = vmatprep.subr.mxu0 0.0
      %1825 = vmatpush2.msra.mxu0 0.0
      %1826 = vmatprep.subr.mxu0 0.0
      %1827 = vmatpush2.msra.mxu0 0.0
      %1828 = vmatprep.subr.mxu0 0.0
      %1829 = vmatpush2.msra.mxu0 0.0
      %1830 = vmatprep.subr.mxu0 0.0
      %1831 = vmatpush2.msra.mxu0 0.0
      %1832 = vmatprep.subr.mxu0 0.0
      %1833 = vmatpush2.msra.mxu0 0.0
      %1834 = vmatprep.subr.mxu0 0.0
      %1835 = vmatpush2.msra.mxu0 0.0
      %1836 = vmatprep.subr.mxu0 0.0
      %1837 = vmatpush2.msra.mxu0 0.0
      %1838 = vmatprep.subr.mxu0 0.0
      %1839 = vmatpush2.msra.mxu0 0.0
      %1840 = vmatprep.subr.mxu0 0.0
      %1841 = vmatpush2.msra.mxu0 0.0
      %1842 = vmatprep.mubr.f32.mxu0 0.0
      %1843 = vmatmul.mubr.f32.gmra.mxu0 %v1774
      %v1844 = vpop.f32.mrf.mxu0
      %v1845 = vadd.f32 0.0, %v1844
      %v1846 = vpop.f32.mrf.mxu0
      %1847 = vmatprep.mubr.f32.mxu0 0.0
      %1848 = vmatmul.mubr.f32.gmra.mxu0 %v1776
      %v1849 = vpop.f32.mrf.mxu0
      %v1850 = vadd.f32 0.0, %v1849
      %v1851 = vpop.f32.mrf.mxu0
      %1852 = vdwg.mxu0
      %v1853 = vadd.f32 %v943, %v1845
      %v1854 = vadd.f32 %v948, %v1850
      %v1855 = vxor.u32 %v1853, 2147483648
      %v1856 = vxor.u32 %v1854, 2147483648
      %v1857 = vmul.f32 %v1855, 1.442695
      %v1858 = vpow.pop %v1857
      %v1859 = vmul.f32 %v1856, 1.442695
      %v1860 = vpow.pop %v1859
      %v1861 = vadd.f32 %v1858, 1.0
      %v1862 = vadd.f32 %v1860, 1.0
      %v1863 = vrcp.pop %v1861
      %v1864 = vmul.f32 1.0, %v1863
      %v1865 = vrcp.pop %v1862
      %v1866 = vmul.f32 1.0, %v1865
      %v1867 = vtanh.pop %v1853
      %v1868 = vtanh.pop %v1854
      %v1869 = vmul.f32 %v1864, %v1754
      %v1870 = vmul.f32 %v1866, %v1755
      %1873 = vrot.lane.b32.xlu0 %v1867, 32
      %v1874 = vpop.permute.xlu0 %1873
      %1875 = vrot.lane.b32.xlu0 %v1868, 32
      %v1876 = vpop.permute.xlu0 %1875
      %v1879 = vmul.f32 %v1864, %v1874
      %v1880 = vmul.f32 %v1866, %v1876
      %1883 = vrot.lane.b32.xlu0 %v1879, 32
      %v1884 = vpop.permute.xlu0 %1883
      %1885 = vrot.lane.b32.xlu0 %v1880, 32
      %v1886 = vpop.permute.xlu0 %1885
      %v1889 = vadd.f32 %v1869, %v1884
      %v1890 = vadd.f32 %v1870, %v1886
      %v1891 = vtanh.pop %v1889
      %v1892 = vtanh.pop %v1890
      %1895 = vrot.lane.b32.xlu0 %v1891, 32
      %v1896 = vpop.permute.xlu0 %1895
      %1897 = vrot.lane.b32.xlu0 %v1892, 32
      %v1898 = vpop.permute.xlu0 %1897
      %v1901 = vmul.f32 %v1864, %v1896
      %v1902 = vmul.f32 %v1866, %v1898
      %1905 = vrot.lane.b32.xlu0 %v1901, 64
      %v1906 = vpop.permute.xlu0 %1905
      %1907 = vrot.lane.b32.xlu0 %v1902, 64
      %v1908 = vpop.permute.xlu0 %1907
      %v1909 = vsel %vm783, %v1906, 0
      %v1911 = vsel %vm783, %v1908, 0
      %1913 = vmatprep.subr.mxu0 0.0
      %1914 = vmatpush1.msra.mxu0 0.0
      %1915 = vmatprep.subr.mxu0 0.0
      %1916 = vmatpush1.msra.mxu0 0.0
      %1917 = vmatprep.subr.mxu0 0.0
      %1918 = vmatpush1.msra.mxu0 0.0
      %1919 = vmatprep.subr.mxu0 0.0
      %1920 = vmatpush1.msra.mxu0 0.0
      %1921 = vmatprep.subr.mxu0 0.0
      %1922 = vmatpush1.msra.mxu0 0.0
      %1923 = vmatprep.subr.mxu0 0.0
      %1924 = vmatpush1.msra.mxu0 0.0
      %1925 = vmatprep.subr.mxu0 0.0
      %1926 = vmatpush1.msra.mxu0 0.0
      %1927 = vmatprep.subr.mxu0 0.0
      %1928 = vmatpush1.msra.mxu0 0.0
      %1929 = vmatprep.subr.mxu0 0.0
      %1930 = vmatpush1.msra.mxu0 0.0
      %1931 = vmatprep.subr.mxu0 0.0
      %1932 = vmatpush1.msra.mxu0 0.0
      %1933 = vmatprep.subr.mxu0 0.0
      %1934 = vmatpush1.msra.mxu0 0.0
      %1935 = vmatprep.subr.mxu0 0.0
      %1936 = vmatpush1.msra.mxu0 0.0
      %1937 = vmatprep.subr.mxu0 0.0
      %1938 = vmatpush1.msra.mxu0 %v964
      %1939 = vmatprep.subr.mxu0 0.0
      %1940 = vmatpush1.msra.mxu0 %v963
      %1941 = vmatprep.subr.mxu0 0.0
      %1942 = vmatpush1.msra.mxu0 %v962
      %1943 = vmatprep.subr.mxu0 0.0
      %1944 = vmatpush1.msra.mxu0 %v961
      %1945 = vmatprep.subr.mxu0 0.0
      %1946 = vmatpush2.msra.mxu0 0.0
      %1947 = vmatprep.subr.mxu0 0.0
      %1948 = vmatpush2.msra.mxu0 0.0
      %1949 = vmatprep.subr.mxu0 0.0
      %1950 = vmatpush2.msra.mxu0 0.0
      %1951 = vmatprep.subr.mxu0 0.0
      %1952 = vmatpush2.msra.mxu0 0.0
      %1953 = vmatprep.subr.mxu0 0.0
      %1954 = vmatpush2.msra.mxu0 0.0
      %1955 = vmatprep.subr.mxu0 0.0
      %1956 = vmatpush2.msra.mxu0 0.0
      %1957 = vmatprep.subr.mxu0 0.0
      %1958 = vmatpush2.msra.mxu0 0.0
      %1959 = vmatprep.subr.mxu0 0.0
      %1960 = vmatpush2.msra.mxu0 0.0
      %1961 = vmatprep.subr.mxu0 0.0
      %1962 = vmatpush2.msra.mxu0 0.0
      %1963 = vmatprep.subr.mxu0 0.0
      %1964 = vmatpush2.msra.mxu0 0.0
      %1965 = vmatprep.subr.mxu0 0.0
      %1966 = vmatpush2.msra.mxu0 0.0
      %1967 = vmatprep.subr.mxu0 0.0
      %1968 = vmatpush2.msra.mxu0 0.0
      %1969 = vmatprep.subr.mxu0 0.0
      %1970 = vmatpush2.msra.mxu0 0.0
      %1971 = vmatprep.subr.mxu0 0.0
      %1972 = vmatpush2.msra.mxu0 0.0
      %1973 = vmatprep.subr.mxu0 0.0
      %1974 = vmatpush2.msra.mxu0 0.0
      %1975 = vmatprep.subr.mxu0 0.0
      %1976 = vmatpush2.msra.mxu0 0.0
      %1977 = vmatprep.mubr.f32.mxu0 0.0
      %1978 = vmatmul.mubr.f32.gmra.mxu0 %v1909
      %v1979 = vpop.f32.mrf.mxu0
      %v1980 = vadd.f32 0.0, %v1979
      %v1981 = vpop.f32.mrf.mxu0
      %1982 = vmatprep.mubr.f32.mxu0 0.0
      %1983 = vmatmul.mubr.f32.gmra.mxu0 %v1911
      %v1984 = vpop.f32.mrf.mxu0
      %v1985 = vadd.f32 0.0, %v1984
      %v1986 = vpop.f32.mrf.mxu0
      %1987 = vdwg.mxu0
      %v1988 = vadd.f32 %v953, %v1980
      %v1989 = vadd.f32 %v958, %v1985
      %v1990 = vxor.u32 %v1988, 2147483648
      %v1991 = vxor.u32 %v1989, 2147483648
      %v1992 = vmul.f32 %v1990, 1.442695
      %v1993 = vpow.pop %v1992
      %v1994 = vmul.f32 %v1991, 1.442695
      %v1995 = vpow.pop %v1994
      %v1996 = vadd.f32 %v1993, 1.0
      %v1997 = vadd.f32 %v1995, 1.0
      %v1998 = vrcp.pop %v1996
      %v1999 = vmul.f32 1.0, %v1998
      %v2000 = vrcp.pop %v1997
      %v2001 = vmul.f32 1.0, %v2000
      %v2002 = vtanh.pop %v1988
      %v2003 = vtanh.pop %v1989
      %v2004 = vmul.f32 %v1999, %v1889
      %v2005 = vmul.f32 %v2001, %v1890
      %2008 = vrot.lane.b32.xlu0 %v2002, 32
      %v2009 = vpop.permute.xlu0 %2008
      %2010 = vrot.lane.b32.xlu0 %v2003, 32
      %v2011 = vpop.permute.xlu0 %2010
      %v2014 = vmul.f32 %v1999, %v2009
      %v2015 = vmul.f32 %v2001, %v2011
      %2018 = vrot.lane.b32.xlu0 %v2014, 32
      %v2019 = vpop.permute.xlu0 %2018
      %2020 = vrot.lane.b32.xlu0 %v2015, 32
      %v2021 = vpop.permute.xlu0 %2020
      %v2024 = vadd.f32 %v2004, %v2019
      %v2025 = vadd.f32 %v2005, %v2021
      %v2026 = vtanh.pop %v2024
      %v2027 = vtanh.pop %v2025
      %2030 = vrot.lane.b32.xlu0 %v2026, 32
      %v2031 = vpop.permute.xlu0 %2030
      %2032 = vrot.lane.b32.xlu0 %v2027, 32
      %v2033 = vpop.permute.xlu0 %2032
      %v2036 = vmul.f32 %v1999, %v2031
      %v2037 = vmul.f32 %v2001, %v2033
      %v2038 = vld [vmem:[%s4] sm:$0xff]
      %v2039 = vld [vmem:[%s4 + $0x8] sm:$0xff]
      %v2040 = vld [vmem:[%s4 + $0x10] sm:$0xff]
      %v2041 = vld [vmem:[%s4 + $0x18] sm:$0xff]
      %v2042 = vld [vmem:[%s6] sm:$0x1]
      %v2044 = vlaneseq
      %v2045 = vshrl.u32 %v2044, 7
      %v2046 = vsub.s32 0, %v2045
      %v2047 = vrot.slane %v2042, %v2046
      %2051 = vrot.lane.b32.xlu0 %v2036, 64
      %v2052 = vpop.permute.xlu0 %2051
      %2053 = vrot.lane.b32.xlu0 %v2037, 64
      %v2054 = vpop.permute.xlu0 %2053
      %v2055 = vsel %vm783, %v2052, 0
      %v2057 = vsel %vm783, %v2054, 0
      %2059 = vmatprep.subr.mxu0 0.0
      %2060 = vmatpush1.msra.mxu0 0.0
      %2061 = vmatprep.subr.mxu0 0.0
      %2062 = vmatpush1.msra.mxu0 0.0
      %2063 = vmatprep.subr.mxu0 0.0
      %2064 = vmatpush1.msra.mxu0 0.0
      %2065 = vmatprep.subr.mxu0 0.0
      %2066 = vmatpush1.msra.mxu0 0.0
      %2067 = vmatprep.subr.mxu0 0.0
      %2068 = vmatpush1.msra.mxu0 0.0
      %2069 = vmatprep.subr.mxu0 0.0
      %2070 = vmatpush1.msra.mxu0 0.0
      %2071 = vmatprep.subr.mxu0 0.0
      %2072 = vmatpush1.msra.mxu0 0.0
      %2073 = vmatprep.subr.mxu0 0.0
      %2074 = vmatpush1.msra.mxu0 0.0
      %2075 = vmatprep.subr.mxu0 0.0
      %2076 = vmatpush1.msra.mxu0 0.0
      %2077 = vmatprep.subr.mxu0 0.0
      %2078 = vmatpush1.msra.mxu0 0.0
      %2079 = vmatprep.subr.mxu0 0.0
      %2080 = vmatpush1.msra.mxu0 0.0
      %2081 = vmatprep.subr.mxu0 0.0
      %2082 = vmatpush1.msra.mxu0 0.0
      %2083 = vmatprep.subr.mxu0 0.0
      %2084 = vmatpush1.msra.mxu0 %v2041
      %2085 = vmatprep.subr.mxu0 0.0
      %2086 = vmatpush1.msra.mxu0 %v2040
      %2087 = vmatprep.subr.mxu0 0.0
      %2088 = vmatpush1.msra.mxu0 %v2039
      %2089 = vmatprep.subr.mxu0 0.0
      %2090 = vmatpush1.msra.mxu0 %v2038
      %2091 = vmatprep.subr.mxu0 0.0
      %2092 = vmatpush2.msra.mxu0 0.0
      %2093 = vmatprep.subr.mxu0 0.0
      %2094 = vmatpush2.msra.mxu0 0.0
      %2095 = vmatprep.subr.mxu0 0.0
      %2096 = vmatpush2.msra.mxu0 0.0
      %2097 = vmatprep.subr.mxu0 0.0
      %2098 = vmatpush2.msra.mxu0 0.0
      %2099 = vmatprep.subr.mxu0 0.0
      %2100 = vmatpush2.msra.mxu0 0.0
      %2101 = vmatprep.subr.mxu0 0.0
      %2102 = vmatpush2.msra.mxu0 0.0
      %2103 = vmatprep.subr.mxu0 0.0
      %2104 = vmatpush2.msra.mxu0 0.0
      %2105 = vmatprep.subr.mxu0 0.0
      %2106 = vmatpush2.msra.mxu0 0.0
      %2107 = vmatprep.subr.mxu0 0.0
      %2108 = vmatpush2.msra.mxu0 0.0
      %2109 = vmatprep.subr.mxu0 0.0
      %2110 = vmatpush2.msra.mxu0 0.0
      %2111 = vmatprep.subr.mxu0 0.0
      %2112 = vmatpush2.msra.mxu0 0.0
      %2113 = vmatprep.subr.mxu0 0.0
      %2114 = vmatpush2.msra.mxu0 0.0
      %2115 = vmatprep.subr.mxu0 0.0
      %2116 = vmatpush2.msra.mxu0 0.0
      %2117 = vmatprep.subr.mxu0 0.0
      %2118 = vmatpush2.msra.mxu0 0.0
      %2119 = vmatprep.subr.mxu0 0.0
      %2120 = vmatpush2.msra.mxu0 0.0
      %2121 = vmatprep.subr.mxu0 0.0
      %2122 = vmatpush2.msra.mxu0 0.0
      %2123 = vmatprep.mubr.f32.mxu0 0.0
      %2124 = vmatmul.mubr.f32.gmra.mxu0 %v1099
      %v2125 = vpop.f32.mrf.mxu0
      %v2126 = vadd.f32 %v2047, %v2125
      %v2127 = vpop.f32.mrf.mxu0
      %2128 = vmatprep.mubr.f32.mxu0 0.0
      %2129 = vmatmul.mubr.f32.gmra.mxu0 %v1101
      %v2130 = vpop.f32.mrf.mxu0
      %v2131 = vadd.f32 %v2047, %v2130
      %v2132 = vpop.f32.mrf.mxu0
      %2133 = vmatprep.mubr.f32.mxu0 0.0
      %2134 = vmatmul.mubr.f32.gmra.mxu0 %v1234
      %v2135 = vpop.f32.mrf.mxu0
      %v2136 = vadd.f32 %v2047, %v2135
      %v2137 = vpop.f32.mrf.mxu0
      %2138 = vmatprep.mubr.f32.mxu0 0.0
      %2139 = vmatmul.mubr.f32.gmra.mxu0 %v1236
      %v2140 = vpop.f32.mrf.mxu0
      %v2141 = vadd.f32 %v2047, %v2140
      %v2142 = vpop.f32.mrf.mxu0
      %2143 = vmatprep.mubr.f32.mxu0 0.0
      %2144 = vmatmul.mubr.f32.gmra.mxu0 %v1369
      %v2145 = vpop.f32.mrf.mxu0
      %v2146 = vadd.f32 %v2047, %v2145
      %v2147 = vpop.f32.mrf.mxu0
      %2148 = vmatprep.mubr.f32.mxu0 0.0
      %2149 = vmatmul.mubr.f32.gmra.mxu0 %v1371
      %v2150 = vpop.f32.mrf.mxu0
      %v2151 = vadd.f32 %v2047, %v2150
      %v2152 = vpop.f32.mrf.mxu0
      %2153 = vmatprep.mubr.f32.mxu0 0.0
      %2154 = vmatmul.mubr.f32.gmra.mxu0 %v1504
      %v2155 = vpop.f32.mrf.mxu0
      %v2156 = vadd.f32 %v2047, %v2155
      %v2157 = vpop.f32.mrf.mxu0
      %2158 = vmatprep.mubr.f32.mxu0 0.0
      %2159 = vmatmul.mubr.f32.gmra.mxu0 %v1506
      %v2160 = vpop.f32.mrf.mxu0
      %v2161 = vadd.f32 %v2047, %v2160
      %v2162 = vpop.f32.mrf.mxu0
      %2163 = vmatprep.mubr.f32.mxu0 0.0
      %2164 = vmatmul.mubr.f32.gmra.mxu0 %v1639
      %v2165 = vpop.f32.mrf.mxu0
      %v2166 = vadd.f32 %v2047, %v2165
      %v2167 = vpop.f32.mrf.mxu0
      %2168 = vmatprep.mubr.f32.mxu0 0.0
      %2169 = vmatmul.mubr.f32.gmra.mxu0 %v1641
      %v2170 = vpop.f32.mrf.mxu0
      %v2171 = vadd.f32 %v2047, %v2170
      %v2172 = vpop.f32.mrf.mxu0
      %2173 = vmatprep.mubr.f32.mxu0 0.0
      %2174 = vmatmul.mubr.f32.gmra.mxu0 %v1774
      %v2175 = vpop.f32.mrf.mxu0
      %v2176 = vadd.f32 %v2047, %v2175
      %v2177 = vpop.f32.mrf.mxu0
      %2178 = vmatprep.mubr.f32.mxu0 0.0
      %2179 = vmatmul.mubr.f32.gmra.mxu0 %v1776
      %v2180 = vpop.f32.mrf.mxu0
      %v2181 = vadd.f32 %v2047, %v2180
      %v2182 = vpop.f32.mrf.mxu0
      %2183 = vmatprep.mubr.f32.mxu0 0.0
      %2184 = vmatmul.mubr.f32.gmra.mxu0 %v1909
      %v2185 = vpop.f32.mrf.mxu0
      %v2186 = vadd.f32 %v2047, %v2185
      %v2187 = vpop.f32.mrf.mxu0
      %2188 = vmatprep.mubr.f32.mxu0 0.0
      %2189 = vmatmul.mubr.f32.gmra.mxu0 %v1911
      %v2190 = vpop.f32.mrf.mxu0
      %v2191 = vadd.f32 %v2047, %v2190
      %v2192 = vpop.f32.mrf.mxu0
      %2193 = vmatprep.mubr.f32.mxu0 0.0
      %2194 = vmatmul.mubr.f32.gmra.mxu0 %v2055
      %v2195 = vpop.f32.mrf.mxu0
      %v2196 = vadd.f32 %v2047, %v2195
      %v2197 = vpop.f32.mrf.mxu0
      %2198 = vmatprep.mubr.f32.mxu0 0.0
      %2199 = vmatmul.mubr.f32.gmra.mxu0 %v2057
      %v2200 = vpop.f32.mrf.mxu0
      %v2201 = vadd.f32 %v2047, %v2200
      %v2202 = vpop.f32.mrf.mxu0
      %2203 = vdwg.mxu0
      %v2204 = vld [vmem:[%s5] sm:$0xff]
      %v2205 = vld [vmem:[%s5 + $0x8] sm:$0xff]
      %v2206 = vld [vmem:[%s5 + $0x10] sm:$0xff]
      %v2207 = vld [vmem:[%s5 + $0x18] sm:$0xff]
      %2208 = vmatprep.subr.mxu0 0.0
      %2209 = vmatpush1.msra.mxu0 0.0
      %2210 = vmatprep.subr.mxu0 0.0
      %2211 = vmatpush1.msra.mxu0 0.0
      %2212 = vmatprep.subr.mxu0 0.0
      %2213 = vmatpush1.msra.mxu0 0.0
      %2214 = vmatprep.subr.mxu0 0.0
      %2215 = vmatpush1.msra.mxu0 0.0
      %2216 = vmatprep.subr.mxu0 0.0
      %2217 = vmatpush1.msra.mxu0 0.0
      %2218 = vmatprep.subr.mxu0 0.0
      %2219 = vmatpush1.msra.mxu0 0.0
      %2220 = vmatprep.subr.mxu0 0.0
      %2221 = vmatpush1.msra.mxu0 0.0
      %2222 = vmatprep.subr.mxu0 0.0
      %2223 = vmatpush1.msra.mxu0 0.0
      %2224 = vmatprep.subr.mxu0 0.0
      %2225 = vmatpush1.msra.mxu0 0.0
      %2226 = vmatprep.subr.mxu0 0.0
      %2227 = vmatpush1.msra.mxu0 0.0
      %2228 = vmatprep.subr.mxu0 0.0
      %2229 = vmatpush1.msra.mxu0 0.0
      %2230 = vmatprep.subr.mxu0 0.0
      %2231 = vmatpush1.msra.mxu0 0.0
      %2232 = vmatprep.subr.mxu0 0.0
      %2233 = vmatpush1.msra.mxu0 %v2207
      %2234 = vmatprep.subr.mxu0 0.0
      %2235 = vmatpush1.msra.mxu0 %v2206
      %2236 = vmatprep.subr.mxu0 0.0
      %2237 = vmatpush1.msra.mxu0 %v2205
      %2238 = vmatprep.subr.mxu0 0.0
      %2239 = vmatpush1.msra.mxu0 %v2204
      %2240 = vmatprep.subr.mxu0 0.0
      %2241 = vmatpush2.msra.mxu0 0.0
      %2242 = vmatprep.subr.mxu0 0.0
      %2243 = vmatpush2.msra.mxu0 0.0
      %2244 = vmatprep.subr.mxu0 0.0
      %2245 = vmatpush2.msra.mxu0 0.0
      %2246 = vmatprep.subr.mxu0 0.0
      %2247 = vmatpush2.msra.mxu0 0.0
      %2248 = vmatprep.subr.mxu0 0.0
      %2249 = vmatpush2.msra.mxu0 0.0
      %2250 = vmatprep.subr.mxu0 0.0
      %2251 = vmatpush2.msra.mxu0 0.0
      %2252 = vmatprep.subr.mxu0 0.0
      %2253 = vmatpush2.msra.mxu0 0.0
      %2254 = vmatprep.subr.mxu0 0.0
      %2255 = vmatpush2.msra.mxu0 0.0
      %2256 = vmatprep.subr.mxu0 0.0
      %2257 = vmatpush2.msra.mxu0 0.0
      %2258 = vmatprep.subr.mxu0 0.0
      %2259 = vmatpush2.msra.mxu0 0.0
      %2260 = vmatprep.subr.mxu0 0.0
      %2261 = vmatpush2.msra.mxu0 0.0
      %2262 = vmatprep.subr.mxu0 0.0
      %2263 = vmatpush2.msra.mxu0 0.0
      %2264 = vmatprep.subr.mxu0 0.0
      %2265 = vmatpush2.msra.mxu0 0.0
      %2266 = vmatprep.subr.mxu0 0.0
      %2267 = vmatpush2.msra.mxu0 0.0
      %2268 = vmatprep.subr.mxu0 0.0
      %2269 = vmatpush2.msra.mxu0 0.0
      %2270 = vmatprep.subr.mxu0 0.0
      %2271 = vmatpush2.msra.mxu0 0.0
      %2272 = vmatprep.mubr.f32.mxu0 0.0
      %2273 = vmatmul.mubr.f32.gmra.mxu0 %v966
      %v2274 = vpop.f32.mrf.mxu0
      %v2275 = vadd.f32 0.0, %v2274
      %v2276 = vpop.f32.mrf.mxu0
      %2277 = vmatprep.mubr.f32.mxu0 0.0
      %2278 = vmatmul.mubr.f32.gmra.mxu0 %v966
      %v2279 = vpop.f32.mrf.mxu0
      %v2280 = vadd.f32 0.0, %v2279
      %v2281 = vpop.f32.mrf.mxu0
      %2282 = vdwg.mxu0
      %v2283 = vadd.f32 %v2126, %v2275
      %v2284 = vadd.f32 %v2131, %v2280
      %v2285 = vxor.u32 %v2283, 2147483648
      %v2286 = vxor.u32 %v2284, 2147483648
      %v2287 = vmul.f32 %v2285, 1.442695
      %v2288 = vpow.pop %v2287
      %v2289 = vmul.f32 %v2286, 1.442695
      %v2290 = vpow.pop %v2289
      %v2291 = vadd.f32 %v2288, 1.0
      %v2292 = vadd.f32 %v2290, 1.0
      %v2293 = vrcp.pop %v2291
      %v2294 = vmul.f32 1.0, %v2293
      %v2295 = vrcp.pop %v2292
      %v2296 = vmul.f32 1.0, %v2295
      %v2297 = vtanh.pop %v2283
      %v2298 = vtanh.pop %v2284
      %v2299 = vmul.f32 %v2294, 0.0
      %v2300 = vmul.f32 %v2296, 0.0
      %2303 = vrot.lane.b32.xlu0 %v2297, 32
      %v2304 = vpop.permute.xlu0 %2303
      %2305 = vrot.lane.b32.xlu0 %v2298, 32
      %v2306 = vpop.permute.xlu0 %2305
      %v2309 = vmul.f32 %v2294, %v2304
      %v2310 = vmul.f32 %v2296, %v2306
      %2313 = vrot.lane.b32.xlu0 %v2309, 32
      %v2314 = vpop.permute.xlu0 %2313
      %2315 = vrot.lane.b32.xlu0 %v2310, 32
      %v2316 = vpop.permute.xlu0 %2315
      %v2319 = vadd.f32 %v2299, %v2314
      %v2320 = vadd.f32 %v2300, %v2316
      %v2321 = vtanh.pop %v2319
      %v2322 = vtanh.pop %v2320
      %2325 = vrot.lane.b32.xlu0 %v2321, 32
      %v2326 = vpop.permute.xlu0 %2325
      %2327 = vrot.lane.b32.xlu0 %v2322, 32
      %v2328 = vpop.permute.xlu0 %2327
      %v2331 = vmul.f32 %v2294, %v2326
      %v2332 = vmul.f32 %v2296, %v2328
      %2335 = vrot.lane.b32.xlu0 %v2331, 64
      %v2336 = vpop.permute.xlu0 %2335
      %2337 = vrot.lane.b32.xlu0 %v2332, 64
      %v2338 = vpop.permute.xlu0 %2337
      %v2339 = vsel %vm783, %v2336, 0
      %v2341 = vsel %vm783, %v2338, 0
      %2343 = vmatprep.subr.mxu0 0.0
      %2344 = vmatpush1.msra.mxu0 0.0
      %2345 = vmatprep.subr.mxu0 0.0
      %2346 = vmatpush1.msra.mxu0 0.0
      %2347 = vmatprep.subr.mxu0 0.0
      %2348 = vmatpush1.msra.mxu0 0.0
      %2349 = vmatprep.subr.mxu0 0.0
      %2350 = vmatpush1.msra.mxu0 0.0
      %2351 = vmatprep.subr.mxu0 0.0
      %2352 = vmatpush1.msra.mxu0 0.0
      %2353 = vmatprep.subr.mxu0 0.0
      %2354 = vmatpush1.msra.mxu0 0.0
      %2355 = vmatprep.subr.mxu0 0.0
      %2356 = vmatpush1.msra.mxu0 0.0
      %2357 = vmatprep.subr.mxu0 0.0
      %2358 = vmatpush1.msra.mxu0 0.0
      %2359 = vmatprep.subr.mxu0 0.0
      %2360 = vmatpush1.msra.mxu0 0.0
      %2361 = vmatprep.subr.mxu0 0.0
      %2362 = vmatpush1.msra.mxu0 0.0
      %2363 = vmatprep.subr.mxu0 0.0
      %2364 = vmatpush1.msra.mxu0 0.0
      %2365 = vmatprep.subr.mxu0 0.0
      %2366 = vmatpush1.msra.mxu0 0.0
      %2367 = vmatprep.subr.mxu0 0.0
      %2368 = vmatpush1.msra.mxu0 %v2207
      %2369 = vmatprep.subr.mxu0 0.0
      %2370 = vmatpush1.msra.mxu0 %v2206
      %2371 = vmatprep.subr.mxu0 0.0
      %2372 = vmatpush1.msra.mxu0 %v2205
      %2373 = vmatprep.subr.mxu0 0.0
      %2374 = vmatpush1.msra.mxu0 %v2204
      %2375 = vmatprep.subr.mxu0 0.0
      %2376 = vmatpush2.msra.mxu0 0.0
      %2377 = vmatprep.subr.mxu0 0.0
      %2378 = vmatpush2.msra.mxu0 0.0
      %2379 = vmatprep.subr.mxu0 0.0
      %2380 = vmatpush2.msra.mxu0 0.0
      %2381 = vmatprep.subr.mxu0 0.0
      %2382 = vmatpush2.msra.mxu0 0.0
      %2383 = vmatprep.subr.mxu0 0.0
      %2384 = vmatpush2.msra.mxu0 0.0
      %2385 = vmatprep.subr.mxu0 0.0
      %2386 = vmatpush2.msra.mxu0 0.0
      %2387 = vmatprep.subr.mxu0 0.0
      %2388 = vmatpush2.msra.mxu0 0.0
      %2389 = vmatprep.subr.mxu0 0.0
      %2390 = vmatpush2.msra.mxu0 0.0
      %2391 = vmatprep.subr.mxu0 0.0
      %2392 = vmatpush2.msra.mxu0 0.0
      %2393 = vmatprep.subr.mxu0 0.0
      %2394 = vmatpush2.msra.mxu0 0.0
      %2395 = vmatprep.subr.mxu0 0.0
      %2396 = vmatpush2.msra.mxu0 0.0
      %2397 = vmatprep.subr.mxu0 0.0
      %2398 = vmatpush2.msra.mxu0 0.0
      %2399 = vmatprep.subr.mxu0 0.0
      %2400 = vmatpush2.msra.mxu0 0.0
      %2401 = vmatprep.subr.mxu0 0.0
      %2402 = vmatpush2.msra.mxu0 0.0
      %2403 = vmatprep.subr.mxu0 0.0
      %2404 = vmatpush2.msra.mxu0 0.0
      %2405 = vmatprep.subr.mxu0 0.0
      %2406 = vmatpush2.msra.mxu0 0.0
      %2407 = vmatprep.mubr.f32.mxu0 0.0
      %2408 = vmatmul.mubr.f32.gmra.mxu0 %v2339
      %v2409 = vpop.f32.mrf.mxu0
      %v2410 = vadd.f32 0.0, %v2409
      %v2411 = vpop.f32.mrf.mxu0
      %2412 = vmatprep.mubr.f32.mxu0 0.0
      %2413 = vmatmul.mubr.f32.gmra.mxu0 %v2341
      %v2414 = vpop.f32.mrf.mxu0
      %v2415 = vadd.f32 0.0, %v2414
      %v2416 = vpop.f32.mrf.mxu0
      %2417 = vdwg.mxu0
      %v2418 = vadd.f32 %v2136, %v2410
      %v2419 = vadd.f32 %v2141, %v2415
      %v2420 = vxor.u32 %v2418, 2147483648
      %v2421 = vxor.u32 %v2419, 2147483648
      %v2422 = vmul.f32 %v2420, 1.442695
      %v2423 = vpow.pop %v2422
      %v2424 = vmul.f32 %v2421, 1.442695
      %v2425 = vpow.pop %v2424
      %v2426 = vadd.f32 %v2423, 1.0
      %v2427 = vadd.f32 %v2425, 1.0
      %v2428 = vrcp.pop %v2426
      %v2429 = vmul.f32 1.0, %v2428
      %v2430 = vrcp.pop %v2427
      %v2431 = vmul.f32 1.0, %v2430
      %v2432 = vtanh.pop %v2418
      %v2433 = vtanh.pop %v2419
      %v2434 = vmul.f32 %v2429, %v2319
      %v2435 = vmul.f32 %v2431, %v2320
      %2438 = vrot.lane.b32.xlu0 %v2432, 32
      %v2439 = vpop.permute.xlu0 %2438
      %2440 = vrot.lane.b32.xlu0 %v2433, 32
      %v2441 = vpop.permute.xlu0 %2440
      %v2444 = vmul.f32 %v2429, %v2439
      %v2445 = vmul.f32 %v2431, %v2441
      %2448 = vrot.lane.b32.xlu0 %v2444, 32
      %v2449 = vpop.permute.xlu0 %2448
      %2450 = vrot.lane.b32.xlu0 %v2445, 32
      %v2451 = vpop.permute.xlu0 %2450
      %v2454 = vadd.f32 %v2434, %v2449
      %v2455 = vadd.f32 %v2435, %v2451
      %v2456 = vtanh.pop %v2454
      %v2457 = vtanh.pop %v2455
      %2460 = vrot.lane.b32.xlu0 %v2456, 32
      %v2461 = vpop.permute.xlu0 %2460
      %2462 = vrot.lane.b32.xlu0 %v2457, 32
      %v2463 = vpop.permute.xlu0 %2462
      %v2466 = vmul.f32 %v2429, %v2461
      %v2467 = vmul.f32 %v2431, %v2463
      %2470 = vrot.lane.b32.xlu0 %v2466, 64
      %v2471 = vpop.permute.xlu0 %2470
      %2472 = vrot.lane.b32.xlu0 %v2467, 64
      %v2473 = vpop.permute.xlu0 %2472
      %v2474 = vsel %vm783, %v2471, 0
      %v2476 = vsel %vm783, %v2473, 0
      %2478 = vmatprep.subr.mxu0 0.0
      %2479 = vmatpush1.msra.mxu0 0.0
      %2480 = vmatprep.subr.mxu0 0.0
      %2481 = vmatpush1.msra.mxu0 0.0
      %2482 = vmatprep.subr.mxu0 0.0
      %2483 = vmatpush1.msra.mxu0 0.0
      %2484 = vmatprep.subr.mxu0 0.0
      %2485 = vmatpush1.msra.mxu0 0.0
      %2486 = vmatprep.subr.mxu0 0.0
      %2487 = vmatpush1.msra.mxu0 0.0
      %2488 = vmatprep.subr.mxu0 0.0
      %2489 = vmatpush1.msra.mxu0 0.0
      %2490 = vmatprep.subr.mxu0 0.0
      %2491 = vmatpush1.msra.mxu0 0.0
      %2492 = vmatprep.subr.mxu0 0.0
      %2493 = vmatpush1.msra.mxu0 0.0
      %2494 = vmatprep.subr.mxu0 0.0
      %2495 = vmatpush1.msra.mxu0 0.0
      %2496 = vmatprep.subr.mxu0 0.0
      %2497 = vmatpush1.msra.mxu0 0.0
      %2498 = vmatprep.subr.mxu0 0.0
      %2499 = vmatpush1.msra.mxu0 0.0
      %2500 = vmatprep.subr.mxu0 0.0
      %2501 = vmatpush1.msra.mxu0 0.0
      %2502 = vmatprep.subr.mxu0 0.0
      %2503 = vmatpush1.msra.mxu0 %v2207
      %2504 = vmatprep.subr.mxu0 0.0
      %2505 = vmatpush1.msra.mxu0 %v2206
      %2506 = vmatprep.subr.mxu0 0.0
      %2507 = vmatpush1.msra.mxu0 %v2205
      %2508 = vmatprep.subr.mxu0 0.0
      %2509 = vmatpush1.msra.mxu0 %v2204
      %2510 = vmatprep.subr.mxu0 0.0
      %2511 = vmatpush2.msra.mxu0 0.0
      %2512 = vmatprep.subr.mxu0 0.0
      %2513 = vmatpush2.msra.mxu0 0.0
      %2514 = vmatprep.subr.mxu0 0.0
      %2515 = vmatpush2.msra.mxu0 0.0
      %2516 = vmatprep.subr.mxu0 0.0
      %2517 = vmatpush2.msra.mxu0 0.0
      %2518 = vmatprep.subr.mxu0 0.0
      %2519 = vmatpush2.msra.mxu0 0.0
      %2520 = vmatprep.subr.mxu0 0.0
      %2521 = vmatpush2.msra.mxu0 0.0
      %2522 = vmatprep.subr.mxu0 0.0
      %2523 = vmatpush2.msra.mxu0 0.0
      %2524 = vmatprep.subr.mxu0 0.0
      %2525 = vmatpush2.msra.mxu0 0.0
      %2526 = vmatprep.subr.mxu0 0.0
      %2527 = vmatpush2.msra.mxu0 0.0
      %2528 = vmatprep.subr.mxu0 0.0
      %2529 = vmatpush2.msra.mxu0 0.0
      %2530 = vmatprep.subr.mxu0 0.0
      %2531 = vmatpush2.msra.mxu0 0.0
      %2532 = vmatprep.subr.mxu0 0.0
      %2533 = vmatpush2.msra.mxu0 0.0
      %2534 = vmatprep.subr.mxu0 0.0
      %2535 = vmatpush2.msra.mxu0 0.0
      %2536 = vmatprep.subr.mxu0 0.0
      %2537 = vmatpush2.msra.mxu0 0.0
      %2538 = vmatprep.subr.mxu0 0.0
      %2539 = vmatpush2.msra.mxu0 0.0
      %2540 = vmatprep.subr.mxu0 0.0
      %2541 = vmatpush2.msra.mxu0 0.0
      %2542 = vmatprep.mubr.f32.mxu0 0.0
      %2543 = vmatmul.mubr.f32.gmra.mxu0 %v2474
      %v2544 = vpop.f32.mrf.mxu0
      %v2545 = vadd.f32 0.0, %v2544
      %v2546 = vpop.f32.mrf.mxu0
      %2547 = vmatprep.mubr.f32.mxu0 0.0
      %2548 = vmatmul.mubr.f32.gmra.mxu0 %v2476
      %v2549 = vpop.f32.mrf.mxu0
      %v2550 = vadd.f32 0.0, %v2549
      %v2551 = vpop.f32.mrf.mxu0
      %2552 = vdwg.mxu0
      %v2553 = vadd.f32 %v2146, %v2545
      %v2554 = vadd.f32 %v2151, %v2550
      %v2555 = vxor.u32 %v2553, 2147483648
      %v2556 = vxor.u32 %v2554, 2147483648
      %v2557 = vmul.f32 %v2555, 1.442695
      %v2558 = vpow.pop %v2557
      %v2559 = vmul.f32 %v2556, 1.442695
      %v2560 = vpow.pop %v2559
      %v2561 = vadd.f32 %v2558, 1.0
      %v2562 = vadd.f32 %v2560, 1.0
      %v2563 = vrcp.pop %v2561
      %v2564 = vmul.f32 1.0, %v2563
      %v2565 = vrcp.pop %v2562
      %v2566 = vmul.f32 1.0, %v2565
      %v2567 = vtanh.pop %v2553
      %v2568 = vtanh.pop %v2554
      %v2569 = vmul.f32 %v2564, %v2454
      %v2570 = vmul.f32 %v2566, %v2455
      %2573 = vrot.lane.b32.xlu0 %v2567, 32
      %v2574 = vpop.permute.xlu0 %2573
      %2575 = vrot.lane.b32.xlu0 %v2568, 32
      %v2576 = vpop.permute.xlu0 %2575
      %v2579 = vmul.f32 %v2564, %v2574
      %v2580 = vmul.f32 %v2566, %v2576
      %2583 = vrot.lane.b32.xlu0 %v2579, 32
      %v2584 = vpop.permute.xlu0 %2583
      %2585 = vrot.lane.b32.xlu0 %v2580, 32
      %v2586 = vpop.permute.xlu0 %2585
      %v2589 = vadd.f32 %v2569, %v2584
      %v2590 = vadd.f32 %v2570, %v2586
      %v2591 = vtanh.pop %v2589
      %v2592 = vtanh.pop %v2590
      %2595 = vrot.lane.b32.xlu0 %v2591, 32
      %v2596 = vpop.permute.xlu0 %2595
      %2597 = vrot.lane.b32.xlu0 %v2592, 32
      %v2598 = vpop.permute.xlu0 %2597
      %v2601 = vmul.f32 %v2564, %v2596
      %v2602 = vmul.f32 %v2566, %v2598
      %2605 = vrot.lane.b32.xlu0 %v2601, 64
      %v2606 = vpop.permute.xlu0 %2605
      %2607 = vrot.lane.b32.xlu0 %v2602, 64
      %v2608 = vpop.permute.xlu0 %2607
      %v2609 = vsel %vm783, %v2606, 0
      %v2611 = vsel %vm783, %v2608, 0
      %2613 = vmatprep.subr.mxu0 0.0
      %2614 = vmatpush1.msra.mxu0 0.0
      %2615 = vmatprep.subr.mxu0 0.0
      %2616 = vmatpush1.msra.mxu0 0.0
      %2617 = vmatprep.subr.mxu0 0.0
      %2618 = vmatpush1.msra.mxu0 0.0
      %2619 = vmatprep.subr.mxu0 0.0
      %2620 = vmatpush1.msra.mxu0 0.0
      %2621 = vmatprep.subr.mxu0 0.0
      %2622 = vmatpush1.msra.mxu0 0.0
      %2623 = vmatprep.subr.mxu0 0.0
      %2624 = vmatpush1.msra.mxu0 0.0
      %2625 = vmatprep.subr.mxu0 0.0
      %2626 = vmatpush1.msra.mxu0 0.0
      %2627 = vmatprep.subr.mxu0 0.0
      %2628 = vmatpush1.msra.mxu0 0.0
      %2629 = vmatprep.subr.mxu0 0.0
      %2630 = vmatpush1.msra.mxu0 0.0
      %2631 = vmatprep.subr.mxu0 0.0
      %2632 = vmatpush1.msra.mxu0 0.0
      %2633 = vmatprep.subr.mxu0 0.0
      %2634 = vmatpush1.msra.mxu0 0.0
      %2635 = vmatprep.subr.mxu0 0.0
      %2636 = vmatpush1.msra.mxu0 0.0
      %2637 = vmatprep.subr.mxu0 0.0
      %2638 = vmatpush1.msra.mxu0 %v2207
      %2639 = vmatprep.subr.mxu0 0.0
      %2640 = vmatpush1.msra.mxu0 %v2206
      %2641 = vmatprep.subr.mxu0 0.0
      %2642 = vmatpush1.msra.mxu0 %v2205
      %2643 = vmatprep.subr.mxu0 0.0
      %2644 = vmatpush1.msra.mxu0 %v2204
      %2645 = vmatprep.subr.mxu0 0.0
      %2646 = vmatpush2.msra.mxu0 0.0
      %2647 = vmatprep.subr.mxu0 0.0
      %2648 = vmatpush2.msra.mxu0 0.0
      %2649 = vmatprep.subr.mxu0 0.0
      %2650 = vmatpush2.msra.mxu0 0.0
      %2651 = vmatprep.subr.mxu0 0.0
      %2652 = vmatpush2.msra.mxu0 0.0
      %2653 = vmatprep.subr.mxu0 0.0
      %2654 = vmatpush2.msra.mxu0 0.0
      %2655 = vmatprep.subr.mxu0 0.0
      %2656 = vmatpush2.msra.mxu0 0.0
      %2657 = vmatprep.subr.mxu0 0.0
      %2658 = vmatpush2.msra.mxu0 0.0
      %2659 = vmatprep.subr.mxu0 0.0
      %2660 = vmatpush2.msra.mxu0 0.0
      %2661 = vmatprep.subr.mxu0 0.0
      %2662 = vmatpush2.msra.mxu0 0.0
      %2663 = vmatprep.subr.mxu0 0.0
      %2664 = vmatpush2.msra.mxu0 0.0
      %2665 = vmatprep.subr.mxu0 0.0
      %2666 = vmatpush2.msra.mxu0 0.0
      %2667 = vmatprep.subr.mxu0 0.0
      %2668 = vmatpush2.msra.mxu0 0.0
      %2669 = vmatprep.subr.mxu0 0.0
      %2670 = vmatpush2.msra.mxu0 0.0
      %2671 = vmatprep.subr.mxu0 0.0
      %2672 = vmatpush2.msra.mxu0 0.0
      %2673 = vmatprep.subr.mxu0 0.0
      %2674 = vmatpush2.msra.mxu0 0.0
      %2675 = vmatprep.subr.mxu0 0.0
      %2676 = vmatpush2.msra.mxu0 0.0
      %2677 = vmatprep.mubr.f32.mxu0 0.0
      %2678 = vmatmul.mubr.f32.gmra.mxu0 %v2609
      %v2679 = vpop.f32.mrf.mxu0
      %v2680 = vadd.f32 0.0, %v2679
      %v2681 = vpop.f32.mrf.mxu0
      %2682 = vmatprep.mubr.f32.mxu0 0.0
      %2683 = vmatmul.mubr.f32.gmra.mxu0 %v2611
      %v2684 = vpop.f32.mrf.mxu0
      %v2685 = vadd.f32 0.0, %v2684
      %v2686 = vpop.f32.mrf.mxu0
      %2687 = vdwg.mxu0
      %v2688 = vadd.f32 %v2156, %v2680
      %v2689 = vadd.f32 %v2161, %v2685
      %v2690 = vxor.u32 %v2688, 2147483648
      %v2691 = vxor.u32 %v2689, 2147483648
      %v2692 = vmul.f32 %v2690, 1.442695
      %v2693 = vpow.pop %v2692
      %v2694 = vmul.f32 %v2691, 1.442695
      %v2695 = vpow.pop %v2694
      %v2696 = vadd.f32 %v2693, 1.0
      %v2697 = vadd.f32 %v2695, 1.0
      %v2698 = vrcp.pop %v2696
      %v2699 = vmul.f32 1.0, %v2698
      %v2700 = vrcp.pop %v2697
      %v2701 = vmul.f32 1.0, %v2700
      %v2702 = vtanh.pop %v2688
      %v2703 = vtanh.pop %v2689
      %v2704 = vmul.f32 %v2699, %v2589
      %v2705 = vmul.f32 %v2701, %v2590
      %2708 = vrot.lane.b32.xlu0 %v2702, 32
      %v2709 = vpop.permute.xlu0 %2708
      %2710 = vrot.lane.b32.xlu0 %v2703, 32
      %v2711 = vpop.permute.xlu0 %2710
      %v2714 = vmul.f32 %v2699, %v2709
      %v2715 = vmul.f32 %v2701, %v2711
      %2718 = vrot.lane.b32.xlu0 %v2714, 32
      %v2719 = vpop.permute.xlu0 %2718
      %2720 = vrot.lane.b32.xlu0 %v2715, 32
      %v2721 = vpop.permute.xlu0 %2720
      %v2724 = vadd.f32 %v2704, %v2719
      %v2725 = vadd.f32 %v2705, %v2721
      %v2726 = vtanh.pop %v2724
      %v2727 = vtanh.pop %v2725
      %2730 = vrot.lane.b32.xlu0 %v2726, 32
      %v2731 = vpop.permute.xlu0 %2730
      %2732 = vrot.lane.b32.xlu0 %v2727, 32
      %v2733 = vpop.permute.xlu0 %2732
      %v2736 = vmul.f32 %v2699, %v2731
      %v2737 = vmul.f32 %v2701, %v2733
      %2740 = vrot.lane.b32.xlu0 %v2736, 64
      %v2741 = vpop.permute.xlu0 %2740
      %2742 = vrot.lane.b32.xlu0 %v2737, 64
      %v2743 = vpop.permute.xlu0 %2742
      %v2744 = vsel %vm783, %v2741, 0
      %v2746 = vsel %vm783, %v2743, 0
      %2748 = vmatprep.subr.mxu0 0.0
      %2749 = vmatpush1.msra.mxu0 0.0
      %2750 = vmatprep.subr.mxu0 0.0
      %2751 = vmatpush1.msra.mxu0 0.0
      %2752 = vmatprep.subr.mxu0 0.0
      %2753 = vmatpush1.msra.mxu0 0.0
      %2754 = vmatprep.subr.mxu0 0.0
      %2755 = vmatpush1.msra.mxu0 0.0
      %2756 = vmatprep.subr.mxu0 0.0
      %2757 = vmatpush1.msra.mxu0 0.0
      %2758 = vmatprep.subr.mxu0 0.0
      %2759 = vmatpush1.msra.mxu0 0.0
      %2760 = vmatprep.subr.mxu0 0.0
      %2761 = vmatpush1.msra.mxu0 0.0
      %2762 = vmatprep.subr.mxu0 0.0
      %2763 = vmatpush1.msra.mxu0 0.0
      %2764 = vmatprep.subr.mxu0 0.0
      %2765 = vmatpush1.msra.mxu0 0.0
      %2766 = vmatprep.subr.mxu0 0.0
      %2767 = vmatpush1.msra.mxu0 0.0
      %2768 = vmatprep.subr.mxu0 0.0
      %2769 = vmatpush1.msra.mxu0 0.0
      %2770 = vmatprep.subr.mxu0 0.0
      %2771 = vmatpush1.msra.mxu0 0.0
      %2772 = vmatprep.subr.mxu0 0.0
      %2773 = vmatpush1.msra.mxu0 %v2207
      %2774 = vmatprep.subr.mxu0 0.0
      %2775 = vmatpush1.msra.mxu0 %v2206
      %2776 = vmatprep.subr.mxu0 0.0
      %2777 = vmatpush1.msra.mxu0 %v2205
      %2778 = vmatprep.subr.mxu0 0.0
      %2779 = vmatpush1.msra.mxu0 %v2204
      %2780 = vmatprep.subr.mxu0 0.0
      %2781 = vmatpush2.msra.mxu0 0.0
      %2782 = vmatprep.subr.mxu0 0.0
      %2783 = vmatpush2.msra.mxu0 0.0
      %2784 = vmatprep.subr.mxu0 0.0
      %2785 = vmatpush2.msra.mxu0 0.0
      %2786 = vmatprep.subr.mxu0 0.0
      %2787 = vmatpush2.msra.mxu0 0.0
      %2788 = vmatprep.subr.mxu0 0.0
      %2789 = vmatpush2.msra.mxu0 0.0
      %2790 = vmatprep.subr.mxu0 0.0
      %2791 = vmatpush2.msra.mxu0 0.0
      %2792 = vmatprep.subr.mxu0 0.0
      %2793 = vmatpush2.msra.mxu0 0.0
      %2794 = vmatprep.subr.mxu0 0.0
      %2795 = vmatpush2.msra.mxu0 0.0
      %2796 = vmatprep.subr.mxu0 0.0
      %2797 = vmatpush2.msra.mxu0 0.0
      %2798 = vmatprep.subr.mxu0 0.0
      %2799 = vmatpush2.msra.mxu0 0.0
      %2800 = vmatprep.subr.mxu0 0.0
      %2801 = vmatpush2.msra.mxu0 0.0
      %2802 = vmatprep.subr.mxu0 0.0
      %2803 = vmatpush2.msra.mxu0 0.0
      %2804 = vmatprep.subr.mxu0 0.0
      %2805 = vmatpush2.msra.mxu0 0.0
      %2806 = vmatprep.subr.mxu0 0.0
      %2807 = vmatpush2.msra.mxu0 0.0
      %2808 = vmatprep.subr.mxu0 0.0
      %2809 = vmatpush2.msra.mxu0 0.0
      %2810 = vmatprep.subr.mxu0 0.0
      %2811 = vmatpush2.msra.mxu0 0.0
      %2812 = vmatprep.mubr.f32.mxu0 0.0
      %2813 = vmatmul.mubr.f32.gmra.mxu0 %v2744
      %v2814 = vpop.f32.mrf.mxu0
      %v2815 = vadd.f32 0.0, %v2814
      %v2816 = vpop.f32.mrf.mxu0
      %2817 = vmatprep.mubr.f32.mxu0 0.0
      %2818 = vmatmul.mubr.f32.gmra.mxu0 %v2746
      %v2819 = vpop.f32.mrf.mxu0
      %v2820 = vadd.f32 0.0, %v2819
      %v2821 = vpop.f32.mrf.mxu0
      %2822 = vdwg.mxu0
      %v2823 = vadd.f32 %v2166, %v2815
      %v2824 = vadd.f32 %v2171, %v2820
      %v2825 = vxor.u32 %v2823, 2147483648
      %v2826 = vxor.u32 %v2824, 2147483648
      %v2827 = vmul.f32 %v2825, 1.442695
      %v2828 = vpow.pop %v2827
      %v2829 = vmul.f32 %v2826, 1.442695
      %v2830 = vpow.pop %v2829
      %v2831 = vadd.f32 %v2828, 1.0
      %v2832 = vadd.f32 %v2830, 1.0
      %v2833 = vrcp.pop %v2831
      %v2834 = vmul.f32 1.0, %v2833
      %v2835 = vrcp.pop %v2832
      %v2836 = vmul.f32 1.0, %v2835
      %v2837 = vtanh.pop %v2823
      %v2838 = vtanh.pop %v2824
      %v2839 = vmul.f32 %v2834, %v2724
      %v2840 = vmul.f32 %v2836, %v2725
      %2843 = vrot.lane.b32.xlu0 %v2837, 32
      %v2844 = vpop.permute.xlu0 %2843
      %2845 = vrot.lane.b32.xlu0 %v2838, 32
      %v2846 = vpop.permute.xlu0 %2845
      %v2849 = vmul.f32 %v2834, %v2844
      %v2850 = vmul.f32 %v2836, %v2846
      %2853 = vrot.lane.b32.xlu0 %v2849, 32
      %v2854 = vpop.permute.xlu0 %2853
      %2855 = vrot.lane.b32.xlu0 %v2850, 32
      %v2856 = vpop.permute.xlu0 %2855
      %v2859 = vadd.f32 %v2839, %v2854
      %v2860 = vadd.f32 %v2840, %v2856
      %v2861 = vtanh.pop %v2859
      %v2862 = vtanh.pop %v2860
      %2865 = vrot.lane.b32.xlu0 %v2861, 32
      %v2866 = vpop.permute.xlu0 %2865
      %2867 = vrot.lane.b32.xlu0 %v2862, 32
      %v2868 = vpop.permute.xlu0 %2867
      %v2871 = vmul.f32 %v2834, %v2866
      %v2872 = vmul.f32 %v2836, %v2868
      %2875 = vrot.lane.b32.xlu0 %v2871, 64
      %v2876 = vpop.permute.xlu0 %2875
      %2877 = vrot.lane.b32.xlu0 %v2872, 64
      %v2878 = vpop.permute.xlu0 %2877
      %v2879 = vsel %vm783, %v2876, 0
      %v2881 = vsel %vm783, %v2878, 0
      %2883 = vmatprep.subr.mxu0 0.0
      %2884 = vmatpush1.msra.mxu0 0.0
      %2885 = vmatprep.subr.mxu0 0.0
      %2886 = vmatpush1.msra.mxu0 0.0
      %2887 = vmatprep.subr.mxu0 0.0
      %2888 = vmatpush1.msra.mxu0 0.0
      %2889 = vmatprep.subr.mxu0 0.0
      %2890 = vmatpush1.msra.mxu0 0.0
      %2891 = vmatprep.subr.mxu0 0.0
      %2892 = vmatpush1.msra.mxu0 0.0
      %2893 = vmatprep.subr.mxu0 0.0
      %2894 = vmatpush1.msra.mxu0 0.0
      %2895 = vmatprep.subr.mxu0 0.0
      %2896 = vmatpush1.msra.mxu0 0.0
      %2897 = vmatprep.subr.mxu0 0.0
      %2898 = vmatpush1.msra.mxu0 0.0
      %2899 = vmatprep.subr.mxu0 0.0
      %2900 = vmatpush1.msra.mxu0 0.0
      %2901 = vmatprep.subr.mxu0 0.0
      %2902 = vmatpush1.msra.mxu0 0.0
      %2903 = vmatprep.subr.mxu0 0.0
      %2904 = vmatpush1.msra.mxu0 0.0
      %2905 = vmatprep.subr.mxu0 0.0
      %2906 = vmatpush1.msra.mxu0 0.0
      %2907 = vmatprep.subr.mxu0 0.0
      %2908 = vmatpush1.msra.mxu0 %v2207
      %2909 = vmatprep.subr.mxu0 0.0
      %2910 = vmatpush1.msra.mxu0 %v2206
      %2911 = vmatprep.subr.mxu0 0.0
      %2912 = vmatpush1.msra.mxu0 %v2205
      %2913 = vmatprep.subr.mxu0 0.0
      %2914 = vmatpush1.msra.mxu0 %v2204
      %2915 = vmatprep.subr.mxu0 0.0
      %2916 = vmatpush2.msra.mxu0 0.0
      %2917 = vmatprep.subr.mxu0 0.0
      %2918 = vmatpush2.msra.mxu0 0.0
      %2919 = vmatprep.subr.mxu0 0.0
      %2920 = vmatpush2.msra.mxu0 0.0
      %2921 = vmatprep.subr.mxu0 0.0
      %2922 = vmatpush2.msra.mxu0 0.0
      %2923 = vmatprep.subr.mxu0 0.0
      %2924 = vmatpush2.msra.mxu0 0.0
      %2925 = vmatprep.subr.mxu0 0.0
      %2926 = vmatpush2.msra.mxu0 0.0
      %2927 = vmatprep.subr.mxu0 0.0
      %2928 = vmatpush2.msra.mxu0 0.0
      %2929 = vmatprep.subr.mxu0 0.0
      %2930 = vmatpush2.msra.mxu0 0.0
      %2931 = vmatprep.subr.mxu0 0.0
      %2932 = vmatpush2.msra.mxu0 0.0
      %2933 = vmatprep.subr.mxu0 0.0
      %2934 = vmatpush2.msra.mxu0 0.0
      %2935 = vmatprep.subr.mxu0 0.0
      %2936 = vmatpush2.msra.mxu0 0.0
      %2937 = vmatprep.subr.mxu0 0.0
      %2938 = vmatpush2.msra.mxu0 0.0
      %2939 = vmatprep.subr.mxu0 0.0
      %2940 = vmatpush2.msra.mxu0 0.0
      %2941 = vmatprep.subr.mxu0 0.0
      %2942 = vmatpush2.msra.mxu0 0.0
      %2943 = vmatprep.subr.mxu0 0.0
      %2944 = vmatpush2.msra.mxu0 0.0
      %2945 = vmatprep.subr.mxu0 0.0
      %2946 = vmatpush2.msra.mxu0 0.0
      %2947 = vmatprep.mubr.f32.mxu0 0.0
      %2948 = vmatmul.mubr.f32.gmra.mxu0 %v2879
      %v2949 = vpop.f32.mrf.mxu0
      %v2950 = vadd.f32 0.0, %v2949
      %v2951 = vpop.f32.mrf.mxu0
      %2952 = vmatprep.mubr.f32.mxu0 0.0
      %2953 = vmatmul.mubr.f32.gmra.mxu0 %v2881
      %v2954 = vpop.f32.mrf.mxu0
      %v2955 = vadd.f32 0.0, %v2954
      %v2956 = vpop.f32.mrf.mxu0
      %2957 = vdwg.mxu0
      %v2958 = vadd.f32 %v2176, %v2950
      %v2959 = vadd.f32 %v2181, %v2955
      %v2960 = vxor.u32 %v2958, 2147483648
      %v2961 = vxor.u32 %v2959, 2147483648
      %v2962 = vmul.f32 %v2960, 1.442695
      %v2963 = vpow.pop %v2962
      %v2964 = vmul.f32 %v2961, 1.442695
      %v2965 = vpow.pop %v2964
      %v2966 = vadd.f32 %v2963, 1.0
      %v2967 = vadd.f32 %v2965, 1.0
      %v2968 = vrcp.pop %v2966
      %v2969 = vmul.f32 1.0, %v2968
      %v2970 = vrcp.pop %v2967
      %v2971 = vmul.f32 1.0, %v2970
      %v2972 = vtanh.pop %v2958
      %v2973 = vtanh.pop %v2959
      %v2974 = vmul.f32 %v2969, %v2859
      %v2975 = vmul.f32 %v2971, %v2860
      %2978 = vrot.lane.b32.xlu0 %v2972, 32
      %v2979 = vpop.permute.xlu0 %2978
      %2980 = vrot.lane.b32.xlu0 %v2973, 32
      %v2981 = vpop.permute.xlu0 %2980
      %v2984 = vmul.f32 %v2969, %v2979
      %v2985 = vmul.f32 %v2971, %v2981
      %2988 = vrot.lane.b32.xlu0 %v2984, 32
      %v2989 = vpop.permute.xlu0 %2988
      %2990 = vrot.lane.b32.xlu0 %v2985, 32
      %v2991 = vpop.permute.xlu0 %2990
      %v2994 = vadd.f32 %v2974, %v2989
      %v2995 = vadd.f32 %v2975, %v2991
      %v2996 = vtanh.pop %v2994
      %v2997 = vtanh.pop %v2995
      %3000 = vrot.lane.b32.xlu0 %v2996, 32
      %v3001 = vpop.permute.xlu0 %3000
      %3002 = vrot.lane.b32.xlu0 %v2997, 32
      %v3003 = vpop.permute.xlu0 %3002
      %v3006 = vmul.f32 %v2969, %v3001
      %v3007 = vmul.f32 %v2971, %v3003
      %3010 = vrot.lane.b32.xlu0 %v3006, 64
      %v3011 = vpop.permute.xlu0 %3010
      %3012 = vrot.lane.b32.xlu0 %v3007, 64
      %v3013 = vpop.permute.xlu0 %3012
      %v3014 = vsel %vm783, %v3011, 0
      %v3016 = vsel %vm783, %v3013, 0
      %3018 = vmatprep.subr.mxu0 0.0
      %3019 = vmatpush1.msra.mxu0 0.0
      %3020 = vmatprep.subr.mxu0 0.0
      %3021 = vmatpush1.msra.mxu0 0.0
      %3022 = vmatprep.subr.mxu0 0.0
      %3023 = vmatpush1.msra.mxu0 0.0
      %3024 = vmatprep.subr.mxu0 0.0
      %3025 = vmatpush1.msra.mxu0 0.0
      %3026 = vmatprep.subr.mxu0 0.0
      %3027 = vmatpush1.msra.mxu0 0.0
      %3028 = vmatprep.subr.mxu0 0.0
      %3029 = vmatpush1.msra.mxu0 0.0
      %3030 = vmatprep.subr.mxu0 0.0
      %3031 = vmatpush1.msra.mxu0 0.0
      %3032 = vmatprep.subr.mxu0 0.0
      %3033 = vmatpush1.msra.mxu0 0.0
      %3034 = vmatprep.subr.mxu0 0.0
      %3035 = vmatpush1.msra.mxu0 0.0
      %3036 = vmatprep.subr.mxu0 0.0
      %3037 = vmatpush1.msra.mxu0 0.0
      %3038 = vmatprep.subr.mxu0 0.0
      %3039 = vmatpush1.msra.mxu0 0.0
      %3040 = vmatprep.subr.mxu0 0.0
      %3041 = vmatpush1.msra.mxu0 0.0
      %3042 = vmatprep.subr.mxu0 0.0
      %3043 = vmatpush1.msra.mxu0 %v2207
      %3044 = vmatprep.subr.mxu0 0.0
      %3045 = vmatpush1.msra.mxu0 %v2206
      %3046 = vmatprep.subr.mxu0 0.0
      %3047 = vmatpush1.msra.mxu0 %v2205
      %3048 = vmatprep.subr.mxu0 0.0
      %3049 = vmatpush1.msra.mxu0 %v2204
      %3050 = vmatprep.subr.mxu0 0.0
      %3051 = vmatpush2.msra.mxu0 0.0
      %3052 = vmatprep.subr.mxu0 0.0
      %3053 = vmatpush2.msra.mxu0 0.0
      %3054 = vmatprep.subr.mxu0 0.0
      %3055 = vmatpush2.msra.mxu0 0.0
      %3056 = vmatprep.subr.mxu0 0.0
      %3057 = vmatpush2.msra.mxu0 0.0
      %3058 = vmatprep.subr.mxu0 0.0
      %3059 = vmatpush2.msra.mxu0 0.0
      %3060 = vmatprep.subr.mxu0 0.0
      %3061 = vmatpush2.msra.mxu0 0.0
      %3062 = vmatprep.subr.mxu0 0.0
      %3063 = vmatpush2.msra.mxu0 0.0
      %3064 = vmatprep.subr.mxu0 0.0
      %3065 = vmatpush2.msra.mxu0 0.0
      %3066 = vmatprep.subr.mxu0 0.0
      %3067 = vmatpush2.msra.mxu0 0.0
      %3068 = vmatprep.subr.mxu0 0.0
      %3069 = vmatpush2.msra.mxu0 0.0
      %3070 = vmatprep.subr.mxu0 0.0
      %3071 = vmatpush2.msra.mxu0 0.0
      %3072 = vmatprep.subr.mxu0 0.0
      %3073 = vmatpush2.msra.mxu0 0.0
      %3074 = vmatprep.subr.mxu0 0.0
      %3075 = vmatpush2.msra.mxu0 0.0
      %3076 = vmatprep.subr.mxu0 0.0
      %3077 = vmatpush2.msra.mxu0 0.0
      %3078 = vmatprep.subr.mxu0 0.0
      %3079 = vmatpush2.msra.mxu0 0.0
      %3080 = vmatprep.subr.mxu0 0.0
      %3081 = vmatpush2.msra.mxu0 0.0
      %3082 = vmatprep.mubr.f32.mxu0 0.0
      %3083 = vmatmul.mubr.f32.gmra.mxu0 %v3014
      %v3084 = vpop.f32.mrf.mxu0
      %v3085 = vadd.f32 0.0, %v3084
      %v3086 = vpop.f32.mrf.mxu0
      %3087 = vmatprep.mubr.f32.mxu0 0.0
      %3088 = vmatmul.mubr.f32.gmra.mxu0 %v3016
      %v3089 = vpop.f32.mrf.mxu0
      %v3090 = vadd.f32 0.0, %v3089
      %v3091 = vpop.f32.mrf.mxu0
      %3092 = vdwg.mxu0
      %v3093 = vadd.f32 %v2186, %v3085
      %v3094 = vadd.f32 %v2191, %v3090
      %v3095 = vxor.u32 %v3093, 2147483648
      %v3096 = vxor.u32 %v3094, 2147483648
      %v3097 = vmul.f32 %v3095, 1.442695
      %v3098 = vpow.pop %v3097
      %v3099 = vmul.f32 %v3096, 1.442695
      %v3100 = vpow.pop %v3099
      %v3101 = vadd.f32 %v3098, 1.0
      %v3102 = vadd.f32 %v3100, 1.0
      %v3103 = vrcp.pop %v3101
      %v3104 = vmul.f32 1.0, %v3103
      %v3105 = vrcp.pop %v3102
      %v3106 = vmul.f32 1.0, %v3105
      %v3107 = vtanh.pop %v3093
      %v3108 = vtanh.pop %v3094
      %v3109 = vmul.f32 %v3104, %v2994
      %v3110 = vmul.f32 %v3106, %v2995
      %3113 = vrot.lane.b32.xlu0 %v3107, 32
      %v3114 = vpop.permute.xlu0 %3113
      %3115 = vrot.lane.b32.xlu0 %v3108, 32
      %v3116 = vpop.permute.xlu0 %3115
      %v3119 = vmul.f32 %v3104, %v3114
      %v3120 = vmul.f32 %v3106, %v3116
      %3123 = vrot.lane.b32.xlu0 %v3119, 32
      %v3124 = vpop.permute.xlu0 %3123
      %3125 = vrot.lane.b32.xlu0 %v3120, 32
      %v3126 = vpop.permute.xlu0 %3125
      %v3129 = vadd.f32 %v3109, %v3124
      %v3130 = vadd.f32 %v3110, %v3126
      %v3131 = vtanh.pop %v3129
      %v3132 = vtanh.pop %v3130
      %3135 = vrot.lane.b32.xlu0 %v3131, 32
      %v3136 = vpop.permute.xlu0 %3135
      %3137 = vrot.lane.b32.xlu0 %v3132, 32
      %v3138 = vpop.permute.xlu0 %3137
      %v3141 = vmul.f32 %v3104, %v3136
      %v3142 = vmul.f32 %v3106, %v3138
      %3145 = vrot.lane.b32.xlu0 %v3141, 64
      %v3146 = vpop.permute.xlu0 %3145
      %3147 = vrot.lane.b32.xlu0 %v3142, 64
      %v3148 = vpop.permute.xlu0 %3147
      %v3149 = vsel %vm783, %v3146, 0
      %v3151 = vsel %vm783, %v3148, 0
      %3153 = vmatprep.subr.mxu0 0.0
      %3154 = vmatpush1.msra.mxu0 0.0
      %3155 = vmatprep.subr.mxu0 0.0
      %3156 = vmatpush1.msra.mxu0 0.0
      %3157 = vmatprep.subr.mxu0 0.0
      %3158 = vmatpush1.msra.mxu0 0.0
      %3159 = vmatprep.subr.mxu0 0.0
      %3160 = vmatpush1.msra.mxu0 0.0
      %3161 = vmatprep.subr.mxu0 0.0
      %3162 = vmatpush1.msra.mxu0 0.0
      %3163 = vmatprep.subr.mxu0 0.0
      %3164 = vmatpush1.msra.mxu0 0.0
      %3165 = vmatprep.subr.mxu0 0.0
      %3166 = vmatpush1.msra.mxu0 0.0
      %3167 = vmatprep.subr.mxu0 0.0
      %3168 = vmatpush1.msra.mxu0 0.0
      %3169 = vmatprep.subr.mxu0 0.0
      %3170 = vmatpush1.msra.mxu0 0.0
      %3171 = vmatprep.subr.mxu0 0.0
      %3172 = vmatpush1.msra.mxu0 0.0
      %3173 = vmatprep.subr.mxu0 0.0
      %3174 = vmatpush1.msra.mxu0 0.0
      %3175 = vmatprep.subr.mxu0 0.0
      %3176 = vmatpush1.msra.mxu0 0.0
      %3177 = vmatprep.subr.mxu0 0.0
      %3178 = vmatpush1.msra.mxu0 %v2207
      %3179 = vmatprep.subr.mxu0 0.0
      %3180 = vmatpush1.msra.mxu0 %v2206
      %3181 = vmatprep.subr.mxu0 0.0
      %3182 = vmatpush1.msra.mxu0 %v2205
      %3183 = vmatprep.subr.mxu0 0.0
      %3184 = vmatpush1.msra.mxu0 %v2204
      %3185 = vmatprep.subr.mxu0 0.0
      %3186 = vmatpush2.msra.mxu0 0.0
      %3187 = vmatprep.subr.mxu0 0.0
      %3188 = vmatpush2.msra.mxu0 0.0
      %3189 = vmatprep.subr.mxu0 0.0
      %3190 = vmatpush2.msra.mxu0 0.0
      %3191 = vmatprep.subr.mxu0 0.0
      %3192 = vmatpush2.msra.mxu0 0.0
      %3193 = vmatprep.subr.mxu0 0.0
      %3194 = vmatpush2.msra.mxu0 0.0
      %3195 = vmatprep.subr.mxu0 0.0
      %3196 = vmatpush2.msra.mxu0 0.0
      %3197 = vmatprep.subr.mxu0 0.0
      %3198 = vmatpush2.msra.mxu0 0.0
      %3199 = vmatprep.subr.mxu0 0.0
      %3200 = vmatpush2.msra.mxu0 0.0
      %3201 = vmatprep.subr.mxu0 0.0
      %3202 = vmatpush2.msra.mxu0 0.0
      %3203 = vmatprep.subr.mxu0 0.0
      %3204 = vmatpush2.msra.mxu0 0.0
      %3205 = vmatprep.subr.mxu0 0.0
      %3206 = vmatpush2.msra.mxu0 0.0
      %3207 = vmatprep.subr.mxu0 0.0
      %3208 = vmatpush2.msra.mxu0 0.0
      %3209 = vmatprep.subr.mxu0 0.0
      %3210 = vmatpush2.msra.mxu0 0.0
      %3211 = vmatprep.subr.mxu0 0.0
      %3212 = vmatpush2.msra.mxu0 0.0
      %3213 = vmatprep.subr.mxu0 0.0
      %3214 = vmatpush2.msra.mxu0 0.0
      %3215 = vmatprep.subr.mxu0 0.0
      %3216 = vmatpush2.msra.mxu0 0.0
      %3217 = vmatprep.mubr.f32.mxu0 0.0
      %3218 = vmatmul.mubr.f32.gmra.mxu0 %v3149
      %v3219 = vpop.f32.mrf.mxu0
      %v3220 = vadd.f32 0.0, %v3219
      %v3221 = vpop.f32.mrf.mxu0
      %3222 = vmatprep.mubr.f32.mxu0 0.0
      %3223 = vmatmul.mubr.f32.gmra.mxu0 %v3151
      %v3224 = vpop.f32.mrf.mxu0
      %v3225 = vadd.f32 0.0, %v3224
      %v3226 = vpop.f32.mrf.mxu0
      %3227 = vdwg.mxu0
      %v3228 = vadd.f32 %v2196, %v3220
      %v3229 = vadd.f32 %v2201, %v3225
      %v3230 = vxor.u32 %v3228, 2147483648
      %v3231 = vxor.u32 %v3229, 2147483648
      %v3232 = vmul.f32 %v3230, 1.442695
      %v3233 = vpow.pop %v3232
      %v3234 = vmul.f32 %v3231, 1.442695
      %v3235 = vpow.pop %v3234
      %v3236 = vadd.f32 %v3233, 1.0
      %v3237 = vadd.f32 %v3235, 1.0
      %v3238 = vrcp.pop %v3236
      %v3239 = vmul.f32 1.0, %v3238
      %v3240 = vrcp.pop %v3237
      %v3241 = vmul.f32 1.0, %v3240
      %v3242 = vtanh.pop %v3228
      %v3243 = vtanh.pop %v3229
      %v3244 = vmul.f32 %v3239, %v3129
      %v3245 = vmul.f32 %v3241, %v3130
      %3248 = vrot.lane.b32.xlu0 %v3242, 32
      %v3249 = vpop.permute.xlu0 %3248
      %3250 = vrot.lane.b32.xlu0 %v3243, 32
      %v3251 = vpop.permute.xlu0 %3250
      %v3254 = vmul.f32 %v3239, %v3249
      %v3255 = vmul.f32 %v3241, %v3251
      %3258 = vrot.lane.b32.xlu0 %v3254, 32
      %v3259 = vpop.permute.xlu0 %3258
      %3260 = vrot.lane.b32.xlu0 %v3255, 32
      %v3261 = vpop.permute.xlu0 %3260
      %v3264 = vadd.f32 %v3244, %v3259
      %v3265 = vadd.f32 %v3245, %v3261
      %v3266 = vtanh.pop %v3264
      %v3267 = vtanh.pop %v3265
      %3270 = vrot.lane.b32.xlu0 %v3266, 32
      %v3271 = vpop.permute.xlu0 %3270
      %3272 = vrot.lane.b32.xlu0 %v3267, 32
      %v3273 = vpop.permute.xlu0 %3272
      %v3276 = vmul.f32 %v3239, %v3271
      %v3277 = vmul.f32 %v3241, %v3273
      %v3280 = vcombine.high %v3276, %v3276
      %v3282 = vunpack.c.l.s4 1983009808
      %v3283 = vunpack.c.0.s8 %v3282
      %v3284 = vlaneseq
      %v3285 = vshrl.u32 %v3284, 7
      %v3286 = vsub.s32 %v3283, %v3285
      %v3287 = vrot.slane %v3276, %v3286
      %v3289 = vunpack.c.l.s4 1983009808
      %v3290 = vunpack.c.0.s8 %v3289
      %v3291 = vlaneseq
      %v3292 = vshrl.u32 %v3291, 7
      %v3293 = vsub.s32 %v3290, %v3292
      %v3294 = vrot.slane %v3280, %v3293
      %v3295 = vcombine.high %v3287, %v3287
      %v3296 = vcombine.high %v3294, %v3294
      %v3297 = vcombine.high %v3277, %v3277
      %v3299 = vunpack.c.l.s4 1983009808
      %v3300 = vunpack.c.0.s8 %v3299
      %v3301 = vlaneseq
      %v3302 = vshrl.u32 %v3301, 7
      %v3303 = vsub.s32 %v3300, %v3302
      %v3304 = vrot.slane %v3277, %v3303
      %v3306 = vunpack.c.l.s4 1983009808
      %v3307 = vunpack.c.0.s8 %v3306
      %v3308 = vlaneseq
      %v3309 = vshrl.u32 %v3308, 7
      %v3310 = vsub.s32 %v3307, %v3309
      %v3311 = vrot.slane %v3297, %v3310
      %v3312 = vcombine.high %v3304, %v3304
      %v3313 = vcombine.high %v3311, %v3311
      %v3315 = vunpack.c.l.s4 1983009808
      %v3316 = vunpack.c.0.s8 %v3315
      %v3317 = vlaneseq
      %v3318 = vshrl.u32 %v3317, 7
      %v3319 = vsub.s32 %v3316, %v3318
      %v3320 = vrot.slane %v3287, %v3319
      %v3322 = vunpack.c.l.s4 1983009808
      %v3323 = vunpack.c.0.s8 %v3322
      %v3324 = vlaneseq
      %v3325 = vshrl.u32 %v3324, 7
      %v3326 = vsub.s32 %v3323, %v3325
      %v3327 = vrot.slane %v3295, %v3326
      %v3329 = vunpack.c.l.s4 1983009808
      %v3330 = vunpack.c.0.s8 %v3329
      %v3331 = vlaneseq
      %v3332 = vshrl.u32 %v3331, 7
      %v3333 = vsub.s32 %v3330, %v3332
      %v3334 = vrot.slane %v3294, %v3333
      %v3336 = vunpack.c.l.s4 1983009808
      %v3337 = vunpack.c.0.s8 %v3336
      %v3338 = vlaneseq
      %v3339 = vshrl.u32 %v3338, 7
      %v3340 = vsub.s32 %v3337, %v3339
      %v3341 = vrot.slane %v3296, %v3340
      %v3343 = vunpack.c.l.s4 1983009808
      %v3344 = vunpack.c.0.s8 %v3343
      %v3345 = vlaneseq
      %v3346 = vshrl.u32 %v3345, 7
      %v3347 = vsub.s32 %v3344, %v3346
      %v3348 = vrot.slane %v3304, %v3347
      %v3350 = vunpack.c.l.s4 1983009808
      %v3351 = vunpack.c.0.s8 %v3350
      %v3352 = vlaneseq
      %v3353 = vshrl.u32 %v3352, 7
      %v3354 = vsub.s32 %v3351, %v3353
      %v3355 = vrot.slane %v3312, %v3354
      %v3357 = vunpack.c.l.s4 1983009808
      %v3358 = vunpack.c.0.s8 %v3357
      %v3359 = vlaneseq
      %v3360 = vshrl.u32 %v3359, 7
      %v3361 = vsub.s32 %v3358, %v3360
      %v3362 = vrot.slane %v3311, %v3361
      %v3364 = vunpack.c.l.s4 1983009808
      %v3365 = vunpack.c.0.s8 %v3364
      %v3366 = vlaneseq
      %v3367 = vshrl.u32 %v3366, 7
      %v3368 = vsub.s32 %v3365, %v3367
      %v3369 = vrot.slane %v3313, %v3368
      %3370 = vrot.lane.b32.xlu0 %v3320, 64
      %v3371 = vpop.permute.xlu0 %3370
      %3372 = vrot.lane.b32.xlu0 %v3327, 64
      %v3373 = vpop.permute.xlu0 %3372
      %3374 = vrot.lane.b32.xlu0 %v3334, 64
      %v3375 = vpop.permute.xlu0 %3374
      %3376 = vrot.lane.b32.xlu0 %v3341, 64
      %v3377 = vpop.permute.xlu0 %3376
      %3378 = vrot.lane.b32.xlu0 %v3348, 64
      %v3379 = vpop.permute.xlu0 %3378
      %3380 = vrot.lane.b32.xlu0 %v3355, 64
      %v3381 = vpop.permute.xlu0 %3380
      %3382 = vrot.lane.b32.xlu0 %v3362, 64
      %v3383 = vpop.permute.xlu0 %3382
      %3384 = vrot.lane.b32.xlu0 %v3369, 64
      %v3385 = vpop.permute.xlu0 %3384
      %vm3394 = vcmask 254976
      %3395 = vst.msk [vmem:[%s283] sm:$0x3] %vm3394, %v3371
      %3396 = vst.msk [vmem:[%s283 + $0x2] sm:$0x3] %vm3394, %v3373
      %3397 = vst.msk [vmem:[%s283 + $0x4] sm:$0x3] %vm3394, %v3375
      %3398 = vst.msk [vmem:[%s283 + $0x6] sm:$0x3] %vm3394, %v3377
      %3399 = vst.msk [vmem:[%s283 + $0x8] sm:$0x3] %vm3394, %v3379
      %3400 = vst.msk [vmem:[%s283 + $0xa] sm:$0x3] %vm3394, %v3381
      %3401 = vst.msk [vmem:[%s283 + $0xc] sm:$0x3] %vm3394, %v3383
      %3402 = vst.msk [vmem:[%s283 + $0xe] sm:$0x3] %vm3394, %v3385
      %s3403 = smul.u32 8, %s18
      %p3404 = scmp.lt.s32.totalorder %s3403, 15
      %s3405 = scalar_select %p3404, %s3403, 15
      %s3406 = smul.addr %s3405, 2
      %s3407 = scalar_lea.vmem %s7, %s3406
      // Predicated region
      $region49: #{gcn_lstm_forward.3} parent=47 // pred_check
        %p3408 = pneg %p188
      $region50: #{gcn_lstm_forward.3} parent=47 // pred_check_branch
        %3410 = sbr.rel (%p3408) target = $region52
      $region51: #{gcn_lstm_forward.3} parent=47 // pred_region
        %s3411 = smul.u32 8, %s18
      $region52: #{gcn_lstm_forward.3} parent=47 // pred_fallthru
        _
    $region48: #{gcn_lstm_forward.3} parent=5 // pred_fallthru
      _
    %p3412 = scmp.le.s32.totalorder 2, %s13
    // Predicated region
    $region53: #{gcn_lstm_forward.3} parent=5 // pred_check
      %p3413 = pneg %p3412
    $region54: #{gcn_lstm_forward.3} parent=5 // pred_check_branch
      %3415 = sbr.rel (%p3413) target = $region56
    $region55: #{gcn_lstm_forward.3} parent=5 // pred_region
      %s3416 = ssub.s32 %s13, 2
      // Predicated region
      $region57: #{gcn_lstm_forward.3} parent=55 // pred_check
        %p3417 = pneg %p194
      $region58: #{gcn_lstm_forward.3} parent=55 // pred_check_branch
        %3419 = sbr.rel (%p3417) target = $region60
      $region59: #{gcn_lstm_forward.3} parent=55 // pred_region
        %s3420 = smul.u32 8, %s19
        %p3421 = scmp.lt.s32.totalorder %s3420, 15
        %s3422 = scalar_select %p3421, %s3420, 15
        %s3423 = smul.addr %s3422, 2
        %s3424 = scalar_lea.vmem %s7, %s3423
      $region60: #{gcn_lstm_forward.3} parent=55 // pred_fallthru
        _
    $region56: #{gcn_lstm_forward.3} parent=5 // pred_fallthru
      _
  $region6: #{gcn_lstm_forward.3} parent=0 // loop_footer
    %s17 = sadd.s32 1, %s13
  $region7: #{gcn_lstm_forward.3} parent=0 // loop_footer_branch
    %12 = sbr.rel target = $region3
  $region8: #{gcn_lstm_forward.3} parent=0 // loop_exit
    _

</llo_original>
